<compile_context>
chip_gen: v5e
topology: v5e:2x2
jax: 0.10.0
libtpu: 0.0.40
codegen_flags: <defaults>
</compile_context>

<pallas_src>
import functools

import jax
import jax.numpy as jnp
from jax import lax
from jax.experimental import pallas as pl
from jax.experimental.pallas import tpu as pltpu


# ---------------------------------------------------------------------------
# Fused Pallas GEMM kernel:  out = [relu]( A @ B + shift )
#   A: (tm, K) bf16,  B: (K, tn) bf16,  shift: (1, tn) f32,  out: (tm, tn)
# Full K per block (K is small for every layer of this model), so there is no
# reduction grid axis and no accumulator scratch.
# ---------------------------------------------------------------------------
def _gemm_kernel(a_ref, b_ref, t_ref, o_ref, *, relu):
    acc = jnp.dot(a_ref[...], b_ref[...], preferred_element_type=jnp.float32)
    y = acc + t_ref[...]
    if relu:
        y = jnp.maximum(y, 0.0)
    o_ref[...] = y.astype(o_ref.dtype)


def _rup(x, m):
    return (x + m - 1) // m * m


def fused_gemm(a, b, shift, *, relu=False, out_dtype=jnp.bfloat16):
    """[relu](a @ b + shift).  a: (M, K), b: (K, N), shift: (N,).

    Operands are cast to bf16 (MXU-native on v5e/v6e/v7x); accumulation and the
    epilogue run in f32 inside the kernel; output dtype is selectable.
    """
    M, K = a.shape
    K2, N = b.shape
    assert K == K2, (a.shape, b.shape)

    # Minimal padding: K to a multiple of 16 (bf16 sublane packing; zero rows/
    # cols contribute nothing), M to a multiple of 16 (single row tile for the
    # small M's in this model), N to lane-dense multiples of 128.
    Kp = _rup(K, 16)
    tm = _rup(M, 16) if M <= 512 else 256
    Mp = _rup(M, tm)
    tn = min(512, _rup(N, 128))
    Np = _rup(N, tn)

    a_p = jnp.pad(a.astype(jnp.bfloat16), ((0, Mp - M), (0, Kp - K)))
    b_p = jnp.pad(b.astype(jnp.bfloat16), ((0, Kp - K), (0, Np - N)))
    t_p = jnp.pad(shift.astype(jnp.float32), (0, Np - N)).reshape(1, Np)

    out = pl.pallas_call(
        functools.partial(_gemm_kernel, relu=relu),
        out_shape=jax.ShapeDtypeStruct((Mp, Np), out_dtype),
        grid_spec=pltpu.PrefetchScalarGridSpec(
            num_scalar_prefetch=0,
            grid=(Mp // tm, Np // tn),
            in_specs=[
                pl.BlockSpec((tm, Kp), lambda i, j: (i, 0)),
                pl.BlockSpec((Kp, tn), lambda i, j: (0, j)),
                pl.BlockSpec((1, tn), lambda i, j: (0, j)),
            ],
            out_specs=pl.BlockSpec((tm, tn), lambda i, j: (i, j)),
        ),
        compiler_params=pltpu.CompilerParams(
            dimension_semantics=("parallel", "parallel")),
    )(a_p, b_p, t_p)
    return out[:M, :N]


# ---------------------------------------------------------------------------
# Glue: 1-D im2col, pooling, BN folding
# ---------------------------------------------------------------------------
def extract_patches_1d(x, k, stride, padding):
    """x: (B, L, C) -> (B, Lo, k*C) with tap-major feature order."""
    B, L, C = x.shape
    xp = jnp.pad(x, ((0, 0), (padding, padding), (0, 0)))
    Lo = (L + 2 * padding - k) // stride + 1
    cols = [xp[:, i:i + stride * (Lo - 1) + 1:stride, :] for i in range(k)]
    return jnp.concatenate(cols, axis=-1), Lo


def _fold_bn(bn, eps=1e-5):
    scale = bn["gamma"] / jnp.sqrt(bn["var"] + eps)
    shift = bn["beta"] - bn["mean"] * scale
    return scale, shift


def conv1d_bn_relu(x, w, bn, stride, padding, relu=True,
                   out_dtype=jnp.bfloat16):
    """x: (B, L, Cin) channels-last; w: (Cout, Cin, k) (PyTorch layout).

    BN (eval mode, running stats) is folded: scale into the weight columns,
    shift passed to the fused GEMM epilogue.
    """
    cout, cin, k = w.shape
    patches, Lo = extract_patches_1d(x, k, stride, padding)
    B = x.shape[0]
    a = patches.reshape(B * Lo, k * cin)
    # (k, cin, cout) flatten matches the tap-major patch feature order.
    wm = jnp.transpose(w, (2, 1, 0)).reshape(k * cin, cout)
    scale, shift = _fold_bn(bn)
    wm = wm * scale[None, :]
    y = fused_gemm(a, wm, shift, relu=relu, out_dtype=out_dtype)
    return y.reshape(B, Lo, cout)


def maxpool1d(x, k=2, s=2):
    init = jnp.array(-jnp.inf, dtype=x.dtype)
    return lax.reduce_window(x, init, lax.max,
                             window_dimensions=(1, k, 1),
                             window_strides=(1, s, 1),
                             padding="VALID")


# ---------------------------------------------------------------------------
# Model: Shallow_1DCNN forward
# ---------------------------------------------------------------------------
def shallow_1dcnn_forward(params, x):
    # PyTorch: 2-D input (B, L) -> unsqueeze(1) -> (B, 1, L); 3-D accepted as-is.
    if x.ndim == 2:
        x = x[:, :, None]                       # (B, L, 1) channels-last
    elif x.ndim == 3:
        x = jnp.transpose(x, (0, 2, 1))         # (B, C, L) -> (B, L, C)
    else:
        raise ValueError(f"Expected input dimension 2 or 3, but got {x.ndim}")

    # ----- encoder (Shallow_1DCNN_Encoder, in_shape=(138,)) -----
    x = conv1d_bn_relu(x, params["conv1"]["w"], params["bn1"],
                       stride=2, padding=3)      # L: 138 -> 69, C: 1 -> 32
    x = maxpool1d(x)                             # 69 -> 34
    x = conv1d_bn_relu(x, params["conv2"]["w"], params["bn2"],
                       stride=2, padding=2)      # 34 -> 17, C: 32 -> 64
    x = conv1d_bn_relu(x, params["conv3"]["w"], params["bn3"],
                       stride=2, padding=1)      # 17 -> 9,  C: 64 -> 128
    x = jnp.mean(x.astype(jnp.float32), axis=1)  # adaptive avg pool -> (B, 128)

    # ----- decoder (deep_classfier: 128 -> 4096 -> out_classes) -----
    x = fused_gemm(x, params["dec1"]["w"], params["dec1"]["b"],
                   relu=True, out_dtype=jnp.bfloat16)   # (B, 4096)
    x = fused_gemm(x, params["dec2"]["w"], params["dec2"]["b"],
                   relu=False, out_dtype=jnp.float32)   # (B, out_classes)
    return x


# ---------------------------------------------------------------------------
# Deterministic parameter initialization
# ---------------------------------------------------------------------------
def _conv1d_w(key, cout, cin, k):
    fan_in = cin * k
    return jax.random.normal(key, (cout, cin, k), jnp.float32) * (2.0 / fan_in) ** 0.5


def _bn_params(key, c):
    k1, k2, k3, k4 = jax.random.split(key, 4)
    return {
        "gamma": 1.0 + 0.1 * jax.random.normal(k1, (c,), jnp.float32),
        "beta": 0.1 * jax.random.normal(k2, (c,), jnp.float32),
        "mean": 0.1 * jax.random.normal(k3, (c,), jnp.float32),
        "var": 1.0 + 0.1 * jax.random.uniform(k4, (c,), jnp.float32),
    }


def _linear_params(key, din, dout):
    kw, kb = jax.random.split(key)
    return {"w": jax.random.normal(kw, (din, dout), jnp.float32) * (2.0 / din) ** 0.5,
            "b": 0.01 * jax.random.normal(kb, (dout,), jnp.float32)}


def init_params(key, out_classes=8):
    ks = jax.random.split(key, 8)
    return {
        "conv1": {"w": _conv1d_w(ks[0], 32, 1, 7)},
        "bn1": _bn_params(ks[1], 32),
        "conv2": {"w": _conv1d_w(ks[2], 64, 32, 5)},
        "bn2": _bn_params(ks[3], 64),
        "conv3": {"w": _conv1d_w(ks[4], 128, 64, 3)},
        "bn3": _bn_params(ks[5], 128),
        "dec1": _linear_params(ks[6], 128, 4096),
        "dec2": _linear_params(ks[7], 4096, out_classes),
    }


# ---------------------------------------------------------------------------
if __name__ == "__main__":
    key = jax.random.PRNGKey(0)
    pkey, xkey = jax.random.split(key)
    params = init_params(pkey, out_classes=8)

    # 2-D PyTorch input (B, L) with in_shape=(138,); forward unsqueezes channel.
    x = jax.random.normal(xkey, (2, 138), jnp.float32)

    fwd = jax.jit(shallow_1dcnn_forward)
    out = jax.block_until_ready(fwd(params, x))
    assert out.shape == (2, 8), out.shape
    assert bool(jnp.all(jnp.isfinite(out)))
    print("KERNEL_OK")
</pallas_src>

<mosaic_0001>
module attributes {stable_mosaic.version = 11 : i64} {
  func.func @_gemm_kernel(%arg0: i32, %arg1: i32, %arg2: memref<144x16xbf16, #tpu.memory_space<vmem>>, %arg3: memref<16x128xbf16, #tpu.memory_space<vmem>>, %arg4: memref<1x128xf32, #tpu.memory_space<vmem>>, %arg5: memref<144x128xbf16, #tpu.memory_space<vmem>>) attributes {dimension_semantics = [#tpu.dimension_semantics<parallel>, #tpu.dimension_semantics<parallel>], iteration_bounds = array<i64: 1, 1>, scalar_prefetch = 0 : i64, scratch_operands = 0 : i64, tpu.core_type = #tpu.core_type<tc>, window_params = [{transform_indices = @transform_0, window_bounds = array<i64: 144, 16>}, {transform_indices = @transform_1, window_bounds = array<i64: 16, 128>}, {transform_indices = @transform_2, window_bounds = array<i64: 1, 128>}, {transform_indices = @transform_3, window_bounds = array<i64: 144, 128>}]} {
    %c0 = arith.constant 0 : index
    %c0_0 = arith.constant 0 : index
    %0 = vector.load %arg2[%c0, %c0_0] : memref<144x16xbf16, #tpu.memory_space<vmem>>, vector<144x16xbf16>
    %c0_1 = arith.constant 0 : index
    %c0_2 = arith.constant 0 : index
    %1 = vector.load %arg3[%c0_1, %c0_2] : memref<16x128xbf16, #tpu.memory_space<vmem>>, vector<16x128xbf16>
    %cst = arith.constant dense<0.000000e+00> : vector<144x128xf32>
    %2 = tpu.matmul %0, %1, %cst {dimension_numbers = #tpu.dot_dimension_numbers<[1], [0], [0], [1], [0, 0, 1, 1], [], []>} : vector<144x16xbf16>, vector<16x128xbf16>, vector<144x128xf32> -> vector<144x128xf32>
    %c0_3 = arith.constant 0 : index
    %c0_4 = arith.constant 0 : index
    %3 = vector.load %arg4[%c0_3, %c0_4] : memref<1x128xf32, #tpu.memory_space<vmem>>, vector<1x128xf32>
    %4 = vector.broadcast %3 : vector<1x128xf32> to vector<144x128xf32>
    %5 = arith.addf %2, %4 : vector<144x128xf32>
    %cst_5 = arith.constant 0.000000e+00 : f32
    %6 = vector.broadcast %cst_5 : f32 to vector<144x128xf32>
    %7 = arith.maximumf %5, %6 : vector<144x128xf32>
    %8 = arith.truncf %7 : vector<144x128xf32> to vector<144x128xbf16>
    %c0_6 = arith.constant 0 : index
    %c0_7 = arith.constant 0 : index
    %9 = vector.load %arg5[%c0_6, %c0_7] : memref<144x128xbf16, #tpu.memory_space<vmem>>, vector<144x128xbf16>
    tpu.vector_store %arg5[%c0_6, %c0_7], %8 {strides = array<i32>} : memref<144x128xbf16, #tpu.memory_space<vmem>>, vector<144x128xbf16>,
    return
  }
  func.func @transform_0(%arg0: i32, %arg1: i32) -> (i32, i32) {
    %c0_i32 = arith.constant 0 : i32
    %c0_i32_0 = arith.constant 0 : i32
    return %arg0, %c0_i32 : i32, i32
  }
  func.func @transform_1(%arg0: i32, %arg1: i32) -> (i32, i32) {
    %c0_i32 = arith.constant 0 : i32
    %c0_i32_0 = arith.constant 0 : i32
    return %c0_i32, %arg1 : i32, i32
  }
  func.func @transform_2(%arg0: i32, %arg1: i32) -> (i32, i32) {
    %c0_i32 = arith.constant 0 : i32
    %c0_i32_0 = arith.constant 0 : i32
    return %c0_i32, %arg1 : i32, i32
  }
  func.func @transform_3(%arg0: i32, %arg1: i32) -> (i32, i32) {
    %c0_i32 = arith.constant 0 : i32
    return %arg0, %arg1 : i32, i32
  }
}

module attributes {stable_mosaic.version = 11 : i64} {
  func.func @_gemm_kernel(%arg0: i32, %arg1: i32, %arg2: memref<48x160xbf16, #tpu.memory_space<vmem>>, %arg3: memref<160x128xbf16, #tpu.memory_space<vmem>>, %arg4: memref<1x128xf32, #tpu.memory_space<vmem>>, %arg5: memref<48x128xbf16, #tpu.memory_space<vmem>>) attributes {dimension_semantics = [#tpu.dimension_semantics<parallel>, #tpu.dimension_semantics<parallel>], iteration_bounds = array<i64: 1, 1>, scalar_prefetch = 0 : i64, scratch_operands = 0 : i64, tpu.core_type = #tpu.core_type<tc>, window_params = [{transform_indices = @transform_0, window_bounds = array<i64: 48, 160>}, {transform_indices = @transform_1, window_bounds = array<i64: 160, 128>}, {transform_indices = @transform_2, window_bounds = array<i64: 1, 128>}, {transform_indices = @transform_3, window_bounds = array<i64: 48, 128>}]} {
    %c0 = arith.constant 0 : index
    %c0_0 = arith.constant 0 : index
    %0 = vector.load %arg2[%c0, %c0_0] : memref<48x160xbf16, #tpu.memory_space<vmem>>, vector<48x160xbf16>
    %c0_1 = arith.constant 0 : index
    %c0_2 = arith.constant 0 : index
    %1 = vector.load %arg3[%c0_1, %c0_2] : memref<160x128xbf16, #tpu.memory_space<vmem>>, vector<160x128xbf16>
    %cst = arith.constant dense<0.000000e+00> : vector<48x128xf32>
    %2 = tpu.matmul %0, %1, %cst {dimension_numbers = #tpu.dot_dimension_numbers<[1], [0], [0], [1], [0, 0, 1, 1], [], []>} : vector<48x160xbf16>, vector<160x128xbf16>, vector<48x128xf32> -> vector<48x128xf32>
    %c0_3 = arith.constant 0 : index
    %c0_4 = arith.constant 0 : index
    %3 = vector.load %arg4[%c0_3, %c0_4] : memref<1x128xf32, #tpu.memory_space<vmem>>, vector<1x128xf32>
    %4 = vector.broadcast %3 : vector<1x128xf32> to vector<48x128xf32>
    %5 = arith.addf %2, %4 : vector<48x128xf32>
    %cst_5 = arith.constant 0.000000e+00 : f32
    %6 = vector.broadcast %cst_5 : f32 to vector<48x128xf32>
    %7 = arith.maximumf %5, %6 : vector<48x128xf32>
    %8 = arith.truncf %7 : vector<48x128xf32> to vector<48x128xbf16>
    %c0_6 = arith.constant 0 : index
    %c0_7 = arith.constant 0 : index
    %9 = vector.load %arg5[%c0_6, %c0_7] : memref<48x128xbf16, #tpu.memory_space<vmem>>, vector<48x128xbf16>
    tpu.vector_store %arg5[%c0_6, %c0_7], %8 {strides = array<i32>} : memref<48x128xbf16, #tpu.memory_space<vmem>>, vector<48x128xbf16>,
    return
  }
  func.func @transform_0(%arg0: i32, %arg1: i32) -> (i32, i32) {
    %c0_i32 = arith.constant 0 : i32
    %c0_i32_0 = arith.constant 0 : i32
    return %arg0, %c0_i32 : i32, i32
  }
  func.func @transform_1(%arg0: i32, %arg1: i32) -> (i32, i32) {
    %c0_i32 = arith.constant 0 : i32
    %c0_i32_0 = arith.constant 0 : i32
    return %c0_i32, %arg1 : i32, i32
  }
  func.func @transform_2(%arg0: i32, %arg1: i32) -> (i32, i32) {
    %c0_i32 = arith.constant 0 : i32
    %c0_i32_0 = arith.constant 0 : i32
    return %c0_i32, %arg1 : i32, i32
  }
  func.func @transform_3(%arg0: i32, %arg1: i32) -> (i32, i32) {
    %c0_i32 = arith.constant 0 : i32
    return %arg0, %arg1 : i32, i32
  }
}

module attributes {stable_mosaic.version = 11 : i64} {
  func.func @_gemm_kernel(%arg0: i32, %arg1: i32, %arg2: memref<32x192xbf16, #tpu.memory_space<vmem>>, %arg3: memref<192x128xbf16, #tpu.memory_space<vmem>>, %arg4: memref<1x128xf32, #tpu.memory_space<vmem>>, %arg5: memref<32x128xbf16, #tpu.memory_space<vmem>>) attributes {dimension_semantics = [#tpu.dimension_semantics<parallel>, #tpu.dimension_semantics<parallel>], iteration_bounds = array<i64: 1, 1>, scalar_prefetch = 0 : i64, scratch_operands = 0 : i64, tpu.core_type = #tpu.core_type<tc>, window_params = [{transform_indices = @transform_0, window_bounds = array<i64: 32, 192>}, {transform_indices = @transform_1, window_bounds = array<i64: 192, 128>}, {transform_indices = @transform_2, window_bounds = array<i64: 1, 128>}, {transform_indices = @transform_3, window_bounds = array<i64: 32, 128>}]} {
    %c0 = arith.constant 0 : index
    %c0_0 = arith.constant 0 : index
    %0 = vector.load %arg2[%c0, %c0_0] : memref<32x192xbf16, #tpu.memory_space<vmem>>, vector<32x192xbf16>
    %c0_1 = arith.constant 0 : index
    %c0_2 = arith.constant 0 : index
    %1 = vector.load %arg3[%c0_1, %c0_2] : memref<192x128xbf16, #tpu.memory_space<vmem>>, vector<192x128xbf16>
    %cst = arith.constant dense<0.000000e+00> : vector<32x128xf32>
    %2 = tpu.matmul %0, %1, %cst {dimension_numbers = #tpu.dot_dimension_numbers<[1], [0], [0], [1], [0, 0, 1, 1], [], []>} : vector<32x192xbf16>, vector<192x128xbf16>, vector<32x128xf32> -> vector<32x128xf32>
    %c0_3 = arith.constant 0 : index
    %c0_4 = arith.constant 0 : index
    %3 = vector.load %arg4[%c0_3, %c0_4] : memref<1x128xf32, #tpu.memory_space<vmem>>, vector<1x128xf32>
    %4 = vector.broadcast %3 : vector<1x128xf32> to vector<32x128xf32>
    %5 = arith.addf %2, %4 : vector<32x128xf32>
    %cst_5 = arith.constant 0.000000e+00 : f32
    %6 = vector.broadcast %cst_5 : f32 to vector<32x128xf32>
    %7 = arith.maximumf %5, %6 : vector<32x128xf32>
    %8 = arith.truncf %7 : vector<32x128xf32> to vector<32x128xbf16>
    %c0_6 = arith.constant 0 : index
    %c0_7 = arith.constant 0 : index
    %9 = vector.load %arg5[%c0_6, %c0_7] : memref<32x128xbf16, #tpu.memory_space<vmem>>, vector<32x128xbf16>
    tpu.vector_store %arg5[%c0_6, %c0_7], %8 {strides = array<i32>} : memref<32x128xbf16, #tpu.memory_space<vmem>>, vector<32x128xbf16>,
    return
  }
  func.func @transform_0(%arg0: i32, %arg1: i32) -> (i32, i32) {
    %c0_i32 = arith.constant 0 : i32
    %c0_i32_0 = arith.constant 0 : i32
    return %arg0, %c0_i32 : i32, i32
  }
  func.func @transform_1(%arg0: i32, %arg1: i32) -> (i32, i32) {
    %c0_i32 = arith.constant 0 : i32
    %c0_i32_0 = arith.constant 0 : i32
    return %c0_i32, %arg1 : i32, i32
  }
  func.func @transform_2(%arg0: i32, %arg1: i32) -> (i32, i32) {
    %c0_i32 = arith.constant 0 : i32
    %c0_i32_0 = arith.constant 0 : i32
    return %c0_i32, %arg1 : i32, i32
  }
  func.func @transform_3(%arg0: i32, %arg1: i32) -> (i32, i32) {
    %c0_i32 = arith.constant 0 : i32
    return %arg0, %arg1 : i32, i32
  }
}

module attributes {stable_mosaic.version = 11 : i64} {
  func.func @_gemm_kernel(%arg0: i32, %arg1: i32, %arg2: memref<16x128xbf16, #tpu.memory_space<vmem>>, %arg3: memref<128x512xbf16, #tpu.memory_space<vmem>>, %arg4: memref<1x512xf32, #tpu.memory_space<vmem>>, %arg5: memref<16x512xbf16, #tpu.memory_space<vmem>>) attributes {dimension_semantics = [#tpu.dimension_semantics<parallel>, #tpu.dimension_semantics<parallel>], iteration_bounds = array<i64: 1, 8>, scalar_prefetch = 0 : i64, scratch_operands = 0 : i64, tpu.core_type = #tpu.core_type<tc>, window_params = [{transform_indices = @transform_0, window_bounds = array<i64: 16, 128>}, {transform_indices = @transform_1, window_bounds = array<i64: 128, 512>}, {transform_indices = @transform_2, window_bounds = array<i64: 1, 512>}, {transform_indices = @transform_3, window_bounds = array<i64: 16, 512>}]} {
    %c0 = arith.constant 0 : index
    %c0_0 = arith.constant 0 : index
    %0 = vector.load %arg2[%c0, %c0_0] : memref<16x128xbf16, #tpu.memory_space<vmem>>, vector<16x128xbf16>
    %c0_1 = arith.constant 0 : index
    %c0_2 = arith.constant 0 : index
    %1 = vector.load %arg3[%c0_1, %c0_2] : memref<128x512xbf16, #tpu.memory_space<vmem>>, vector<128x512xbf16>
    %cst = arith.constant dense<0.000000e+00> : vector<16x512xf32>
    %2 = tpu.matmul %0, %1, %cst {dimension_numbers = #tpu.dot_dimension_numbers<[1], [0], [0], [1], [0, 0, 1, 1], [], []>} : vector<16x128xbf16>, vector<128x512xbf16>, vector<16x512xf32> -> vector<16x512xf32>
    %c0_3 = arith.constant 0 : index
    %c0_4 = arith.constant 0 : index
    %3 = vector.load %arg4[%c0_3, %c0_4] : memref<1x512xf32, #tpu.memory_space<vmem>>, vector<1x512xf32>
    %4 = vector.broadcast %3 : vector<1x512xf32> to vector<16x512xf32>
    %5 = arith.addf %2, %4 : vector<16x512xf32>
    %cst_5 = arith.constant 0.000000e+00 : f32
    %6 = vector.broadcast %cst_5 : f32 to vector<16x512xf32>
    %7 = arith.maximumf %5, %6 : vector<16x512xf32>
    %8 = arith.truncf %7 : vector<16x512xf32> to vector<16x512xbf16>
    %c0_6 = arith.constant 0 : index
    %c0_7 = arith.constant 0 : index
    %9 = vector.load %arg5[%c0_6, %c0_7] : memref<16x512xbf16, #tpu.memory_space<vmem>>, vector<16x512xbf16>
    tpu.vector_store %arg5[%c0_6, %c0_7], %8 {strides = array<i32>} : memref<16x512xbf16, #tpu.memory_space<vmem>>, vector<16x512xbf16>,
    return
  }
  func.func @transform_0(%arg0: i32, %arg1: i32) -> (i32, i32) {
    %c0_i32 = arith.constant 0 : i32
    %c0_i32_0 = arith.constant 0 : i32
    return %arg0, %c0_i32 : i32, i32
  }
  func.func @transform_1(%arg0: i32, %arg1: i32) -> (i32, i32) {
    %c0_i32 = arith.constant 0 : i32
    %c0_i32_0 = arith.constant 0 : i32
    return %c0_i32, %arg1 : i32, i32
  }
  func.func @transform_2(%arg0: i32, %arg1: i32) -> (i32, i32) {
    %c0_i32 = arith.constant 0 : i32
    %c0_i32_0 = arith.constant 0 : i32
    return %c0_i32, %arg1 : i32, i32
  }
  func.func @transform_3(%arg0: i32, %arg1: i32) -> (i32, i32) {
    %c0_i32 = arith.constant 0 : i32
    return %arg0, %arg1 : i32, i32
  }
}

module attributes {stable_mosaic.version = 11 : i64} {
  func.func @_gemm_kernel(%arg0: i32, %arg1: i32, %arg2: memref<16x4096xbf16, #tpu.memory_space<vmem>>, %arg3: memref<4096x128xbf16, #tpu.memory_space<vmem>>, %arg4: memref<1x128xf32, #tpu.memory_space<vmem>>, %arg5: memref<16x128xf32, #tpu.memory_space<vmem>>) attributes {dimension_semantics = [#tpu.dimension_semantics<parallel>, #tpu.dimension_semantics<parallel>], iteration_bounds = array<i64: 1, 1>, scalar_prefetch = 0 : i64, scratch_operands = 0 : i64, tpu.core_type = #tpu.core_type<tc>, window_params = [{transform_indices = @transform_0, window_bounds = array<i64: 16, 4096>}, {transform_indices = @transform_1, window_bounds = array<i64: 4096, 128>}, {transform_indices = @transform_2, window_bounds = array<i64: 1, 128>}, {transform_indices = @transform_3, window_bounds = array<i64: 16, 128>}]} {
    %c0 = arith.constant 0 : index
    %c0_0 = arith.constant 0 : index
    %0 = vector.load %arg2[%c0, %c0_0] : memref<16x4096xbf16, #tpu.memory_space<vmem>>, vector<16x4096xbf16>
    %c0_1 = arith.constant 0 : index
    %c0_2 = arith.constant 0 : index
    %1 = vector.load %arg3[%c0_1, %c0_2] : memref<4096x128xbf16, #tpu.memory_space<vmem>>, vector<4096x128xbf16>
    %cst = arith.constant dense<0.000000e+00> : vector<16x128xf32>
    %2 = tpu.matmul %0, %1, %cst {dimension_numbers = #tpu.dot_dimension_numbers<[1], [0], [0], [1], [0, 0, 1, 1], [], []>} : vector<16x4096xbf16>, vector<4096x128xbf16>, vector<16x128xf32> -> vector<16x128xf32>
    %c0_3 = arith.constant 0 : index
    %c0_4 = arith.constant 0 : index
    %3 = vector.load %arg4[%c0_3, %c0_4] : memref<1x128xf32, #tpu.memory_space<vmem>>, vector<1x128xf32>
    %4 = vector.broadcast %3 : vector<1x128xf32> to vector<16x128xf32>
    %5 = arith.addf %2, %4 : vector<16x128xf32>
    %c0_5 = arith.constant 0 : index
    %c0_6 = arith.constant 0 : index
    %6 = vector.load %arg5[%c0_5, %c0_6] : memref<16x128xf32, #tpu.memory_space<vmem>>, vector<16x128xf32>
    tpu.vector_store %arg5[%c0_5, %c0_6], %5 {strides = array<i32>} : memref<16x128xf32, #tpu.memory_space<vmem>>, vector<16x128xf32>,
    return
  }
  func.func @transform_0(%arg0: i32, %arg1: i32) -> (i32, i32) {
    %c0_i32 = arith.constant 0 : i32
    %c0_i32_0 = arith.constant 0 : i32
    return %arg0, %c0_i32 : i32, i32
  }
  func.func @transform_1(%arg0: i32, %arg1: i32) -> (i32, i32) {
    %c0_i32 = arith.constant 0 : i32
    %c0_i32_0 = arith.constant 0 : i32
    return %c0_i32, %arg1 : i32, i32
  }
  func.func @transform_2(%arg0: i32, %arg1: i32) -> (i32, i32) {
    %c0_i32 = arith.constant 0 : i32
    %c0_i32_0 = arith.constant 0 : i32
    return %c0_i32, %arg1 : i32, i32
  }
  func.func @transform_3(%arg0: i32, %arg1: i32) -> (i32, i32) {
    %c0_i32 = arith.constant 0 : i32
    return %arg0, %arg1 : i32, i32
  }
}

</mosaic_0001>

<llo_original>
// kernel: shallow_1dcnn_forward.5
$region0: #{shallow_1dcnn_forward.5}
  #allocation0 [shape = 'u32[]', space=smem, size = 0x4, offset = 0x4, fixed_abs, tag = 'smem constant byte address 0x4 - core index']
  #allocation1 [shape = 'u32[72,128]{1,0:T(1,128)}', space=vmem, size = 0x9000, scoped, tag = 'internal scratch']
  %s0 = inlined_call_operand.vmem [shape: bf16[144,16], index: 0, kind: input, shape index: {}]
  %s1 = inlined_call_operand.vmem [shape: bf16[16,128], index: 1, kind: input, shape index: {}]
  %s2 = inlined_call_operand.vmem [shape: f32[1,128], index: 2, kind: input, shape index: {}]
  %s3 = inlined_call_operand.vmem [shape: bf16[144,128], index: 3, kind: output, shape index: {}]
  %s4 = sld [smem:[#allocation0]]
  $region22: #{shallow_1dcnn_forward.5} parent=0
    _
  %s6 = ssub.s32 1, %s4
  %s7 = scalar_select 0, %s6, %s4
  // Predicated region
  $region2: #{shallow_1dcnn_forward.5} parent=0 // pred_check
    _
  $region3: #{shallow_1dcnn_forward.5} parent=0 // pred_check_branch
    %9 = sbr.rel (0) target = $region5
  $region4: #{shallow_1dcnn_forward.5} parent=0 // pred_region
    _
  $region5: #{shallow_1dcnn_forward.5} parent=0 // pred_fallthru
    _
  // Predicated region
  $region6: #{shallow_1dcnn_forward.5} parent=0 // pred_check
    _
  $region7: #{shallow_1dcnn_forward.5} parent=0 // pred_check_branch
    %11 = sbr.rel (0) target = $region9
  $region8: #{shallow_1dcnn_forward.5} parent=0 // pred_region
    _
  $region9: #{shallow_1dcnn_forward.5} parent=0 // pred_fallthru
    _
  // Predicated region
  $region10: #{shallow_1dcnn_forward.5} parent=0 // pred_check
    _
  $region11: #{shallow_1dcnn_forward.5} parent=0 // pred_check_branch
    %13 = sbr.rel (0) target = $region13
  $region12: #{shallow_1dcnn_forward.5} parent=0 // pred_region
    _
  $region13: #{shallow_1dcnn_forward.5} parent=0 // pred_fallthru
    _
  %v15 = vld [vmem:[%s0] sm:$0xf]
  %v16 = vld [vmem:[%s0 + $0x4] sm:$0xf]
  %v17 = vld [vmem:[%s0 + $0x8] sm:$0xf]
  %v18 = vld [vmem:[%s0 + $0xc] sm:$0xf]
  %v19 = vld [vmem:[%s0 + $0x10] sm:$0xf]
  %v20 = vld [vmem:[%s0 + $0x14] sm:$0xf]
  %v21 = vld [vmem:[%s0 + $0x18] sm:$0xf]
  %v22 = vld [vmem:[%s0 + $0x1c] sm:$0xf]
  %v23 = vld [vmem:[%s0 + $0x20] sm:$0xf]
  %v24 = vld [vmem:[%s0 + $0x24] sm:$0xf]
  %v25 = vld [vmem:[%s0 + $0x28] sm:$0xf]
  %v26 = vld [vmem:[%s0 + $0x2c] sm:$0xf]
  %v27 = vld [vmem:[%s0 + $0x30] sm:$0xf]
  %v28 = vld [vmem:[%s0 + $0x34] sm:$0xf]
  %v29 = vld [vmem:[%s0 + $0x38] sm:$0xf]
  %v30 = vld [vmem:[%s0 + $0x3c] sm:$0xf]
  %v31 = vld [vmem:[%s0 + $0x40] sm:$0xf]
  %v32 = vld [vmem:[%s0 + $0x44] sm:$0xf]
  %v33 = vld [vmem:[%s1] sm:$0xf]
  %v34 = vld [vmem:[%s1 + $0x4] sm:$0xf]
  %v35 = vld [vmem:[%s2] sm:$0x1]
  %v37 = vperm.slane %v35, 0
  %v57 = vunpack.c.l.b16 %v15
  %v58 = vunpack.c.l.b16 %v16
  %v59 = vunpack.c.l.b16 %v17
  %v60 = vunpack.c.l.b16 %v18
  %v61 = vunpack.c.l.b16 %v19
  %v62 = vunpack.c.l.b16 %v20
  %v63 = vunpack.c.l.b16 %v21
  %v64 = vunpack.c.l.b16 %v22
  %v65 = vunpack.c.l.b16 %v23
  %v66 = vunpack.c.l.b16 %v24
  %v67 = vunpack.c.l.b16 %v25
  %v68 = vunpack.c.l.b16 %v26
  %v69 = vunpack.c.l.b16 %v27
  %v70 = vunpack.c.l.b16 %v28
  %v71 = vunpack.c.l.b16 %v29
  %v72 = vunpack.c.l.b16 %v30
  %v73 = vunpack.c.l.b16 %v31
  %v74 = vunpack.c.l.b16 %v32
  %v75 = vpack.c.b16 %v58, %v57
  %v76 = vpack.c.b16 %v60, %v59
  %v77 = vpack.c.b16 %v62, %v61
  %v78 = vpack.c.b16 %v64, %v63
  %v79 = vpack.c.b16 %v66, %v65
  %v80 = vpack.c.b16 %v68, %v67
  %v81 = vpack.c.b16 %v70, %v69
  %v82 = vpack.c.b16 %v72, %v71
  %v83 = vpack.c.b16 %v74, %v73
  %v86 = vunpack.c.l.b16 %v33
  %v87 = vunpack.c.l.b16 %v34
  %v88 = vpack.c.b16 %v87, %v86
  %vm90 = vcmask 130048
  %v92 = vsel %vm90, %v75, 0
  %v95 = vsel %vm90, %v76, 0
  %v98 = vsel %vm90, %v77, 0
  %v101 = vsel %vm90, %v78, 0
  %v104 = vsel %vm90, %v79, 0
  %v107 = vsel %vm90, %v80, 0
  %v110 = vsel %vm90, %v81, 0
  %v113 = vsel %vm90, %v82, 0
  %v116 = vsel %vm90, %v83, 0
  %118 = vmatpush.bf16.msra.mxu0 0
  %119 = vmatpush.bf16.msra.mxu0 0
  %120 = vmatpush.bf16.msra.mxu0 0
  %121 = vmatpush.bf16.msra.mxu0 0
  %122 = vmatpush.bf16.msra.mxu0 0
  %123 = vmatpush.bf16.msra.mxu0 0
  %124 = vmatpush.bf16.msra.mxu0 0
  %125 = vmatpush.bf16.msra.mxu0 %v88
  %126 = vmatmul.bf16.gmra.mxu0 %v92
  %v127 = vpop.f32.mrf.mxu0
  %v128 = vadd.f32 %v37, %v127
  %v129 = vpop.f32.mrf.mxu0
  %v130 = vadd.f32 %v37, %v129
  %131 = vmatmul.bf16.gmra.mxu0 %v95
  %v132 = vpop.f32.mrf.mxu0
  %v133 = vadd.f32 %v37, %v132
  %v134 = vpop.f32.mrf.mxu0
  %v135 = vadd.f32 %v37, %v134
  %136 = vmatmul.bf16.gmra.mxu0 %v98
  %v137 = vpop.f32.mrf.mxu0
  %v138 = vadd.f32 %v37, %v137
  %v139 = vpop.f32.mrf.mxu0
  %v140 = vadd.f32 %v37, %v139
  %141 = vmatmul.bf16.gmra.mxu0 %v101
  %v142 = vpop.f32.mrf.mxu0
  %v143 = vadd.f32 %v37, %v142
  %v144 = vpop.f32.mrf.mxu0
  %v145 = vadd.f32 %v37, %v144
  %146 = vmatmul.bf16.gmra.mxu0 %v104
  %v147 = vpop.f32.mrf.mxu0
  %v148 = vadd.f32 %v37, %v147
  %v149 = vpop.f32.mrf.mxu0
  %v150 = vadd.f32 %v37, %v149
  %151 = vmatmul.bf16.gmra.mxu0 %v107
  %v152 = vpop.f32.mrf.mxu0
  %v153 = vadd.f32 %v37, %v152
  %v154 = vpop.f32.mrf.mxu0
  %v155 = vadd.f32 %v37, %v154
  %156 = vmatmul.bf16.gmra.mxu0 %v110
  %v157 = vpop.f32.mrf.mxu0
  %v158 = vadd.f32 %v37, %v157
  %v159 = vpop.f32.mrf.mxu0
  %v160 = vadd.f32 %v37, %v159
  %161 = vmatmul.bf16.gmra.mxu0 %v113
  %v162 = vpop.f32.mrf.mxu0
  %v163 = vadd.f32 %v37, %v162
  %v164 = vpop.f32.mrf.mxu0
  %v165 = vadd.f32 %v37, %v164
  %166 = vmatmul.bf16.gmra.mxu0 %v116
  %v167 = vpop.f32.mrf.mxu0
  %v168 = vadd.f32 %v37, %v167
  %v169 = vpop.f32.mrf.mxu0
  %v170 = vadd.f32 %v37, %v169
  %171 = vdwg.mxu0
  %v172 = vmax.f32 %v128, 0.0
  %v173 = vmax.f32 %v130, 0.0
  %v174 = vmax.f32 %v133, 0.0
  %v175 = vmax.f32 %v135, 0.0
  %v176 = vmax.f32 %v138, 0.0
  %v177 = vmax.f32 %v140, 0.0
  %v178 = vmax.f32 %v143, 0.0
  %v179 = vmax.f32 %v145, 0.0
  %v180 = vmax.f32 %v148, 0.0
  %v181 = vmax.f32 %v150, 0.0
  %v182 = vmax.f32 %v153, 0.0
  %v183 = vmax.f32 %v155, 0.0
  %v184 = vmax.f32 %v158, 0.0
  %v185 = vmax.f32 %v160, 0.0
  %v186 = vmax.f32 %v163, 0.0
  %v187 = vmax.f32 %v165, 0.0
  %v188 = vmax.f32 %v168, 0.0
  %v189 = vmax.f32 %v170, 0.0
  %v190 = vpack.c.bf16 %v172, %v172
  %v191 = vpack.c.bf16 %v173, %v173
  %v192 = vpack.c.bf16 %v174, %v174
  %v193 = vpack.c.bf16 %v175, %v175
  %v194 = vpack.c.bf16 %v176, %v176
  %v195 = vpack.c.bf16 %v177, %v177
  %v196 = vpack.c.bf16 %v178, %v178
  %v197 = vpack.c.bf16 %v179, %v179
  %v198 = vpack.c.bf16 %v180, %v180
  %v199 = vpack.c.bf16 %v181, %v181
  %v200 = vpack.c.bf16 %v182, %v182
  %v201 = vpack.c.bf16 %v183, %v183
  %v202 = vpack.c.bf16 %v184, %v184
  %v203 = vpack.c.bf16 %v185, %v185
  %v204 = vpack.c.bf16 %v186, %v186
  %v205 = vpack.c.bf16 %v187, %v187
  %v206 = vpack.c.bf16 %v188, %v188
  %v207 = vpack.c.bf16 %v189, %v189
  %208 = vst [vmem:[%s3] sm:$0xf] %v190
  %209 = vst [vmem:[%s3 + $0x4] sm:$0xf] %v191
  %210 = vst [vmem:[%s3 + $0x8] sm:$0xf] %v192
  %211 = vst [vmem:[%s3 + $0xc] sm:$0xf] %v193
  %212 = vst [vmem:[%s3 + $0x10] sm:$0xf] %v194
  %213 = vst [vmem:[%s3 + $0x14] sm:$0xf] %v195
  %214 = vst [vmem:[%s3 + $0x18] sm:$0xf] %v196
  %215 = vst [vmem:[%s3 + $0x1c] sm:$0xf] %v197
  %216 = vst [vmem:[%s3 + $0x20] sm:$0xf] %v198
  %217 = vst [vmem:[%s3 + $0x24] sm:$0xf] %v199
  %218 = vst [vmem:[%s3 + $0x28] sm:$0xf] %v200
  %219 = vst [vmem:[%s3 + $0x2c] sm:$0xf] %v201
  %220 = vst [vmem:[%s3 + $0x30] sm:$0xf] %v202
  %221 = vst [vmem:[%s3 + $0x34] sm:$0xf] %v203
  %222 = vst [vmem:[%s3 + $0x38] sm:$0xf] %v204
  %223 = vst [vmem:[%s3 + $0x3c] sm:$0xf] %v205
  %224 = vst [vmem:[%s3 + $0x40] sm:$0xf] %v206
  %225 = vst [vmem:[%s3 + $0x44] sm:$0xf] %v207
  // Predicated region
  $region14: #{shallow_1dcnn_forward.5} parent=0 // pred_check
    _
  $region15: #{shallow_1dcnn_forward.5} parent=0 // pred_check_branch
    %227 = sbr.rel (0) target = $region17
  $region16: #{shallow_1dcnn_forward.5} parent=0 // pred_region
    _
  $region17: #{shallow_1dcnn_forward.5} parent=0 // pred_fallthru
    _
  // Predicated region
  $region18: #{shallow_1dcnn_forward.5} parent=0 // pred_check
    _
  $region19: #{shallow_1dcnn_forward.5} parent=0 // pred_check_branch
    %229 = sbr.rel (0) target = $region21
  $region20: #{shallow_1dcnn_forward.5} parent=0 // pred_region
    _
  $region21: #{shallow_1dcnn_forward.5} parent=0 // pred_fallthru
    _

// kernel: shallow_1dcnn_forward.6
$region0: #{shallow_1dcnn_forward.6}
  #allocation0 [shape = 'u32[]', space=smem, size = 0x4, offset = 0x4, fixed_abs, tag = 'smem constant byte address 0x4 - core index']
  #allocation1 [shape = 'u32[72,128]{1,0:T(1,128)}', space=vmem, size = 0x9000, scoped, tag = 'internal scratch']
  %s0 = inlined_call_operand.vmem [shape: bf16[48,160], index: 0, kind: input, shape index: {}]
  %s1 = inlined_call_operand.vmem [shape: bf16[160,128], index: 1, kind: input, shape index: {}]
  %s2 = inlined_call_operand.vmem [shape: f32[1,128], index: 2, kind: input, shape index: {}]
  %s3 = inlined_call_operand.vmem [shape: bf16[48,128], index: 3, kind: output, shape index: {}]
  %s4 = sld [smem:[#allocation0]]
  $region22: #{shallow_1dcnn_forward.6} parent=0
    _
  %s6 = ssub.s32 1, %s4
  %s7 = scalar_select 0, %s6, %s4
  // Predicated region
  $region2: #{shallow_1dcnn_forward.6} parent=0 // pred_check
    _
  $region3: #{shallow_1dcnn_forward.6} parent=0 // pred_check_branch
    %9 = sbr.rel (0) target = $region5
  $region4: #{shallow_1dcnn_forward.6} parent=0 // pred_region
    _
  $region5: #{shallow_1dcnn_forward.6} parent=0 // pred_fallthru
    _
  // Predicated region
  $region6: #{shallow_1dcnn_forward.6} parent=0 // pred_check
    _
  $region7: #{shallow_1dcnn_forward.6} parent=0 // pred_check_branch
    %11 = sbr.rel (0) target = $region9
  $region8: #{shallow_1dcnn_forward.6} parent=0 // pred_region
    _
  $region9: #{shallow_1dcnn_forward.6} parent=0 // pred_fallthru
    _
  // Predicated region
  $region10: #{shallow_1dcnn_forward.6} parent=0 // pred_check
    _
  $region11: #{shallow_1dcnn_forward.6} parent=0 // pred_check_branch
    %13 = sbr.rel (0) target = $region13
  $region12: #{shallow_1dcnn_forward.6} parent=0 // pred_region
    _
  $region13: #{shallow_1dcnn_forward.6} parent=0 // pred_fallthru
    _
  %v15 = vld [vmem:[%s0] sm:$0xff]
  %v16 = vld [vmem:[%s0 + $0x8] sm:$0xff]
  %v17 = vld [vmem:[%s0 + $0x10] sm:$0xff]
  %v18 = vld [vmem:[%s0 + $0x18] sm:$0xff]
  %v19 = vld [vmem:[%s0 + $0x20] sm:$0xff]
  %v20 = vld [vmem:[%s0 + $0x28] sm:$0xff]
  %v21 = vld [vmem:[%s1] sm:$0xf]
  %v22 = vld [vmem:[%s1 + $0x4] sm:$0xf]
  %v23 = vld [vmem:[%s1 + $0x8] sm:$0xf]
  %v24 = vld [vmem:[%s1 + $0xc] sm:$0xf]
  %v25 = vld [vmem:[%s1 + $0x10] sm:$0xf]
  %v26 = vld [vmem:[%s1 + $0x14] sm:$0xf]
  %v27 = vld [vmem:[%s1 + $0x18] sm:$0xf]
  %v28 = vld [vmem:[%s1 + $0x1c] sm:$0xf]
  %v29 = vld [vmem:[%s1 + $0x20] sm:$0xf]
  %v30 = vld [vmem:[%s1 + $0x24] sm:$0xf]
  %v31 = vld [vmem:[%s1 + $0x28] sm:$0xf]
  %v32 = vld [vmem:[%s1 + $0x2c] sm:$0xf]
  %v33 = vld [vmem:[%s1 + $0x30] sm:$0xf]
  %v34 = vld [vmem:[%s1 + $0x34] sm:$0xf]
  %v35 = vld [vmem:[%s1 + $0x38] sm:$0xf]
  %v36 = vld [vmem:[%s1 + $0x3c] sm:$0xf]
  %v37 = vld [vmem:[%s1 + $0x40] sm:$0xf]
  %v38 = vld [vmem:[%s1 + $0x44] sm:$0xf]
  %v39 = vld [vmem:[%s1 + $0x48] sm:$0xf]
  %v40 = vld [vmem:[%s1 + $0x4c] sm:$0xf]
  %v41 = vld [vmem:[%s2] sm:$0x1]
  %v43 = vperm.slane %v41, 0
  %v51 = vunpack.c.l.b16 %v15
  %v52 = vunpack.c.h.b16 %v15
  %v53 = vunpack.c.l.b16 %v16
  %v54 = vunpack.c.h.b16 %v16
  %v55 = vunpack.c.l.b16 %v17
  %v56 = vunpack.c.h.b16 %v17
  %v57 = vunpack.c.l.b16 %v18
  %v58 = vunpack.c.h.b16 %v18
  %v59 = vunpack.c.l.b16 %v19
  %v60 = vunpack.c.h.b16 %v19
  %v61 = vunpack.c.l.b16 %v20
  %v62 = vunpack.c.h.b16 %v20
  %v63 = vpack.c.b16 %v53, %v51
  %v64 = vpack.c.b16 %v54, %v52
  %v65 = vpack.c.b16 %v57, %v55
  %v66 = vpack.c.b16 %v58, %v56
  %v67 = vpack.c.b16 %v61, %v59
  %v68 = vpack.c.b16 %v62, %v60
  %v92 = vunpack.c.l.b16 %v21
  %v93 = vunpack.c.l.b16 %v22
  %v94 = vunpack.c.l.b16 %v23
  %v95 = vunpack.c.l.b16 %v24
  %v96 = vunpack.c.l.b16 %v25
  %v97 = vunpack.c.l.b16 %v26
  %v98 = vunpack.c.l.b16 %v27
  %v99 = vunpack.c.l.b16 %v28
  %v100 = vunpack.c.l.b16 %v29
  %v101 = vunpack.c.l.b16 %v30
  %v102 = vunpack.c.l.b16 %v31
  %v103 = vunpack.c.l.b16 %v32
  %v104 = vunpack.c.l.b16 %v33
  %v105 = vunpack.c.l.b16 %v34
  %v106 = vunpack.c.l.b16 %v35
  %v107 = vunpack.c.l.b16 %v36
  %v108 = vunpack.c.l.b16 %v37
  %v109 = vunpack.c.l.b16 %v38
  %v110 = vunpack.c.l.b16 %v39
  %v111 = vunpack.c.l.b16 %v40
  %v112 = vpack.c.b16 %v93, %v92
  %v113 = vpack.c.b16 %v95, %v94
  %v114 = vpack.c.b16 %v97, %v96
  %v115 = vpack.c.b16 %v99, %v98
  %v116 = vpack.c.b16 %v101, %v100
  %v117 = vpack.c.b16 %v103, %v102
  %v118 = vpack.c.b16 %v105, %v104
  %v119 = vpack.c.b16 %v107, %v106
  %v120 = vpack.c.b16 %v109, %v108
  %v121 = vpack.c.b16 %v111, %v110
  %vm132 = vcmask 261120
  %v134 = vsel %vm132, %v64, 0
  %v137 = vsel %vm132, %v66, 0
  %v140 = vsel %vm132, %v68, 0
  %142 = vmatpush.bf16.msra.mxu0 %v119
  %143 = vmatpush.bf16.msra.mxu0 %v118
  %144 = vmatpush.bf16.msra.mxu0 %v117
  %145 = vmatpush.bf16.msra.mxu0 %v116
  %146 = vmatpush.bf16.msra.mxu0 %v115
  %147 = vmatpush.bf16.msra.mxu0 %v114
  %148 = vmatpush.bf16.msra.mxu0 %v113
  %149 = vmatpush.bf16.msra.mxu0 %v112
  %150 = vmatmul.bf16.gmra.mxu0 %v63
  %v151 = vpop.f32.mrf.mxu0
  %v152 = vadd.f32 %v43, %v151
  %v153 = vpop.f32.mrf.mxu0
  %v154 = vadd.f32 %v43, %v153
  %155 = vmatmul.bf16.gmra.mxu0 %v65
  %v156 = vpop.f32.mrf.mxu0
  %v157 = vadd.f32 %v43, %v156
  %v158 = vpop.f32.mrf.mxu0
  %v159 = vadd.f32 %v43, %v158
  %160 = vmatmul.bf16.gmra.mxu0 %v67
  %v161 = vpop.f32.mrf.mxu0
  %v162 = vadd.f32 %v43, %v161
  %v163 = vpop.f32.mrf.mxu0
  %v164 = vadd.f32 %v43, %v163
  %165 = vdwg.mxu0
  %166 = vmatpush.bf16.msra.mxu0 0
  %167 = vmatpush.bf16.msra.mxu0 0
  %168 = vmatpush.bf16.msra.mxu0 0
  %169 = vmatpush.bf16.msra.mxu0 0
  %170 = vmatpush.bf16.msra.mxu0 0
  %171 = vmatpush.bf16.msra.mxu0 0
  %172 = vmatpush.bf16.msra.mxu0 %v121
  %173 = vmatpush.bf16.msra.mxu0 %v120
  %174 = vmatmul.bf16.gmra.mxu0 %v134
  %v175 = vpop.f32.mrf.mxu0
  %v176 = vadd.f32 %v152, %v175
  %v177 = vpop.f32.mrf.mxu0
  %v178 = vadd.f32 %v154, %v177
  %179 = vmatmul.bf16.gmra.mxu0 %v137
  %v180 = vpop.f32.mrf.mxu0
  %v181 = vadd.f32 %v157, %v180
  %v182 = vpop.f32.mrf.mxu0
  %v183 = vadd.f32 %v159, %v182
  %184 = vmatmul.bf16.gmra.mxu0 %v140
  %v185 = vpop.f32.mrf.mxu0
  %v186 = vadd.f32 %v162, %v185
  %v187 = vpop.f32.mrf.mxu0
  %v188 = vadd.f32 %v164, %v187
  %189 = vdwg.mxu0
  %v190 = vmax.f32 %v176, 0.0
  %v191 = vmax.f32 %v178, 0.0
  %v192 = vmax.f32 %v181, 0.0
  %v193 = vmax.f32 %v183, 0.0
  %v194 = vmax.f32 %v186, 0.0
  %v195 = vmax.f32 %v188, 0.0
  %v196 = vpack.c.bf16 %v190, %v190
  %v197 = vpack.c.bf16 %v191, %v191
  %v198 = vpack.c.bf16 %v192, %v192
  %v199 = vpack.c.bf16 %v193, %v193
  %v200 = vpack.c.bf16 %v194, %v194
  %v201 = vpack.c.bf16 %v195, %v195
  %202 = vst [vmem:[%s3] sm:$0xf] %v196
  %203 = vst [vmem:[%s3 + $0x4] sm:$0xf] %v197
  %204 = vst [vmem:[%s3 + $0x8] sm:$0xf] %v198
  %205 = vst [vmem:[%s3 + $0xc] sm:$0xf] %v199
  %206 = vst [vmem:[%s3 + $0x10] sm:$0xf] %v200
  %207 = vst [vmem:[%s3 + $0x14] sm:$0xf] %v201
  // Predicated region
  $region14: #{shallow_1dcnn_forward.6} parent=0 // pred_check
    _
  $region15: #{shallow_1dcnn_forward.6} parent=0 // pred_check_branch
    %209 = sbr.rel (0) target = $region17
  $region16: #{shallow_1dcnn_forward.6} parent=0 // pred_region
    _
  $region17: #{shallow_1dcnn_forward.6} parent=0 // pred_fallthru
    _
  // Predicated region
  $region18: #{shallow_1dcnn_forward.6} parent=0 // pred_check
    _
  $region19: #{shallow_1dcnn_forward.6} parent=0 // pred_check_branch
    %211 = sbr.rel (0) target = $region21
  $region20: #{shallow_1dcnn_forward.6} parent=0 // pred_region
    _
  $region21: #{shallow_1dcnn_forward.6} parent=0 // pred_fallthru
    _

// kernel: shallow_1dcnn_forward.7
$region0: #{shallow_1dcnn_forward.7}
  #allocation0 [shape = 'u32[]', space=smem, size = 0x4, offset = 0x4, fixed_abs, tag = 'smem constant byte address 0x4 - core index']
  #allocation1 [shape = 'u32[72,128]{1,0:T(1,128)}', space=vmem, size = 0x9000, scoped, tag = 'internal scratch']
  %s0 = inlined_call_operand.vmem [shape: bf16[32,192], index: 0, kind: input, shape index: {}]
  %s1 = inlined_call_operand.vmem [shape: bf16[192,128], index: 1, kind: input, shape index: {}]
  %s2 = inlined_call_operand.vmem [shape: f32[1,128], index: 2, kind: input, shape index: {}]
  %s3 = inlined_call_operand.vmem [shape: bf16[32,128], index: 3, kind: output, shape index: {}]
  %s4 = sld [smem:[#allocation0]]
  $region22: #{shallow_1dcnn_forward.7} parent=0
    _
  %s6 = ssub.s32 1, %s4
  %s7 = scalar_select 0, %s6, %s4
  // Predicated region
  $region2: #{shallow_1dcnn_forward.7} parent=0 // pred_check
    _
  $region3: #{shallow_1dcnn_forward.7} parent=0 // pred_check_branch
    %9 = sbr.rel (0) target = $region5
  $region4: #{shallow_1dcnn_forward.7} parent=0 // pred_region
    _
  $region5: #{shallow_1dcnn_forward.7} parent=0 // pred_fallthru
    _
  // Predicated region
  $region6: #{shallow_1dcnn_forward.7} parent=0 // pred_check
    _
  $region7: #{shallow_1dcnn_forward.7} parent=0 // pred_check_branch
    %11 = sbr.rel (0) target = $region9
  $region8: #{shallow_1dcnn_forward.7} parent=0 // pred_region
    _
  $region9: #{shallow_1dcnn_forward.7} parent=0 // pred_fallthru
    _
  // Predicated region
  $region10: #{shallow_1dcnn_forward.7} parent=0 // pred_check
    _
  $region11: #{shallow_1dcnn_forward.7} parent=0 // pred_check_branch
    %13 = sbr.rel (0) target = $region13
  $region12: #{shallow_1dcnn_forward.7} parent=0 // pred_region
    _
  $region13: #{shallow_1dcnn_forward.7} parent=0 // pred_fallthru
    _
  %v15 = vld [vmem:[%s0] sm:$0xff]
  %v16 = vld [vmem:[%s0 + $0x8] sm:$0xff]
  %v17 = vld [vmem:[%s0 + $0x10] sm:$0xff]
  %v18 = vld [vmem:[%s0 + $0x18] sm:$0xff]
  %v19 = vld [vmem:[%s1] sm:$0xf]
  %v20 = vld [vmem:[%s1 + $0x4] sm:$0xf]
  %v21 = vld [vmem:[%s1 + $0x8] sm:$0xf]
  %v22 = vld [vmem:[%s1 + $0xc] sm:$0xf]
  %v23 = vld [vmem:[%s1 + $0x10] sm:$0xf]
  %v24 = vld [vmem:[%s1 + $0x14] sm:$0xf]
  %v25 = vld [vmem:[%s1 + $0x18] sm:$0xf]
  %v26 = vld [vmem:[%s1 + $0x1c] sm:$0xf]
  %v27 = vld [vmem:[%s1 + $0x20] sm:$0xf]
  %v28 = vld [vmem:[%s1 + $0x24] sm:$0xf]
  %v29 = vld [vmem:[%s1 + $0x28] sm:$0xf]
  %v30 = vld [vmem:[%s1 + $0x2c] sm:$0xf]
  %v31 = vld [vmem:[%s1 + $0x30] sm:$0xf]
  %v32 = vld [vmem:[%s1 + $0x34] sm:$0xf]
  %v33 = vld [vmem:[%s1 + $0x38] sm:$0xf]
  %v34 = vld [vmem:[%s1 + $0x3c] sm:$0xf]
  %v35 = vld [vmem:[%s1 + $0x40] sm:$0xf]
  %v36 = vld [vmem:[%s1 + $0x44] sm:$0xf]
  %v37 = vld [vmem:[%s1 + $0x48] sm:$0xf]
  %v38 = vld [vmem:[%s1 + $0x4c] sm:$0xf]
  %v39 = vld [vmem:[%s1 + $0x50] sm:$0xf]
  %v40 = vld [vmem:[%s1 + $0x54] sm:$0xf]
  %v41 = vld [vmem:[%s1 + $0x58] sm:$0xf]
  %v42 = vld [vmem:[%s1 + $0x5c] sm:$0xf]
  %v43 = vld [vmem:[%s2] sm:$0x1]
  %v45 = vperm.slane %v43, 0
  %v51 = vunpack.c.l.b16 %v15
  %v52 = vunpack.c.h.b16 %v15
  %v53 = vunpack.c.l.b16 %v16
  %v54 = vunpack.c.h.b16 %v16
  %v55 = vunpack.c.l.b16 %v17
  %v56 = vunpack.c.h.b16 %v17
  %v57 = vunpack.c.l.b16 %v18
  %v58 = vunpack.c.h.b16 %v18
  %v59 = vpack.c.b16 %v53, %v51
  %v60 = vpack.c.b16 %v54, %v52
  %v61 = vpack.c.b16 %v57, %v55
  %v62 = vpack.c.b16 %v58, %v56
  %v89 = vunpack.c.l.b16 %v19
  %v90 = vunpack.c.l.b16 %v20
  %v91 = vunpack.c.l.b16 %v21
  %v92 = vunpack.c.l.b16 %v22
  %v93 = vunpack.c.l.b16 %v23
  %v94 = vunpack.c.l.b16 %v24
  %v95 = vunpack.c.l.b16 %v25
  %v96 = vunpack.c.l.b16 %v26
  %v97 = vunpack.c.l.b16 %v27
  %v98 = vunpack.c.l.b16 %v28
  %v99 = vunpack.c.l.b16 %v29
  %v100 = vunpack.c.l.b16 %v30
  %v101 = vunpack.c.l.b16 %v31
  %v102 = vunpack.c.l.b16 %v32
  %v103 = vunpack.c.l.b16 %v33
  %v104 = vunpack.c.l.b16 %v34
  %v105 = vunpack.c.l.b16 %v35
  %v106 = vunpack.c.l.b16 %v36
  %v107 = vunpack.c.l.b16 %v37
  %v108 = vunpack.c.l.b16 %v38
  %v109 = vunpack.c.l.b16 %v39
  %v110 = vunpack.c.l.b16 %v40
  %v111 = vunpack.c.l.b16 %v41
  %v112 = vunpack.c.l.b16 %v42
  %v113 = vpack.c.b16 %v90, %v89
  %v114 = vpack.c.b16 %v92, %v91
  %v115 = vpack.c.b16 %v94, %v93
  %v116 = vpack.c.b16 %v96, %v95
  %v117 = vpack.c.b16 %v98, %v97
  %v118 = vpack.c.b16 %v100, %v99
  %v119 = vpack.c.b16 %v102, %v101
  %v120 = vpack.c.b16 %v104, %v103
  %v121 = vpack.c.b16 %v106, %v105
  %v122 = vpack.c.b16 %v108, %v107
  %v123 = vpack.c.b16 %v110, %v109
  %v124 = vpack.c.b16 %v112, %v111
  %vm137 = vcmask 523264
  %v139 = vsel %vm137, %v60, 0
  %v142 = vsel %vm137, %v62, 0
  %144 = vmatpush.bf16.msra.mxu0 %v120
  %145 = vmatpush.bf16.msra.mxu0 %v119
  %146 = vmatpush.bf16.msra.mxu0 %v118
  %147 = vmatpush.bf16.msra.mxu0 %v117
  %148 = vmatpush.bf16.msra.mxu0 %v116
  %149 = vmatpush.bf16.msra.mxu0 %v115
  %150 = vmatpush.bf16.msra.mxu0 %v114
  %151 = vmatpush.bf16.msra.mxu0 %v113
  %152 = vmatmul.bf16.gmra.mxu0 %v59
  %v153 = vpop.f32.mrf.mxu0
  %v154 = vadd.f32 %v45, %v153
  %v155 = vpop.f32.mrf.mxu0
  %v156 = vadd.f32 %v45, %v155
  %157 = vmatmul.bf16.gmra.mxu0 %v61
  %v158 = vpop.f32.mrf.mxu0
  %v159 = vadd.f32 %v45, %v158
  %v160 = vpop.f32.mrf.mxu0
  %v161 = vadd.f32 %v45, %v160
  %162 = vdwg.mxu0
  %163 = vmatpush.bf16.msra.mxu0 0
  %164 = vmatpush.bf16.msra.mxu0 0
  %165 = vmatpush.bf16.msra.mxu0 0
  %166 = vmatpush.bf16.msra.mxu0 0
  %167 = vmatpush.bf16.msra.mxu0 %v124
  %168 = vmatpush.bf16.msra.mxu0 %v123
  %169 = vmatpush.bf16.msra.mxu0 %v122
  %170 = vmatpush.bf16.msra.mxu0 %v121
  %171 = vmatmul.bf16.gmra.mxu0 %v139
  %v172 = vpop.f32.mrf.mxu0
  %v173 = vadd.f32 %v154, %v172
  %v174 = vpop.f32.mrf.mxu0
  %v175 = vadd.f32 %v156, %v174
  %176 = vmatmul.bf16.gmra.mxu0 %v142
  %v177 = vpop.f32.mrf.mxu0
  %v178 = vadd.f32 %v159, %v177
  %v179 = vpop.f32.mrf.mxu0
  %v180 = vadd.f32 %v161, %v179
  %181 = vdwg.mxu0
  %v182 = vmax.f32 %v173, 0.0
  %v183 = vmax.f32 %v175, 0.0
  %v184 = vmax.f32 %v178, 0.0
  %v185 = vmax.f32 %v180, 0.0
  %v186 = vpack.c.bf16 %v182, %v182
  %v187 = vpack.c.bf16 %v183, %v183
  %v188 = vpack.c.bf16 %v184, %v184
  %v189 = vpack.c.bf16 %v185, %v185
  %190 = vst [vmem:[%s3] sm:$0xf] %v186
  %191 = vst [vmem:[%s3 + $0x4] sm:$0xf] %v187
  %192 = vst [vmem:[%s3 + $0x8] sm:$0xf] %v188
  %193 = vst [vmem:[%s3 + $0xc] sm:$0xf] %v189
  // Predicated region
  $region14: #{shallow_1dcnn_forward.7} parent=0 // pred_check
    _
  $region15: #{shallow_1dcnn_forward.7} parent=0 // pred_check_branch
    %195 = sbr.rel (0) target = $region17
  $region16: #{shallow_1dcnn_forward.7} parent=0 // pred_region
    _
  $region17: #{shallow_1dcnn_forward.7} parent=0 // pred_fallthru
    _
  // Predicated region
  $region18: #{shallow_1dcnn_forward.7} parent=0 // pred_check
    _
  $region19: #{shallow_1dcnn_forward.7} parent=0 // pred_check_branch
    %197 = sbr.rel (0) target = $region21
  $region20: #{shallow_1dcnn_forward.7} parent=0 // pred_region
    _
  $region21: #{shallow_1dcnn_forward.7} parent=0 // pred_fallthru
    _

// kernel: shallow_1dcnn_forward.8
$region0: #{shallow_1dcnn_forward.8}
  #allocation0 [shape = 'u32[]', space=smem, size = 0x4, offset = 0x4, fixed_abs, tag = 'smem constant byte address 0x4 - core index']
  #allocation1 [shape = 'u32[72,128]{1,0:T(1,128)}', space=vmem, size = 0x9000, scoped, tag = 'internal scratch']
  %s0 = inlined_call_operand.vmem [shape: bf16[16,128], index: 0, kind: input, shape index: {}]
  %s1 = inlined_call_operand.vmem [shape: bf16[128,4096], index: 1, kind: input, shape index: {}]
  %s2 = inlined_call_operand.vmem [shape: f32[1,4096], index: 2, kind: input, shape index: {}]
  %s3 = inlined_call_operand.vmem [shape: bf16[16,4096], index: 3, kind: output, shape index: {}]
  %s4 = sld [smem:[#allocation0]]
  $region87: #{shallow_1dcnn_forward.8} parent=0
    _
  %s6 = ssub.s32 1, %s4
  %s7 = scalar_select 0, %s6, %s4
  $region1: #{shallow_1dcnn_forward.8} parent=0
    #allocation2 [shape = 'u8[262144]{0}', space=vmem, size = 0x40000, scoped, tag = 'input window, operand 1']
    #allocation3 [shape = 'u8[32768]{0}', space=vmem, size = 0x8000, scoped, tag = 'output window, operand 0']
    loop: start=0, step=1, limit=10
    $region2: #{shallow_1dcnn_forward.8} parent=1 // loop_pre_header
      _
    $region3: #{shallow_1dcnn_forward.8} parent=1 // loop_header
      %s9 = sphi 0, %s13
      %p10 = scmp.ge.s32.totalorder %s9, 10
      %s16 = sphi 0, %s28
      %s17 = sphi 0, %s24
      %s18 = sphi 0, %s16
      %s19 = sphi 0, %s17
      %s20 = sphi 0, %s18
      %s21 = sphi 0, %s19
      %s31 = sphi 0, %s33
      %s34 = sphi 0, %s31
      %s35 = sphi 0, %s34
      %s51 = sphi 0, %s35
      %s57 = sphi 0, %s59
      %s60 = sphi 0, %s57
      %s61 = sphi 0, %s60
      %s77 = sphi 0, %s61
      %s83 = sphi 0, %s85
      %s86 = sphi 0, %s83
      %s87 = sphi 0, %s86
      %s103 = sphi 0, %s87
      %s111 = sphi 0, %s113
      %s114 = sphi 0, %s111
      %s115 = sphi 0, %s114
      %s131 = sphi 0, %s115
    $region4: #{shallow_1dcnn_forward.8} parent=1 // loop_header_branch
      %12 = sbr.rel (%p10) target = $region8
    $region5: #{shallow_1dcnn_forward.8} parent=1 // loop_body
      %s14 = ssub.s32 %s9, 1
      %s15 = ssub.s32 %s9, 2
      %s22 = sadd.s32 1, %s17
      %p23 = scmp.ge.s32.totalorder %s22, 8
      %s24 = scalar_select %p23, 0, %s22
      %s25 = sadd.s32 1, %s16
      %s26 = scalar_select %p23, %s25, %s16
      %p27 = scmp.ge.s32.totalorder %s26, 1
      %s28 = scalar_select %p27, 0, %s26
      %s29 = ssub.s32 %s16, %s28
      %p30 = scmp.eq.s32.totalorder %s29, 0
      %s32 = sadd.s32 %s31, 1
      %s33 = scalar_select %p30, %s31, %s32
      %p36 = pneg %p30
      %p37 = scmp.eq.s32.totalorder %s9, 7
      %p38 = por %p36, %p37
      %p39 = scmp.ne.s32.totalorder %s31, %s34
      %p40 = scmp.eq.s32.totalorder %s9, 0
      %p41 = por %p39, %p40
      %p42 = scmp.ne.s32.totalorder %s31, %s34
      %p43 = scmp.eq.s32.totalorder %s14, 7
      %p44 = por %p42, %p43
      %p45 = scmp.ne.s32.totalorder %s34, %s35
      %p46 = scmp.eq.s32.totalorder %s14, 0
      %p47 = por %p45, %p46
      %p48 = scmp.ne.s32.totalorder %s34, %s35
      %p49 = scmp.eq.s32.totalorder %s15, 7
      %p50 = por %p48, %p49
      %p52 = scmp.ne.s32.totalorder %s35, %s51
      %p53 = scmp.eq.s32.totalorder %s15, 0
      %p54 = por %p52, %p53
      %s55 = ssub.s32 %s17, %s24
      %p56 = scmp.eq.s32.totalorder %s55, 0
      %s58 = sadd.s32 %s57, 1
      %s59 = scalar_select %p56, %s57, %s58
      %p62 = pneg %p56
      %p63 = scmp.eq.s32.totalorder %s9, 7
      %p64 = por %p62, %p63
      %p65 = scmp.ne.s32.totalorder %s57, %s60
      %p66 = scmp.eq.s32.totalorder %s9, 0
      %p67 = por %p65, %p66
      %p68 = scmp.ne.s32.totalorder %s57, %s60
      %p69 = scmp.eq.s32.totalorder %s14, 7
      %p70 = por %p68, %p69
      %p71 = scmp.ne.s32.totalorder %s60, %s61
      %p72 = scmp.eq.s32.totalorder %s14, 0
      %p73 = por %p71, %p72
      %p74 = scmp.ne.s32.totalorder %s60, %s61
      %p75 = scmp.eq.s32.totalorder %s15, 7
      %p76 = por %p74, %p75
      %p78 = scmp.ne.s32.totalorder %s61, %s77
      %p79 = scmp.eq.s32.totalorder %s15, 0
      %p80 = por %p78, %p79
      %s81 = ssub.s32 %s17, %s24
      %p82 = scmp.eq.s32.totalorder %s81, 0
      %s84 = sadd.s32 %s83, 1
      %s85 = scalar_select %p82, %s83, %s84
      %p88 = pneg %p82
      %p89 = scmp.eq.s32.totalorder %s9, 7
      %p90 = por %p88, %p89
      %p91 = scmp.ne.s32.totalorder %s83, %s86
      %p92 = scmp.eq.s32.totalorder %s9, 0
      %p93 = por %p91, %p92
      %p94 = scmp.ne.s32.totalorder %s83, %s86
      %p95 = scmp.eq.s32.totalorder %s14, 7
      %p96 = por %p94, %p95
      %p97 = scmp.ne.s32.totalorder %s86, %s87
      %p98 = scmp.eq.s32.totalorder %s14, 0
      %p99 = por %p97, %p98
      %p100 = scmp.ne.s32.totalorder %s86, %s87
      %p101 = scmp.eq.s32.totalorder %s15, 7
      %p102 = por %p100, %p101
      %p104 = scmp.ne.s32.totalorder %s87, %s103
      %p105 = scmp.eq.s32.totalorder %s15, 0
      %p106 = por %p104, %p105
      %s107 = ssub.s32 %s16, %s28
      %s108 = ssub.s32 %s17, %s24
      %s109 = sor.u32 %s107, %s108
      %p110 = scmp.eq.s32.totalorder %s109, 0
      %s112 = sadd.s32 %s111, 1
      %s113 = scalar_select %p110, %s111, %s112
      %p116 = pneg %p110
      %p117 = scmp.eq.s32.totalorder %s9, 7
      %p118 = por %p116, %p117
      %p119 = scmp.ne.s32.totalorder %s111, %s114
      %p120 = scmp.eq.s32.totalorder %s9, 0
      %p121 = por %p119, %p120
      %p122 = scmp.ne.s32.totalorder %s111, %s114
      %p123 = scmp.eq.s32.totalorder %s14, 7
      %p124 = por %p122, %p123
      %p125 = scmp.ne.s32.totalorder %s114, %s115
      %p126 = scmp.eq.s32.totalorder %s14, 0
      %p127 = por %p125, %p126
      %p128 = scmp.ne.s32.totalorder %s114, %s115
      %p129 = scmp.eq.s32.totalorder %s15, 7
      %p130 = por %p128, %p129
      %p132 = scmp.ne.s32.totalorder %s115, %s131
      %p133 = scmp.eq.s32.totalorder %s15, 0
      %p134 = por %p132, %p133
      %p135 = scmp.le.s32.totalorder 1, %s9
      %p136 = scmp.lt.s32.totalorder %s9, 9
      %p137 = pnand %p135, %p136
      %p138 = pneg %p137
      // Predicated region
      $region9: #{shallow_1dcnn_forward.8} parent=5 // pred_check
        _
      $region10: #{shallow_1dcnn_forward.8} parent=5 // pred_check_branch
        %140 = sbr.rel (%p137) target = $region12
      $region11: #{shallow_1dcnn_forward.8} parent=5 // pred_region
        %s141 = ssub.s32 %s9, 1
        // Predicated region
        $region13: #{shallow_1dcnn_forward.8} parent=11 // pred_check
          %p142 = pneg %p47
        $region14: #{shallow_1dcnn_forward.8} parent=11 // pred_check_branch
          %144 = sbr.rel (%p142) target = $region16
        $region15: #{shallow_1dcnn_forward.8} parent=11 // pred_region
          %s145 = smul.u32 2, %s18
          %p146 = scmp.lt.s32.totalorder %s145, 1
          %s147 = scalar_select %p146, %s145, 1
          %s148 = smul.addr %s147, 4
          %s149 = scalar_lea.vmem %s0, %s148
          %s150 = smul.u32 2, %s18
        $region16: #{shallow_1dcnn_forward.8} parent=11 // pred_fallthru
          _
      $region12: #{shallow_1dcnn_forward.8} parent=5 // pred_fallthru
        _
      %p151 = scmp.lt.s32.totalorder %s9, 8
      // Predicated region
      $region17: #{shallow_1dcnn_forward.8} parent=5 // pred_check
        %p152 = pneg %p151
      $region18: #{shallow_1dcnn_forward.8} parent=5 // pred_check_branch
        %154 = sbr.rel (%p152) target = $region20
      $region19: #{shallow_1dcnn_forward.8} parent=5 // pred_region
        // Predicated region
        $region21: #{shallow_1dcnn_forward.8} parent=19 // pred_check
          %p155 = pneg %p67
        $region22: #{shallow_1dcnn_forward.8} parent=19 // pred_check_branch
          %157 = sbr.rel (%p155) target = $region24
        $region23: #{shallow_1dcnn_forward.8} parent=19 // pred_region
          %s158 = sand.u32 %s57, 1
          %s159 = sand.u32 %s57, 1
          %s160 = smul.addr %s159, 256
          %s161 = scalar_lea.vmem [#allocation2], %s160
          %s162 = smul.u32 4, %s17
          %s163 = smul.addr %s162, 4
          %s164 = scalar_lea.vmem %s1, %s163
          // Predicated region
          $region25: #{shallow_1dcnn_forward.8} parent=23 // pred_check
            _
          $region26: #{shallow_1dcnn_forward.8} parent=23 // pred_check_branch
            %166 = sbr.rel (0) target = $region28
          $region27: #{shallow_1dcnn_forward.8} parent=23 // pred_region
            // Predicated region
            $region29: #{shallow_1dcnn_forward.8} parent=27 // pred_check
              _
            $region30: #{shallow_1dcnn_forward.8} parent=27 // pred_check_branch
              %168 = sbr.rel (0) target = $region32
            $region31: #{shallow_1dcnn_forward.8} parent=27 // pred_region
              loop: start=0, step=1, limit=1
              $region33: #{shallow_1dcnn_forward.8} parent=31 // loop_pre_header
                _
              $region34: #{shallow_1dcnn_forward.8} parent=31 // loop_header
                %s170 = sphi 0, %s174
                %p171 = scmp.ge.s32.totalorder %s170, 1
                %s175 = sphi %s164, %s164
                %s176 = sphi %s161, %s161
              $region35: #{shallow_1dcnn_forward.8} parent=31 // loop_header_branch
                %173 = sbr.rel (%p171) target = $region39
              $region36: #{shallow_1dcnn_forward.8} parent=31 // loop_body
                %v177 = vld [vmem:[%s175] sm:$0xff]
                %178 = vst [vmem:[%s176] sm:$0xff] %v177
                %v179 = vld [vmem:[%s175 + $0x8] sm:$0xff]
                %180 = vst [vmem:[%s176 + $0x8] sm:$0xff] %v179
                %v181 = vld [vmem:[%s175 + $0x80] sm:$0xff]
                %182 = vst [vmem:[%s176 + $0x10] sm:$0xff] %v181
                %v183 = vld [vmem:[%s175 + $0x88] sm:$0xff]
                %184 = vst [vmem:[%s176 + $0x18] sm:$0xff] %v183
                %v185 = vld [vmem:[%s175 + $0x100] sm:$0xff]
                %186 = vst [vmem:[%s176 + $0x20] sm:$0xff] %v185
                %v187 = vld [vmem:[%s175 + $0x108] sm:$0xff]
                %188 = vst [vmem:[%s176 + $0x28] sm:$0xff] %v187
                %v189 = vld [vmem:[%s175 + $0x180] sm:$0xff]
                %190 = vst [vmem:[%s176 + $0x30] sm:$0xff] %v189
                %v191 = vld [vmem:[%s175 + $0x188] sm:$0xff]
                %192 = vst [vmem:[%s176 + $0x38] sm:$0xff] %v191
                %v193 = vld [vmem:[%s175 + $0x200] sm:$0xff]
                %194 = vst [vmem:[%s176 + $0x40] sm:$0xff] %v193
                %v195 = vld [vmem:[%s175 + $0x208] sm:$0xff]
                %196 = vst [vmem:[%s176 + $0x48] sm:$0xff] %v195
                %v197 = vld [vmem:[%s175 + $0x280] sm:$0xff]
                %198 = vst [vmem:[%s176 + $0x50] sm:$0xff] %v197
                %v199 = vld [vmem:[%s175 + $0x288] sm:$0xff]
                %200 = vst [vmem:[%s176 + $0x58] sm:$0xff] %v199
                %v201 = vld [vmem:[%s175 + $0x300] sm:$0xff]
                %202 = vst [vmem:[%s176 + $0x60] sm:$0xff] %v201
                %v203 = vld [vmem:[%s175 + $0x308] sm:$0xff]
                %204 = vst [vmem:[%s176 + $0x68] sm:$0xff] %v203
                %v205 = vld [vmem:[%s175 + $0x380] sm:$0xff]
                %206 = vst [vmem:[%s176 + $0x70] sm:$0xff] %v205
                %v207 = vld [vmem:[%s175 + $0x388] sm:$0xff]
                %208 = vst [vmem:[%s176 + $0x78] sm:$0xff] %v207
                %v209 = vld [vmem:[%s175 + $0x400] sm:$0xff]
                %210 = vst [vmem:[%s176 + $0x80] sm:$0xff] %v209
                %v211 = vld [vmem:[%s175 + $0x408] sm:$0xff]
                %212 = vst [vmem:[%s176 + $0x88] sm:$0xff] %v211
                %v213 = vld [vmem:[%s175 + $0x480] sm:$0xff]
                %214 = vst [vmem:[%s176 + $0x90] sm:$0xff] %v213
                %v215 = vld [vmem:[%s175 + $0x488] sm:$0xff]
                %216 = vst [vmem:[%s176 + $0x98] sm:$0xff] %v215
                %v217 = vld [vmem:[%s175 + $0x500] sm:$0xff]
                %218 = vst [vmem:[%s176 + $0xa0] sm:$0xff] %v217
                %v219 = vld [vmem:[%s175 + $0x508] sm:$0xff]
                %220 = vst [vmem:[%s176 + $0xa8] sm:$0xff] %v219
                %v221 = vld [vmem:[%s175 + $0x580] sm:$0xff]
                %222 = vst [vmem:[%s176 + $0xb0] sm:$0xff] %v221
                %v223 = vld [vmem:[%s175 + $0x588] sm:$0xff]
                %224 = vst [vmem:[%s176 + $0xb8] sm:$0xff] %v223
                %v225 = vld [vmem:[%s175 + $0x600] sm:$0xff]
                %226 = vst [vmem:[%s176 + $0xc0] sm:$0xff] %v225
                %v227 = vld [vmem:[%s175 + $0x608] sm:$0xff]
                %228 = vst [vmem:[%s176 + $0xc8] sm:$0xff] %v227
                %v229 = vld [vmem:[%s175 + $0x680] sm:$0xff]
                %230 = vst [vmem:[%s176 + $0xd0] sm:$0xff] %v229
                %v231 = vld [vmem:[%s175 + $0x688] sm:$0xff]
                %232 = vst [vmem:[%s176 + $0xd8] sm:$0xff] %v231
                %v233 = vld [vmem:[%s175 + $0x700] sm:$0xff]
                %234 = vst [vmem:[%s176 + $0xe0] sm:$0xff] %v233
                %v235 = vld [vmem:[%s175 + $0x708] sm:$0xff]
                %236 = vst [vmem:[%s176 + $0xe8] sm:$0xff] %v235
                %v237 = vld [vmem:[%s175 + $0x780] sm:$0xff]
                %238 = vst [vmem:[%s176 + $0xf0] sm:$0xff] %v237
                %v239 = vld [vmem:[%s175 + $0x788] sm:$0xff]
                %240 = vst [vmem:[%s176 + $0xf8] sm:$0xff] %v239
              $region37: #{shallow_1dcnn_forward.8} parent=31 // loop_footer
                %s174 = sadd.s32 1, %s170
              $region38: #{shallow_1dcnn_forward.8} parent=31 // loop_footer_branch
                %169 = sbr.rel target = $region34
              $region39: #{shallow_1dcnn_forward.8} parent=31 // loop_exit
                _
            $region32: #{shallow_1dcnn_forward.8} parent=27 // pred_fallthru
              _
            // Predicated region
            $region40: #{shallow_1dcnn_forward.8} parent=27 // pred_check
              _
            $region41: #{shallow_1dcnn_forward.8} parent=27 // pred_check_branch
              %242 = sbr.rel target = $region43
            $region42: #{shallow_1dcnn_forward.8} parent=27 // pred_region
              _
            $region43: #{shallow_1dcnn_forward.8} parent=27 // pred_fallthru
              _
          $region28: #{shallow_1dcnn_forward.8} parent=23 // pred_fallthru
            _
          %243 = vnop
        $region24: #{shallow_1dcnn_forward.8} parent=19 // pred_fallthru
          _
        // Predicated region
        $region44: #{shallow_1dcnn_forward.8} parent=19 // pred_check
          %p244 = pneg %p93
        $region45: #{shallow_1dcnn_forward.8} parent=19 // pred_check_branch
          %246 = sbr.rel (%p244) target = $region47
        $region46: #{shallow_1dcnn_forward.8} parent=19 // pred_region
          %s247 = smul.u32 4, %s17
          %p248 = scmp.lt.s32.totalorder %s247, 31
          %s249 = scalar_select %p248, %s247, 31
          %s250 = scalar_lea.vmem %s2, %s249
          %s251 = smul.u32 4, %s17
        $region47: #{shallow_1dcnn_forward.8} parent=19 // pred_fallthru
          _
      $region20: #{shallow_1dcnn_forward.8} parent=5 // pred_fallthru
        _
      %p252 = scmp.le.s32.totalorder 1, %s9
      %p253 = scmp.lt.s32.totalorder %s9, 9
      %p254 = pnand %p252, %p253
      %p255 = pneg %p254
      // Predicated region
      $region48: #{shallow_1dcnn_forward.8} parent=5 // pred_check
        _
      $region49: #{shallow_1dcnn_forward.8} parent=5 // pred_check_branch
        %257 = sbr.rel (%p254) target = $region51
      $region50: #{shallow_1dcnn_forward.8} parent=5 // pred_region
        %s258 = ssub.s32 %s9, 1
        %s259 = sand.u32 %s60, 1
        %s260 = sand.u32 %s60, 1
        %s261 = smul.addr %s260, 256
        %s262 = scalar_lea.vmem [#allocation2], %s261
        // Predicated region
        $region52: #{shallow_1dcnn_forward.8} parent=50 // pred_check
          %p263 = pneg %p73
        $region53: #{shallow_1dcnn_forward.8} parent=50 // pred_check_branch
          %265 = sbr.rel (%p263) target = $region55
        $region54: #{shallow_1dcnn_forward.8} parent=50 // pred_region
          _
        $region55: #{shallow_1dcnn_forward.8} parent=50 // pred_fallthru
          _
        %s266 = smul.u32 2, %s18
        %p267 = scmp.lt.s32.totalorder %s266, 1
        %s268 = scalar_select %p267, %s266, 1
        %s269 = smul.addr %s268, 4
        %s270 = scalar_lea.vmem %s0, %s269
        %p271 = pneg %p47
        %p272 = pneg %p44
        %s273 = sand.u32 %s60, 1
        %s274 = sand.u32 %s60, 1
        %s275 = smul.addr %s274, 256
        %s276 = scalar_lea.vmem [#allocation2], %s275
        %p277 = pneg %p73
        %p278 = pneg %p70
        %s279 = smul.u32 4, %s19
        %p280 = scmp.lt.s32.totalorder %s279, 31
        %s281 = scalar_select %p280, %s279, 31
        %s282 = scalar_lea.vmem %s2, %s281
        %p283 = pneg %p99
        %p284 = pneg %p96
        %p285 = pneg %p127
        %p286 = pneg %p124
        %s287 = sand.u32 %s114, 1
        %s288 = sand.u32 %s114, 1
        %s289 = smul.addr %s288, 32
        %s290 = scalar_lea.vmem [#allocation3], %s289
        %s291 = smul.u32 2, %s18
        %p292 = scmp.lt.s32.totalorder %s291, 1
        %s293 = scalar_select %p292, %s291, 1
        %s294 = smul.addr %s293, 4
        %s295 = scalar_lea.vmem %s0, %s294
        %s296 = smul.u32 2, %s18
        %s297 = smul.u32 4, %s19
        %s298 = smul.u32 4, %s19
        %p299 = scmp.lt.s32.totalorder %s298, 31
        %s300 = scalar_select %p299, %s298, 31
        %s301 = scalar_lea.vmem %s2, %s300
        %s302 = smul.u32 4, %s19
        %s303 = smul.u32 2, %s18
        %s304 = smul.u32 4, %s19
        %v305 = vld [vmem:[%s295] sm:$0xf]
        %v306 = vld [vmem:[%s295 + $0x4] sm:$0xf]
        %v307 = vld [vmem:[%s262] sm:$0xff]
        %v308 = vld [vmem:[%s262 + $0x8] sm:$0xff]
        %v309 = vld [vmem:[%s262 + $0x10] sm:$0xff]
        %v310 = vld [vmem:[%s262 + $0x18] sm:$0xff]
        %v311 = vld [vmem:[%s262 + $0x20] sm:$0xff]
        %v312 = vld [vmem:[%s262 + $0x28] sm:$0xff]
        %v313 = vld [vmem:[%s262 + $0x30] sm:$0xff]
        %v314 = vld [vmem:[%s262 + $0x38] sm:$0xff]
        %v315 = vld [vmem:[%s262 + $0x40] sm:$0xff]
        %v316 = vld [vmem:[%s262 + $0x48] sm:$0xff]
        %v317 = vld [vmem:[%s262 + $0x50] sm:$0xff]
        %v318 = vld [vmem:[%s262 + $0x58] sm:$0xff]
        %v319 = vld [vmem:[%s262 + $0x60] sm:$0xff]
        %v320 = vld [vmem:[%s262 + $0x68] sm:$0xff]
        %v321 = vld [vmem:[%s262 + $0x70] sm:$0xff]
        %v322 = vld [vmem:[%s262 + $0x78] sm:$0xff]
        %v323 = vld [vmem:[%s262 + $0x80] sm:$0xff]
        %v324 = vld [vmem:[%s262 + $0x88] sm:$0xff]
        %v325 = vld [vmem:[%s262 + $0x90] sm:$0xff]
        %v326 = vld [vmem:[%s262 + $0x98] sm:$0xff]
        %v327 = vld [vmem:[%s262 + $0xa0] sm:$0xff]
        %v328 = vld [vmem:[%s262 + $0xa8] sm:$0xff]
        %v329 = vld [vmem:[%s262 + $0xb0] sm:$0xff]
        %v330 = vld [vmem:[%s262 + $0xb8] sm:$0xff]
        %v331 = vld [vmem:[%s262 + $0xc0] sm:$0xff]
        %v332 = vld [vmem:[%s262 + $0xc8] sm:$0xff]
        %v333 = vld [vmem:[%s262 + $0xd0] sm:$0xff]
        %v334 = vld [vmem:[%s262 + $0xd8] sm:$0xff]
        %v335 = vld [vmem:[%s262 + $0xe0] sm:$0xff]
        %v336 = vld [vmem:[%s262 + $0xe8] sm:$0xff]
        %v337 = vld [vmem:[%s262 + $0xf0] sm:$0xff]
        %v338 = vld [vmem:[%s262 + $0xf8] sm:$0xff]
        %v339 = vld [vmem:[%s301] sm:$0xf]
        %v341 = vperm.slane %v339, 0
        %v342 = vperm.slane %v339, 1
        %v343 = vperm.slane %v339, 2
        %v344 = vperm.slane %v339, 3
        %v351 = vunpack.c.l.b16 %v305
        %v352 = vunpack.c.l.b16 %v306
        %v353 = vpack.c.b16 %v352, %v351
        %v387 = vunpack.c.l.b16 %v307
        %v388 = vunpack.c.h.b16 %v307
        %v389 = vunpack.c.l.b16 %v308
        %v390 = vunpack.c.h.b16 %v308
        %v391 = vunpack.c.l.b16 %v309
        %v392 = vunpack.c.h.b16 %v309
        %v393 = vunpack.c.l.b16 %v310
        %v394 = vunpack.c.h.b16 %v310
        %v395 = vunpack.c.l.b16 %v311
        %v396 = vunpack.c.h.b16 %v311
        %v397 = vunpack.c.l.b16 %v312
        %v398 = vunpack.c.h.b16 %v312
        %v399 = vunpack.c.l.b16 %v313
        %v400 = vunpack.c.h.b16 %v313
        %v401 = vunpack.c.l.b16 %v314
        %v402 = vunpack.c.h.b16 %v314
        %v403 = vunpack.c.l.b16 %v315
        %v404 = vunpack.c.h.b16 %v315
        %v405 = vunpack.c.l.b16 %v316
        %v406 = vunpack.c.h.b16 %v316
        %v407 = vunpack.c.l.b16 %v317
        %v408 = vunpack.c.h.b16 %v317
        %v409 = vunpack.c.l.b16 %v318
        %v410 = vunpack.c.h.b16 %v318
        %v411 = vunpack.c.l.b16 %v319
        %v412 = vunpack.c.h.b16 %v319
        %v413 = vunpack.c.l.b16 %v320
        %v414 = vunpack.c.h.b16 %v320
        %v415 = vunpack.c.l.b16 %v321
        %v416 = vunpack.c.h.b16 %v321
        %v417 = vunpack.c.l.b16 %v322
        %v418 = vunpack.c.h.b16 %v322
        %v419 = vunpack.c.l.b16 %v323
        %v420 = vunpack.c.h.b16 %v323
        %v421 = vunpack.c.l.b16 %v324
        %v422 = vunpack.c.h.b16 %v324
        %v423 = vunpack.c.l.b16 %v325
        %v424 = vunpack.c.h.b16 %v325
        %v425 = vunpack.c.l.b16 %v326
        %v426 = vunpack.c.h.b16 %v326
        %v427 = vunpack.c.l.b16 %v327
        %v428 = vunpack.c.h.b16 %v327
        %v429 = vunpack.c.l.b16 %v328
        %v430 = vunpack.c.h.b16 %v328
        %v431 = vunpack.c.l.b16 %v329
        %v432 = vunpack.c.h.b16 %v329
        %v433 = vunpack.c.l.b16 %v330
        %v434 = vunpack.c.h.b16 %v330
        %v435 = vunpack.c.l.b16 %v331
        %v436 = vunpack.c.h.b16 %v331
        %v437 = vunpack.c.l.b16 %v332
        %v438 = vunpack.c.h.b16 %v332
        %v439 = vunpack.c.l.b16 %v333
        %v440 = vunpack.c.h.b16 %v333
        %v441 = vunpack.c.l.b16 %v334
        %v442 = vunpack.c.h.b16 %v334
        %v443 = vunpack.c.l.b16 %v335
        %v444 = vunpack.c.h.b16 %v335
        %v445 = vunpack.c.l.b16 %v336
        %v446 = vunpack.c.h.b16 %v336
        %v447 = vunpack.c.l.b16 %v337
        %v448 = vunpack.c.h.b16 %v337
        %v449 = vunpack.c.l.b16 %v338
        %v450 = vunpack.c.h.b16 %v338
        %v451 = vpack.c.b16 %v391, %v387
        %v452 = vpack.c.b16 %v392, %v388
        %v453 = vpack.c.b16 %v393, %v389
        %v454 = vpack.c.b16 %v394, %v390
        %v455 = vpack.c.b16 %v399, %v395
        %v456 = vpack.c.b16 %v400, %v396
        %v457 = vpack.c.b16 %v401, %v397
        %v458 = vpack.c.b16 %v402, %v398
        %v459 = vpack.c.b16 %v407, %v403
        %v460 = vpack.c.b16 %v408, %v404
        %v461 = vpack.c.b16 %v409, %v405
        %v462 = vpack.c.b16 %v410, %v406
        %v463 = vpack.c.b16 %v415, %v411
        %v464 = vpack.c.b16 %v416, %v412
        %v465 = vpack.c.b16 %v417, %v413
        %v466 = vpack.c.b16 %v418, %v414
        %v467 = vpack.c.b16 %v423, %v419
        %v468 = vpack.c.b16 %v424, %v420
        %v469 = vpack.c.b16 %v425, %v421
        %v470 = vpack.c.b16 %v426, %v422
        %v471 = vpack.c.b16 %v431, %v427
        %v472 = vpack.c.b16 %v432, %v428
        %v473 = vpack.c.b16 %v433, %v429
        %v474 = vpack.c.b16 %v434, %v430
        %v475 = vpack.c.b16 %v439, %v435
        %v476 = vpack.c.b16 %v440, %v436
        %v477 = vpack.c.b16 %v441, %v437
        %v478 = vpack.c.b16 %v442, %v438
        %v479 = vpack.c.b16 %v447, %v443
        %v480 = vpack.c.b16 %v448, %v444
        %v481 = vpack.c.b16 %v449, %v445
        %v482 = vpack.c.b16 %v450, %v446
        %515 = vmatpush.bf16.msra.mxu0 %v479
        %516 = vmatpush.bf16.msra.mxu0 %v475
        %517 = vmatpush.bf16.msra.mxu0 %v471
        %518 = vmatpush.bf16.msra.mxu0 %v467
        %519 = vmatpush.bf16.msra.mxu0 %v463
        %520 = vmatpush.bf16.msra.mxu0 %v459
        %521 = vmatpush.bf16.msra.mxu0 %v455
        %522 = vmatpush.bf16.msra.mxu0 %v451
        %523 = vmatmul.bf16.gmra.mxu0 %v353
        %v524 = vpop.f32.mrf.mxu0
        %v525 = vadd.f32 %v341, %v524
        %v526 = vpop.f32.mrf.mxu0
        %v527 = vadd.f32 %v341, %v526
        %528 = vdwg.mxu0
        %529 = vmatpush.bf16.msra.mxu0 %v480
        %530 = vmatpush.bf16.msra.mxu0 %v476
        %531 = vmatpush.bf16.msra.mxu0 %v472
        %532 = vmatpush.bf16.msra.mxu0 %v468
        %533 = vmatpush.bf16.msra.mxu0 %v464
        %534 = vmatpush.bf16.msra.mxu0 %v460
        %535 = vmatpush.bf16.msra.mxu0 %v456
        %536 = vmatpush.bf16.msra.mxu0 %v452
        %537 = vmatmul.bf16.gmra.mxu0 %v353
        %v538 = vpop.f32.mrf.mxu0
        %v539 = vadd.f32 %v342, %v538
        %v540 = vpop.f32.mrf.mxu0
        %v541 = vadd.f32 %v342, %v540
        %542 = vdwg.mxu0
        %543 = vmatpush.bf16.msra.mxu0 %v481
        %544 = vmatpush.bf16.msra.mxu0 %v477
        %545 = vmatpush.bf16.msra.mxu0 %v473
        %546 = vmatpush.bf16.msra.mxu0 %v469
        %547 = vmatpush.bf16.msra.mxu0 %v465
        %548 = vmatpush.bf16.msra.mxu0 %v461
        %549 = vmatpush.bf16.msra.mxu0 %v457
        %550 = vmatpush.bf16.msra.mxu0 %v453
        %551 = vmatmul.bf16.gmra.mxu0 %v353
        %v552 = vpop.f32.mrf.mxu0
        %v553 = vadd.f32 %v343, %v552
        %v554 = vpop.f32.mrf.mxu0
        %v555 = vadd.f32 %v343, %v554
        %556 = vdwg.mxu0
        %557 = vmatpush.bf16.msra.mxu0 %v482
        %558 = vmatpush.bf16.msra.mxu0 %v478
        %559 = vmatpush.bf16.msra.mxu0 %v474
        %560 = vmatpush.bf16.msra.mxu0 %v470
        %561 = vmatpush.bf16.msra.mxu0 %v466
        %562 = vmatpush.bf16.msra.mxu0 %v462
        %563 = vmatpush.bf16.msra.mxu0 %v458
        %564 = vmatpush.bf16.msra.mxu0 %v454
        %565 = vmatmul.bf16.gmra.mxu0 %v353
        %v566 = vpop.f32.mrf.mxu0
        %v567 = vadd.f32 %v344, %v566
        %v568 = vpop.f32.mrf.mxu0
        %v569 = vadd.f32 %v344, %v568
        %570 = vdwg.mxu0
        %v571 = vmax.f32 %v525, 0.0
        %v572 = vmax.f32 %v539, 0.0
        %v573 = vmax.f32 %v553, 0.0
        %v574 = vmax.f32 %v567, 0.0
        %v575 = vmax.f32 %v527, 0.0
        %v576 = vmax.f32 %v541, 0.0
        %v577 = vmax.f32 %v555, 0.0
        %v578 = vmax.f32 %v569, 0.0
        %v579 = vpack.c.bf16 %v572, %v571
        %v580 = vpack.c.bf16 %v574, %v573
        %v581 = vpack.c.bf16 %v576, %v575
        %v582 = vpack.c.bf16 %v578, %v577
        %583 = vst [vmem:[%s290] sm:$0xff] %v579
        %584 = vst [vmem:[%s290 + $0x8] sm:$0xff] %v580
        %585 = vst [vmem:[%s290 + $0x10] sm:$0xff] %v581
        %586 = vst [vmem:[%s290 + $0x18] sm:$0xff] %v582
        %s587 = sand.u32 %s114, 1
        %s588 = sand.u32 %s114, 1
        %s589 = smul.addr %s588, 32
        %s590 = scalar_lea.vmem [#allocation3], %s589
        // Predicated region
        $region56: #{shallow_1dcnn_forward.8} parent=50 // pred_check
          %p591 = pneg %p124
        $region57: #{shallow_1dcnn_forward.8} parent=50 // pred_check_branch
          %593 = sbr.rel (%p591) target = $region59
        $region58: #{shallow_1dcnn_forward.8} parent=50 // pred_region
          %s594 = smul.u32 2, %s18
          %s595 = smul.u32 4, %s19
          %s596 = smul.addr %s594, 32
          %s597 = sadd.s32 %s595, %s596
          %s598 = smul.addr %s597, 4
          %s599 = scalar_lea.vmem %s3, %s598
          // Predicated region
          $region60: #{shallow_1dcnn_forward.8} parent=58 // pred_check
            _
          $region61: #{shallow_1dcnn_forward.8} parent=58 // pred_check_branch
            %601 = sbr.rel (0) target = $region63
          $region62: #{shallow_1dcnn_forward.8} parent=58 // pred_region
            // Predicated region
            $region64: #{shallow_1dcnn_forward.8} parent=62 // pred_check
              _
            $region65: #{shallow_1dcnn_forward.8} parent=62 // pred_check_branch
              %603 = sbr.rel (0) target = $region67
            $region66: #{shallow_1dcnn_forward.8} parent=62 // pred_region
              loop: start=0, step=1, limit=1
              $region68: #{shallow_1dcnn_forward.8} parent=66 // loop_pre_header
                _
              $region69: #{shallow_1dcnn_forward.8} parent=66 // loop_header
                %s605 = sphi 0, %s609
                %p606 = scmp.ge.s32.totalorder %s605, 1
                %s610 = sphi %s590, %s590
                %s611 = sphi %s599, %s599
              $region70: #{shallow_1dcnn_forward.8} parent=66 // loop_header_branch
                %608 = sbr.rel (%p606) target = $region74
              $region71: #{shallow_1dcnn_forward.8} parent=66 // loop_body
                %v612 = vld [vmem:[%s610] sm:$0xff]
                %613 = vst [vmem:[%s611] sm:$0xff] %v612
                %v614 = vld [vmem:[%s610 + $0x8] sm:$0xff]
                %615 = vst [vmem:[%s611 + $0x8] sm:$0xff] %v614
                %v616 = vld [vmem:[%s610 + $0x10] sm:$0xff]
                %617 = vst [vmem:[%s611 + $0x80] sm:$0xff] %v616
                %v618 = vld [vmem:[%s610 + $0x18] sm:$0xff]
                %619 = vst [vmem:[%s611 + $0x88] sm:$0xff] %v618
              $region72: #{shallow_1dcnn_forward.8} parent=66 // loop_footer
                %s609 = sadd.s32 1, %s605
              $region73: #{shallow_1dcnn_forward.8} parent=66 // loop_footer_branch
                %604 = sbr.rel target = $region69
              $region74: #{shallow_1dcnn_forward.8} parent=66 // loop_exit
                _
            $region67: #{shallow_1dcnn_forward.8} parent=62 // pred_fallthru
              _
            // Predicated region
            $region75: #{shallow_1dcnn_forward.8} parent=62 // pred_check
              _
            $region76: #{shallow_1dcnn_forward.8} parent=62 // pred_check_branch
              %621 = sbr.rel target = $region78
            $region77: #{shallow_1dcnn_forward.8} parent=62 // pred_region
              _
            $region78: #{shallow_1dcnn_forward.8} parent=62 // pred_fallthru
              _
          $region63: #{shallow_1dcnn_forward.8} parent=58 // pred_fallthru
            _
          %622 = vnop
        $region59: #{shallow_1dcnn_forward.8} parent=50 // pred_fallthru
          _
      $region51: #{shallow_1dcnn_forward.8} parent=5 // pred_fallthru
        _
      %p623 = scmp.le.s32.totalorder 2, %s9
      // Predicated region
      $region79: #{shallow_1dcnn_forward.8} parent=5 // pred_check
        %p624 = pneg %p623
      $region80: #{shallow_1dcnn_forward.8} parent=5 // pred_check_branch
        %626 = sbr.rel (%p624) target = $region82
      $region81: #{shallow_1dcnn_forward.8} parent=5 // pred_region
        %s627 = ssub.s32 %s9, 2
        // Predicated region
        $region83: #{shallow_1dcnn_forward.8} parent=81 // pred_check
          %p628 = pneg %p130
        $region84: #{shallow_1dcnn_forward.8} parent=81 // pred_check_branch
          %630 = sbr.rel (%p628) target = $region86
        $region85: #{shallow_1dcnn_forward.8} parent=81 // pred_region
          %s631 = sand.u32 %s115, 1
          %s632 = sand.u32 %s115, 1
          %s633 = smul.addr %s632, 32
          %s634 = scalar_lea.vmem [#allocation3], %s633
        $region86: #{shallow_1dcnn_forward.8} parent=81 // pred_fallthru
          _
      $region82: #{shallow_1dcnn_forward.8} parent=5 // pred_fallthru
        _
    $region6: #{shallow_1dcnn_forward.8} parent=1 // loop_footer
      %s13 = sadd.s32 1, %s9
    $region7: #{shallow_1dcnn_forward.8} parent=1 // loop_footer_branch
      %8 = sbr.rel target = $region3
    $region8: #{shallow_1dcnn_forward.8} parent=1 // loop_exit
      _

// kernel: shallow_1dcnn_forward.9
$region0: #{shallow_1dcnn_forward.9}
  #allocation0 [shape = 'u32[]', space=smem, size = 0x4, offset = 0x4, fixed_abs, tag = 'smem constant byte address 0x4 - core index']
  #allocation1 [shape = 'u32[72,128]{1,0:T(1,128)}', space=vmem, size = 0x9000, scoped, tag = 'internal scratch']
  %s0 = inlined_call_operand.vmem [shape: bf16[16,4096], index: 0, kind: input, shape index: {}]
  %s1 = inlined_call_operand.vmem [shape: bf16[4096,128], index: 1, kind: input, shape index: {}]
  %s2 = inlined_call_operand.vmem [shape: f32[1,128], index: 2, kind: input, shape index: {}]
  %s3 = inlined_call_operand.vmem [shape: f32[16,128], index: 3, kind: output, shape index: {}]
  %s4 = sld [smem:[#allocation0]]
  $region22: #{shallow_1dcnn_forward.9} parent=0
    _
  %s6 = ssub.s32 1, %s4
  %s7 = scalar_select 0, %s6, %s4
  // Predicated region
  $region2: #{shallow_1dcnn_forward.9} parent=0 // pred_check
    _
  $region3: #{shallow_1dcnn_forward.9} parent=0 // pred_check_branch
    %9 = sbr.rel (0) target = $region5
  $region4: #{shallow_1dcnn_forward.9} parent=0 // pred_region
    _
  $region5: #{shallow_1dcnn_forward.9} parent=0 // pred_fallthru
    _
  // Predicated region
  $region6: #{shallow_1dcnn_forward.9} parent=0 // pred_check
    _
  $region7: #{shallow_1dcnn_forward.9} parent=0 // pred_check_branch
    %11 = sbr.rel (0) target = $region9
  $region8: #{shallow_1dcnn_forward.9} parent=0 // pred_region
    _
  $region9: #{shallow_1dcnn_forward.9} parent=0 // pred_fallthru
    _
  // Predicated region
  $region10: #{shallow_1dcnn_forward.9} parent=0 // pred_check
    _
  $region11: #{shallow_1dcnn_forward.9} parent=0 // pred_check_branch
    %13 = sbr.rel (0) target = $region13
  $region12: #{shallow_1dcnn_forward.9} parent=0 // pred_region
    _
  $region13: #{shallow_1dcnn_forward.9} parent=0 // pred_fallthru
    _
  %v14 = vld [vmem:[%s0] sm:$0xff]
  %v15 = vld [vmem:[%s0 + $0x8] sm:$0xff]
  %v16 = vld [vmem:[%s0 + $0x10] sm:$0xff]
  %v17 = vld [vmem:[%s0 + $0x18] sm:$0xff]
  %v18 = vld [vmem:[%s0 + $0x20] sm:$0xff]
  %v19 = vld [vmem:[%s0 + $0x28] sm:$0xff]
  %v20 = vld [vmem:[%s0 + $0x30] sm:$0xff]
  %v21 = vld [vmem:[%s0 + $0x38] sm:$0xff]
  %v22 = vld [vmem:[%s0 + $0x40] sm:$0xff]
  %v23 = vld [vmem:[%s0 + $0x48] sm:$0xff]
  %v24 = vld [vmem:[%s0 + $0x50] sm:$0xff]
  %v25 = vld [vmem:[%s0 + $0x58] sm:$0xff]
  %v26 = vld [vmem:[%s0 + $0x60] sm:$0xff]
  %v27 = vld [vmem:[%s0 + $0x68] sm:$0xff]
  %v28 = vld [vmem:[%s0 + $0x70] sm:$0xff]
  %v29 = vld [vmem:[%s0 + $0x78] sm:$0xff]
  %v30 = vld [vmem:[%s0 + $0x80] sm:$0xff]
  %v31 = vld [vmem:[%s0 + $0x88] sm:$0xff]
  %v32 = vld [vmem:[%s0 + $0x90] sm:$0xff]
  %v33 = vld [vmem:[%s0 + $0x98] sm:$0xff]
  %v34 = vld [vmem:[%s0 + $0xa0] sm:$0xff]
  %v35 = vld [vmem:[%s0 + $0xa8] sm:$0xff]
  %v36 = vld [vmem:[%s0 + $0xb0] sm:$0xff]
  %v37 = vld [vmem:[%s0 + $0xb8] sm:$0xff]
  %v38 = vld [vmem:[%s0 + $0xc0] sm:$0xff]
  %v39 = vld [vmem:[%s0 + $0xc8] sm:$0xff]
  %v40 = vld [vmem:[%s0 + $0xd0] sm:$0xff]
  %v41 = vld [vmem:[%s0 + $0xd8] sm:$0xff]
  %v42 = vld [vmem:[%s0 + $0xe0] sm:$0xff]
  %v43 = vld [vmem:[%s0 + $0xe8] sm:$0xff]
  %v44 = vld [vmem:[%s0 + $0xf0] sm:$0xff]
  %v45 = vld [vmem:[%s0 + $0xf8] sm:$0xff]
  %v46 = vld [vmem:[%s1] sm:$0xf]
  %v47 = vld [vmem:[%s1 + $0x4] sm:$0xf]
  %v48 = vld [vmem:[%s1 + $0x8] sm:$0xf]
  %v49 = vld [vmem:[%s1 + $0xc] sm:$0xf]
  %v50 = vld [vmem:[%s1 + $0x10] sm:$0xf]
  %v51 = vld [vmem:[%s1 + $0x14] sm:$0xf]
  %v52 = vld [vmem:[%s1 + $0x18] sm:$0xf]
  %v53 = vld [vmem:[%s1 + $0x1c] sm:$0xf]
  %v54 = vld [vmem:[%s1 + $0x20] sm:$0xf]
  %v55 = vld [vmem:[%s1 + $0x24] sm:$0xf]
  %v56 = vld [vmem:[%s1 + $0x28] sm:$0xf]
  %v57 = vld [vmem:[%s1 + $0x2c] sm:$0xf]
  %v58 = vld [vmem:[%s1 + $0x30] sm:$0xf]
  %v59 = vld [vmem:[%s1 + $0x34] sm:$0xf]
  %v60 = vld [vmem:[%s1 + $0x38] sm:$0xf]
  %v61 = vld [vmem:[%s1 + $0x3c] sm:$0xf]
  %v62 = vld [vmem:[%s1 + $0x40] sm:$0xf]
  %v63 = vld [vmem:[%s1 + $0x44] sm:$0xf]
  %v64 = vld [vmem:[%s1 + $0x48] sm:$0xf]
  %v65 = vld [vmem:[%s1 + $0x4c] sm:$0xf]
  %v66 = vld [vmem:[%s1 + $0x50] sm:$0xf]
  %v67 = vld [vmem:[%s1 + $0x54] sm:$0xf]
  %v68 = vld [vmem:[%s1 + $0x58] sm:$0xf]
  %v69 = vld [vmem:[%s1 + $0x5c] sm:$0xf]
  %v70 = vld [vmem:[%s1 + $0x60] sm:$0xf]
  %v71 = vld [vmem:[%s1 + $0x64] sm:$0xf]
  %v72 = vld [vmem:[%s1 + $0x68] sm:$0xf]
  %v73 = vld [vmem:[%s1 + $0x6c] sm:$0xf]
  %v74 = vld [vmem:[%s1 + $0x70] sm:$0xf]
  %v75 = vld [vmem:[%s1 + $0x74] sm:$0xf]
  %v76 = vld [vmem:[%s1 + $0x78] sm:$0xf]
  %v77 = vld [vmem:[%s1 + $0x7c] sm:$0xf]
  %v78 = vld [vmem:[%s1 + $0x80] sm:$0xf]
  %v79 = vld [vmem:[%s1 + $0x84] sm:$0xf]
  %v80 = vld [vmem:[%s1 + $0x88] sm:$0xf]
  %v81 = vld [vmem:[%s1 + $0x8c] sm:$0xf]
  %v82 = vld [vmem:[%s1 + $0x90] sm:$0xf]
  %v83 = vld [vmem:[%s1 + $0x94] sm:$0xf]
  %v84 = vld [vmem:[%s1 + $0x98] sm:$0xf]
  %v85 = vld [vmem:[%s1 + $0x9c] sm:$0xf]
  %v86 = vld [vmem:[%s1 + $0xa0] sm:$0xf]
  %v87 = vld [vmem:[%s1 + $0xa4] sm:$0xf]
  %v88 = vld [vmem:[%s1 + $0xa8] sm:$0xf]
  %v89 = vld [vmem:[%s1 + $0xac] sm:$0xf]
  %v90 = vld [vmem:[%s1 + $0xb0] sm:$0xf]
  %v91 = vld [vmem:[%s1 + $0xb4] sm:$0xf]
  %v92 = vld [vmem:[%s1 + $0xb8] sm:$0xf]
  %v93 = vld [vmem:[%s1 + $0xbc] sm:$0xf]
  %v94 = vld [vmem:[%s1 + $0xc0] sm:$0xf]
  %v95 = vld [vmem:[%s1 + $0xc4] sm:$0xf]
  %v96 = vld [vmem:[%s1 + $0xc8] sm:$0xf]
  %v97 = vld [vmem:[%s1 + $0xcc] sm:$0xf]
  %v98 = vld [vmem:[%s1 + $0xd0] sm:$0xf]
  %v99 = vld [vmem:[%s1 + $0xd4] sm:$0xf]
  %v100 = vld [vmem:[%s1 + $0xd8] sm:$0xf]
  %v101 = vld [vmem:[%s1 + $0xdc] sm:$0xf]
  %v102 = vld [vmem:[%s1 + $0xe0] sm:$0xf]
  %v103 = vld [vmem:[%s1 + $0xe4] sm:$0xf]
  %v104 = vld [vmem:[%s1 + $0xe8] sm:$0xf]
  %v105 = vld [vmem:[%s1 + $0xec] sm:$0xf]
  %v106 = vld [vmem:[%s1 + $0xf0] sm:$0xf]
  %v107 = vld [vmem:[%s1 + $0xf4] sm:$0xf]
  %v108 = vld [vmem:[%s1 + $0xf8] sm:$0xf]
  %v109 = vld [vmem:[%s1 + $0xfc] sm:$0xf]
  %v110 = vld [vmem:[%s1 + $0x100] sm:$0xf]
  %v111 = vld [vmem:[%s1 + $0x104] sm:$0xf]
  %v112 = vld [vmem:[%s1 + $0x108] sm:$0xf]
  %v113 = vld [vmem:[%s1 + $0x10c] sm:$0xf]
  %v114 = vld [vmem:[%s1 + $0x110] sm:$0xf]
  %v115 = vld [vmem:[%s1 + $0x114] sm:$0xf]
  %v116 = vld [vmem:[%s1 + $0x118] sm:$0xf]
  %v117 = vld [vmem:[%s1 + $0x11c] sm:$0xf]
  %v118 = vld [vmem:[%s1 + $0x120] sm:$0xf]
  %v119 = vld [vmem:[%s1 + $0x124] sm:$0xf]
  %v120 = vld [vmem:[%s1 + $0x128] sm:$0xf]
  %v121 = vld [vmem:[%s1 + $0x12c] sm:$0xf]
  %v122 = vld [vmem:[%s1 + $0x130] sm:$0xf]
  %v123 = vld [vmem:[%s1 + $0x134] sm:$0xf]
  %v124 = vld [vmem:[%s1 + $0x138] sm:$0xf]
  %v125 = vld [vmem:[%s1 + $0x13c] sm:$0xf]
  %v126 = vld [vmem:[%s1 + $0x140] sm:$0xf]
  %v127 = vld [vmem:[%s1 + $0x144] sm:$0xf]
  %v128 = vld [vmem:[%s1 + $0x148] sm:$0xf]
  %v129 = vld [vmem:[%s1 + $0x14c] sm:$0xf]
  %v130 = vld [vmem:[%s1 + $0x150] sm:$0xf]
  %v131 = vld [vmem:[%s1 + $0x154] sm:$0xf]
  %v132 = vld [vmem:[%s1 + $0x158] sm:$0xf]
  %v133 = vld [vmem:[%s1 + $0x15c] sm:$0xf]
  %v134 = vld [vmem:[%s1 + $0x160] sm:$0xf]
  %v135 = vld [vmem:[%s1 + $0x164] sm:$0xf]
  %v136 = vld [vmem:[%s1 + $0x168] sm:$0xf]
  %v137 = vld [vmem:[%s1 + $0x16c] sm:$0xf]
  %v138 = vld [vmem:[%s1 + $0x170] sm:$0xf]
  %v139 = vld [vmem:[%s1 + $0x174] sm:$0xf]
  %v140 = vld [vmem:[%s1 + $0x178] sm:$0xf]
  %v141 = vld [vmem:[%s1 + $0x17c] sm:$0xf]
  %v142 = vld [vmem:[%s1 + $0x180] sm:$0xf]
  %v143 = vld [vmem:[%s1 + $0x184] sm:$0xf]
  %v144 = vld [vmem:[%s1 + $0x188] sm:$0xf]
  %v145 = vld [vmem:[%s1 + $0x18c] sm:$0xf]
  %v146 = vld [vmem:[%s1 + $0x190] sm:$0xf]
  %v147 = vld [vmem:[%s1 + $0x194] sm:$0xf]
  %v148 = vld [vmem:[%s1 + $0x198] sm:$0xf]
  %v149 = vld [vmem:[%s1 + $0x19c] sm:$0xf]
  %v150 = vld [vmem:[%s1 + $0x1a0] sm:$0xf]
  %v151 = vld [vmem:[%s1 + $0x1a4] sm:$0xf]
  %v152 = vld [vmem:[%s1 + $0x1a8] sm:$0xf]
  %v153 = vld [vmem:[%s1 + $0x1ac] sm:$0xf]
  %v154 = vld [vmem:[%s1 + $0x1b0] sm:$0xf]
  %v155 = vld [vmem:[%s1 + $0x1b4] sm:$0xf]
  %v156 = vld [vmem:[%s1 + $0x1b8] sm:$0xf]
  %v157 = vld [vmem:[%s1 + $0x1bc] sm:$0xf]
  %v158 = vld [vmem:[%s1 + $0x1c0] sm:$0xf]
  %v159 = vld [vmem:[%s1 + $0x1c4] sm:$0xf]
  %v160 = vld [vmem:[%s1 + $0x1c8] sm:$0xf]
  %v161 = vld [vmem:[%s1 + $0x1cc] sm:$0xf]
  %v162 = vld [vmem:[%s1 + $0x1d0] sm:$0xf]
  %v163 = vld [vmem:[%s1 + $0x1d4] sm:$0xf]
  %v164 = vld [vmem:[%s1 + $0x1d8] sm:$0xf]
  %v165 = vld [vmem:[%s1 + $0x1dc] sm:$0xf]
  %v166 = vld [vmem:[%s1 + $0x1e0] sm:$0xf]
  %v167 = vld [vmem:[%s1 + $0x1e4] sm:$0xf]
  %v168 = vld [vmem:[%s1 + $0x1e8] sm:$0xf]
  %v169 = vld [vmem:[%s1 + $0x1ec] sm:$0xf]
  %v170 = vld [vmem:[%s1 + $0x1f0] sm:$0xf]
  %v171 = vld [vmem:[%s1 + $0x1f4] sm:$0xf]
  %v172 = vld [vmem:[%s1 + $0x1f8] sm:$0xf]
  %v173 = vld [vmem:[%s1 + $0x1fc] sm:$0xf]
  %v174 = vld [vmem:[%s1 + $0x200] sm:$0xf]
  %v175 = vld [vmem:[%s1 + $0x204] sm:$0xf]
  %v176 = vld [vmem:[%s1 + $0x208] sm:$0xf]
  %v177 = vld [vmem:[%s1 + $0x20c] sm:$0xf]
  %v178 = vld [vmem:[%s1 + $0x210] sm:$0xf]
  %v179 = vld [vmem:[%s1 + $0x214] sm:$0xf]
  %v180 = vld [vmem:[%s1 + $0x218] sm:$0xf]
  %v181 = vld [vmem:[%s1 + $0x21c] sm:$0xf]
  %v182 = vld [vmem:[%s1 + $0x220] sm:$0xf]
  %v183 = vld [vmem:[%s1 + $0x224] sm:$0xf]
  %v184 = vld [vmem:[%s1 + $0x228] sm:$0xf]
  %v185 = vld [vmem:[%s1 + $0x22c] sm:$0xf]
  %v186 = vld [vmem:[%s1 + $0x230] sm:$0xf]
  %v187 = vld [vmem:[%s1 + $0x234] sm:$0xf]
  %v188 = vld [vmem:[%s1 + $0x238] sm:$0xf]
  %v189 = vld [vmem:[%s1 + $0x23c] sm:$0xf]
  %v190 = vld [vmem:[%s1 + $0x240] sm:$0xf]
  %v191 = vld [vmem:[%s1 + $0x244] sm:$0xf]
  %v192 = vld [vmem:[%s1 + $0x248] sm:$0xf]
  %v193 = vld [vmem:[%s1 + $0x24c] sm:$0xf]
  %v194 = vld [vmem:[%s1 + $0x250] sm:$0xf]
  %v195 = vld [vmem:[%s1 + $0x254] sm:$0xf]
  %v196 = vld [vmem:[%s1 + $0x258] sm:$0xf]
  %v197 = vld [vmem:[%s1 + $0x25c] sm:$0xf]
  %v198 = vld [vmem:[%s1 + $0x260] sm:$0xf]
  %v199 = vld [vmem:[%s1 + $0x264] sm:$0xf]
  %v200 = vld [vmem:[%s1 + $0x268] sm:$0xf]
  %v201 = vld [vmem:[%s1 + $0x26c] sm:$0xf]
  %v202 = vld [vmem:[%s1 + $0x270] sm:$0xf]
  %v203 = vld [vmem:[%s1 + $0x274] sm:$0xf]
  %v204 = vld [vmem:[%s1 + $0x278] sm:$0xf]
  %v205 = vld [vmem:[%s1 + $0x27c] sm:$0xf]
  %v206 = vld [vmem:[%s1 + $0x280] sm:$0xf]
  %v207 = vld [vmem:[%s1 + $0x284] sm:$0xf]
  %v208 = vld [vmem:[%s1 + $0x288] sm:$0xf]
  %v209 = vld [vmem:[%s1 + $0x28c] sm:$0xf]
  %v210 = vld [vmem:[%s1 + $0x290] sm:$0xf]
  %v211 = vld [vmem:[%s1 + $0x294] sm:$0xf]
  %v212 = vld [vmem:[%s1 + $0x298] sm:$0xf]
  %v213 = vld [vmem:[%s1 + $0x29c] sm:$0xf]
  %v214 = vld [vmem:[%s1 + $0x2a0] sm:$0xf]
  %v215 = vld [vmem:[%s1 + $0x2a4] sm:$0xf]
  %v216 = vld [vmem:[%s1 + $0x2a8] sm:$0xf]
  %v217 = vld [vmem:[%s1 + $0x2ac] sm:$0xf]
  %v218 = vld [vmem:[%s1 + $0x2b0] sm:$0xf]
  %v219 = vld [vmem:[%s1 + $0x2b4] sm:$0xf]
  %v220 = vld [vmem:[%s1 + $0x2b8] sm:$0xf]
  %v221 = vld [vmem:[%s1 + $0x2bc] sm:$0xf]
  %v222 = vld [vmem:[%s1 + $0x2c0] sm:$0xf]
  %v223 = vld [vmem:[%s1 + $0x2c4] sm:$0xf]
  %v224 = vld [vmem:[%s1 + $0x2c8] sm:$0xf]
  %v225 = vld [vmem:[%s1 + $0x2cc] sm:$0xf]
  %v226 = vld [vmem:[%s1 + $0x2d0] sm:$0xf]
  %v227 = vld [vmem:[%s1 + $0x2d4] sm:$0xf]
  %v228 = vld [vmem:[%s1 + $0x2d8] sm:$0xf]
  %v229 = vld [vmem:[%s1 + $0x2dc] sm:$0xf]
  %v230 = vld [vmem:[%s1 + $0x2e0] sm:$0xf]
  %v231 = vld [vmem:[%s1 + $0x2e4] sm:$0xf]
  %v232 = vld [vmem:[%s1 + $0x2e8] sm:$0xf]
  %v233 = vld [vmem:[%s1 + $0x2ec] sm:$0xf]
  %v234 = vld [vmem:[%s1 + $0x2f0] sm:$0xf]
  %v235 = vld [vmem:[%s1 + $0x2f4] sm:$0xf]
  %v236 = vld [vmem:[%s1 + $0x2f8] sm:$0xf]
  %v237 = vld [vmem:[%s1 + $0x2fc] sm:$0xf]
  %v238 = vld [vmem:[%s1 + $0x300] sm:$0xf]
  %v239 = vld [vmem:[%s1 + $0x304] sm:$0xf]
  %v240 = vld [vmem:[%s1 + $0x308] sm:$0xf]
  %v241 = vld [vmem:[%s1 + $0x30c] sm:$0xf]
  %v242 = vld [vmem:[%s1 + $0x310] sm:$0xf]
  %v243 = vld [vmem:[%s1 + $0x314] sm:$0xf]
  %v244 = vld [vmem:[%s1 + $0x318] sm:$0xf]
  %v245 = vld [vmem:[%s1 + $0x31c] sm:$0xf]
  %v246 = vld [vmem:[%s1 + $0x320] sm:$0xf]
  %v247 = vld [vmem:[%s1 + $0x324] sm:$0xf]
  %v248 = vld [vmem:[%s1 + $0x328] sm:$0xf]
  %v249 = vld [vmem:[%s1 + $0x32c] sm:$0xf]
  %v250 = vld [vmem:[%s1 + $0x330] sm:$0xf]
  %v251 = vld [vmem:[%s1 + $0x334] sm:$0xf]
  %v252 = vld [vmem:[%s1 + $0x338] sm:$0xf]
  %v253 = vld [vmem:[%s1 + $0x33c] sm:$0xf]
  %v254 = vld [vmem:[%s1 + $0x340] sm:$0xf]
  %v255 = vld [vmem:[%s1 + $0x344] sm:$0xf]
  %v256 = vld [vmem:[%s1 + $0x348] sm:$0xf]
  %v257 = vld [vmem:[%s1 + $0x34c] sm:$0xf]
  %v258 = vld [vmem:[%s1 + $0x350] sm:$0xf]
  %v259 = vld [vmem:[%s1 + $0x354] sm:$0xf]
  %v260 = vld [vmem:[%s1 + $0x358] sm:$0xf]
  %v261 = vld [vmem:[%s1 + $0x35c] sm:$0xf]
  %v262 = vld [vmem:[%s1 + $0x360] sm:$0xf]
  %v263 = vld [vmem:[%s1 + $0x364] sm:$0xf]
  %v264 = vld [vmem:[%s1 + $0x368] sm:$0xf]
  %v265 = vld [vmem:[%s1 + $0x36c] sm:$0xf]
  %v266 = vld [vmem:[%s1 + $0x370] sm:$0xf]
  %v267 = vld [vmem:[%s1 + $0x374] sm:$0xf]
  %v268 = vld [vmem:[%s1 + $0x378] sm:$0xf]
  %v269 = vld [vmem:[%s1 + $0x37c] sm:$0xf]
  %v270 = vld [vmem:[%s1 + $0x380] sm:$0xf]
  %v271 = vld [vmem:[%s1 + $0x384] sm:$0xf]
  %v272 = vld [vmem:[%s1 + $0x388] sm:$0xf]
  %v273 = vld [vmem:[%s1 + $0x38c] sm:$0xf]
  %v274 = vld [vmem:[%s1 + $0x390] sm:$0xf]
  %v275 = vld [vmem:[%s1 + $0x394] sm:$0xf]
  %v276 = vld [vmem:[%s1 + $0x398] sm:$0xf]
  %v277 = vld [vmem:[%s1 + $0x39c] sm:$0xf]
  %v278 = vld [vmem:[%s1 + $0x3a0] sm:$0xf]
  %v279 = vld [vmem:[%s1 + $0x3a4] sm:$0xf]
  %v280 = vld [vmem:[%s1 + $0x3a8] sm:$0xf]
  %v281 = vld [vmem:[%s1 + $0x3ac] sm:$0xf]
  %v282 = vld [vmem:[%s1 + $0x3b0] sm:$0xf]
  %v283 = vld [vmem:[%s1 + $0x3b4] sm:$0xf]
  %v284 = vld [vmem:[%s1 + $0x3b8] sm:$0xf]
  %v285 = vld [vmem:[%s1 + $0x3bc] sm:$0xf]
  %v286 = vld [vmem:[%s1 + $0x3c0] sm:$0xf]
  %v287 = vld [vmem:[%s1 + $0x3c4] sm:$0xf]
  %v288 = vld [vmem:[%s1 + $0x3c8] sm:$0xf]
  %v289 = vld [vmem:[%s1 + $0x3cc] sm:$0xf]
  %v290 = vld [vmem:[%s1 + $0x3d0] sm:$0xf]
  %v291 = vld [vmem:[%s1 + $0x3d4] sm:$0xf]
  %v292 = vld [vmem:[%s1 + $0x3d8] sm:$0xf]
  %v293 = vld [vmem:[%s1 + $0x3dc] sm:$0xf]
  %v294 = vld [vmem:[%s1 + $0x3e0] sm:$0xf]
  %v295 = vld [vmem:[%s1 + $0x3e4] sm:$0xf]
  %v296 = vld [vmem:[%s1 + $0x3e8] sm:$0xf]
  %v297 = vld [vmem:[%s1 + $0x3ec] sm:$0xf]
  %v298 = vld [vmem:[%s1 + $0x3f0] sm:$0xf]
  %v299 = vld [vmem:[%s1 + $0x3f4] sm:$0xf]
  %v300 = vld [vmem:[%s1 + $0x3f8] sm:$0xf]
  %v301 = vld [vmem:[%s1 + $0x3fc] sm:$0xf]
  %v302 = vld [vmem:[%s1 + $0x400] sm:$0xf]
  %v303 = vld [vmem:[%s1 + $0x404] sm:$0xf]
  %v304 = vld [vmem:[%s1 + $0x408] sm:$0xf]
  %v305 = vld [vmem:[%s1 + $0x40c] sm:$0xf]
  %v306 = vld [vmem:[%s1 + $0x410] sm:$0xf]
  %v307 = vld [vmem:[%s1 + $0x414] sm:$0xf]
  %v308 = vld [vmem:[%s1 + $0x418] sm:$0xf]
  %v309 = vld [vmem:[%s1 + $0x41c] sm:$0xf]
  %v310 = vld [vmem:[%s1 + $0x420] sm:$0xf]
  %v311 = vld [vmem:[%s1 + $0x424] sm:$0xf]
  %v312 = vld [vmem:[%s1 + $0x428] sm:$0xf]
  %v313 = vld [vmem:[%s1 + $0x42c] sm:$0xf]
  %v314 = vld [vmem:[%s1 + $0x430] sm:$0xf]
  %v315 = vld [vmem:[%s1 + $0x434] sm:$0xf]
  %v316 = vld [vmem:[%s1 + $0x438] sm:$0xf]
  %v317 = vld [vmem:[%s1 + $0x43c] sm:$0xf]
  %v318 = vld [vmem:[%s1 + $0x440] sm:$0xf]
  %v319 = vld [vmem:[%s1 + $0x444] sm:$0xf]
  %v320 = vld [vmem:[%s1 + $0x448] sm:$0xf]
  %v321 = vld [vmem:[%s1 + $0x44c] sm:$0xf]
  %v322 = vld [vmem:[%s1 + $0x450] sm:$0xf]
  %v323 = vld [vmem:[%s1 + $0x454] sm:$0xf]
  %v324 = vld [vmem:[%s1 + $0x458] sm:$0xf]
  %v325 = vld [vmem:[%s1 + $0x45c] sm:$0xf]
  %v326 = vld [vmem:[%s1 + $0x460] sm:$0xf]
  %v327 = vld [vmem:[%s1 + $0x464] sm:$0xf]
  %v328 = vld [vmem:[%s1 + $0x468] sm:$0xf]
  %v329 = vld [vmem:[%s1 + $0x46c] sm:$0xf]
  %v330 = vld [vmem:[%s1 + $0x470] sm:$0xf]
  %v331 = vld [vmem:[%s1 + $0x474] sm:$0xf]
  %v332 = vld [vmem:[%s1 + $0x478] sm:$0xf]
  %v333 = vld [vmem:[%s1 + $0x47c] sm:$0xf]
  %v334 = vld [vmem:[%s1 + $0x480] sm:$0xf]
  %v335 = vld [vmem:[%s1 + $0x484] sm:$0xf]
  %v336 = vld [vmem:[%s1 + $0x488] sm:$0xf]
  %v337 = vld [vmem:[%s1 + $0x48c] sm:$0xf]
  %v338 = vld [vmem:[%s1 + $0x490] sm:$0xf]
  %v339 = vld [vmem:[%s1 + $0x494] sm:$0xf]
  %v340 = vld [vmem:[%s1 + $0x498] sm:$0xf]
  %v341 = vld [vmem:[%s1 + $0x49c] sm:$0xf]
  %v342 = vld [vmem:[%s1 + $0x4a0] sm:$0xf]
  %v343 = vld [vmem:[%s1 + $0x4a4] sm:$0xf]
  %v344 = vld [vmem:[%s1 + $0x4a8] sm:$0xf]
  %v345 = vld [vmem:[%s1 + $0x4ac] sm:$0xf]
  %v346 = vld [vmem:[%s1 + $0x4b0] sm:$0xf]
  %v347 = vld [vmem:[%s1 + $0x4b4] sm:$0xf]
  %v348 = vld [vmem:[%s1 + $0x4b8] sm:$0xf]
  %v349 = vld [vmem:[%s1 + $0x4bc] sm:$0xf]
  %v350 = vld [vmem:[%s1 + $0x4c0] sm:$0xf]
  %v351 = vld [vmem:[%s1 + $0x4c4] sm:$0xf]
  %v352 = vld [vmem:[%s1 + $0x4c8] sm:$0xf]
  %v353 = vld [vmem:[%s1 + $0x4cc] sm:$0xf]
  %v354 = vld [vmem:[%s1 + $0x4d0] sm:$0xf]
  %v355 = vld [vmem:[%s1 + $0x4d4] sm:$0xf]
  %v356 = vld [vmem:[%s1 + $0x4d8] sm:$0xf]
  %v357 = vld [vmem:[%s1 + $0x4dc] sm:$0xf]
  %v358 = vld [vmem:[%s1 + $0x4e0] sm:$0xf]
  %v359 = vld [vmem:[%s1 + $0x4e4] sm:$0xf]
  %v360 = vld [vmem:[%s1 + $0x4e8] sm:$0xf]
  %v361 = vld [vmem:[%s1 + $0x4ec] sm:$0xf]
  %v362 = vld [vmem:[%s1 + $0x4f0] sm:$0xf]
  %v363 = vld [vmem:[%s1 + $0x4f4] sm:$0xf]
  %v364 = vld [vmem:[%s1 + $0x4f8] sm:$0xf]
  %v365 = vld [vmem:[%s1 + $0x4fc] sm:$0xf]
  %v366 = vld [vmem:[%s1 + $0x500] sm:$0xf]
  %v367 = vld [vmem:[%s1 + $0x504] sm:$0xf]
  %v368 = vld [vmem:[%s1 + $0x508] sm:$0xf]
  %v369 = vld [vmem:[%s1 + $0x50c] sm:$0xf]
  %v370 = vld [vmem:[%s1 + $0x510] sm:$0xf]
  %v371 = vld [vmem:[%s1 + $0x514] sm:$0xf]
  %v372 = vld [vmem:[%s1 + $0x518] sm:$0xf]
  %v373 = vld [vmem:[%s1 + $0x51c] sm:$0xf]
  %v374 = vld [vmem:[%s1 + $0x520] sm:$0xf]
  %v375 = vld [vmem:[%s1 + $0x524] sm:$0xf]
  %v376 = vld [vmem:[%s1 + $0x528] sm:$0xf]
  %v377 = vld [vmem:[%s1 + $0x52c] sm:$0xf]
  %v378 = vld [vmem:[%s1 + $0x530] sm:$0xf]
  %v379 = vld [vmem:[%s1 + $0x534] sm:$0xf]
  %v380 = vld [vmem:[%s1 + $0x538] sm:$0xf]
  %v381 = vld [vmem:[%s1 + $0x53c] sm:$0xf]
  %v382 = vld [vmem:[%s1 + $0x540] sm:$0xf]
  %v383 = vld [vmem:[%s1 + $0x544] sm:$0xf]
  %v384 = vld [vmem:[%s1 + $0x548] sm:$0xf]
  %v385 = vld [vmem:[%s1 + $0x54c] sm:$0xf]
  %v386 = vld [vmem:[%s1 + $0x550] sm:$0xf]
  %v387 = vld [vmem:[%s1 + $0x554] sm:$0xf]
  %v388 = vld [vmem:[%s1 + $0x558] sm:$0xf]
  %v389 = vld [vmem:[%s1 + $0x55c] sm:$0xf]
  %v390 = vld [vmem:[%s1 + $0x560] sm:$0xf]
  %v391 = vld [vmem:[%s1 + $0x564] sm:$0xf]
  %v392 = vld [vmem:[%s1 + $0x568] sm:$0xf]
  %v393 = vld [vmem:[%s1 + $0x56c] sm:$0xf]
  %v394 = vld [vmem:[%s1 + $0x570] sm:$0xf]
  %v395 = vld [vmem:[%s1 + $0x574] sm:$0xf]
  %v396 = vld [vmem:[%s1 + $0x578] sm:$0xf]
  %v397 = vld [vmem:[%s1 + $0x57c] sm:$0xf]
  %v398 = vld [vmem:[%s1 + $0x580] sm:$0xf]
  %v399 = vld [vmem:[%s1 + $0x584] sm:$0xf]
  %v400 = vld [vmem:[%s1 + $0x588] sm:$0xf]
  %v401 = vld [vmem:[%s1 + $0x58c] sm:$0xf]
  %v402 = vld [vmem:[%s1 + $0x590] sm:$0xf]
  %v403 = vld [vmem:[%s1 + $0x594] sm:$0xf]
  %v404 = vld [vmem:[%s1 + $0x598] sm:$0xf]
  %v405 = vld [vmem:[%s1 + $0x59c] sm:$0xf]
  %v406 = vld [vmem:[%s1 + $0x5a0] sm:$0xf]
  %v407 = vld [vmem:[%s1 + $0x5a4] sm:$0xf]
  %v408 = vld [vmem:[%s1 + $0x5a8] sm:$0xf]
  %v409 = vld [vmem:[%s1 + $0x5ac] sm:$0xf]
  %v410 = vld [vmem:[%s1 + $0x5b0] sm:$0xf]
  %v411 = vld [vmem:[%s1 + $0x5b4] sm:$0xf]
  %v412 = vld [vmem:[%s1 + $0x5b8] sm:$0xf]
  %v413 = vld [vmem:[%s1 + $0x5bc] sm:$0xf]
  %v414 = vld [vmem:[%s1 + $0x5c0] sm:$0xf]
  %v415 = vld [vmem:[%s1 + $0x5c4] sm:$0xf]
  %v416 = vld [vmem:[%s1 + $0x5c8] sm:$0xf]
  %v417 = vld [vmem:[%s1 + $0x5cc] sm:$0xf]
  %v418 = vld [vmem:[%s1 + $0x5d0] sm:$0xf]
  %v419 = vld [vmem:[%s1 + $0x5d4] sm:$0xf]
  %v420 = vld [vmem:[%s1 + $0x5d8] sm:$0xf]
  %v421 = vld [vmem:[%s1 + $0x5dc] sm:$0xf]
  %v422 = vld [vmem:[%s1 + $0x5e0] sm:$0xf]
  %v423 = vld [vmem:[%s1 + $0x5e4] sm:$0xf]
  %v424 = vld [vmem:[%s1 + $0x5e8] sm:$0xf]
  %v425 = vld [vmem:[%s1 + $0x5ec] sm:$0xf]
  %v426 = vld [vmem:[%s1 + $0x5f0] sm:$0xf]
  %v427 = vld [vmem:[%s1 + $0x5f4] sm:$0xf]
  %v428 = vld [vmem:[%s1 + $0x5f8] sm:$0xf]
  %v429 = vld [vmem:[%s1 + $0x5fc] sm:$0xf]
  %v430 = vld [vmem:[%s1 + $0x600] sm:$0xf]
  %v431 = vld [vmem:[%s1 + $0x604] sm:$0xf]
  %v432 = vld [vmem:[%s1 + $0x608] sm:$0xf]
  %v433 = vld [vmem:[%s1 + $0x60c] sm:$0xf]
  %v434 = vld [vmem:[%s1 + $0x610] sm:$0xf]
  %v435 = vld [vmem:[%s1 + $0x614] sm:$0xf]
  %v436 = vld [vmem:[%s1 + $0x618] sm:$0xf]
  %v437 = vld [vmem:[%s1 + $0x61c] sm:$0xf]
  %v438 = vld [vmem:[%s1 + $0x620] sm:$0xf]
  %v439 = vld [vmem:[%s1 + $0x624] sm:$0xf]
  %v440 = vld [vmem:[%s1 + $0x628] sm:$0xf]
  %v441 = vld [vmem:[%s1 + $0x62c] sm:$0xf]
  %v442 = vld [vmem:[%s1 + $0x630] sm:$0xf]
  %v443 = vld [vmem:[%s1 + $0x634] sm:$0xf]
  %v444 = vld [vmem:[%s1 + $0x638] sm:$0xf]
  %v445 = vld [vmem:[%s1 + $0x63c] sm:$0xf]
  %v446 = vld [vmem:[%s1 + $0x640] sm:$0xf]
  %v447 = vld [vmem:[%s1 + $0x644] sm:$0xf]
  %v448 = vld [vmem:[%s1 + $0x648] sm:$0xf]
  %v449 = vld [vmem:[%s1 + $0x64c] sm:$0xf]
  %v450 = vld [vmem:[%s1 + $0x650] sm:$0xf]
  %v451 = vld [vmem:[%s1 + $0x654] sm:$0xf]
  %v452 = vld [vmem:[%s1 + $0x658] sm:$0xf]
  %v453 = vld [vmem:[%s1 + $0x65c] sm:$0xf]
  %v454 = vld [vmem:[%s1 + $0x660] sm:$0xf]
  %v455 = vld [vmem:[%s1 + $0x664] sm:$0xf]
  %v456 = vld [vmem:[%s1 + $0x668] sm:$0xf]
  %v457 = vld [vmem:[%s1 + $0x66c] sm:$0xf]
  %v458 = vld [vmem:[%s1 + $0x670] sm:$0xf]
  %v459 = vld [vmem:[%s1 + $0x674] sm:$0xf]
  %v460 = vld [vmem:[%s1 + $0x678] sm:$0xf]
  %v461 = vld [vmem:[%s1 + $0x67c] sm:$0xf]
  %v462 = vld [vmem:[%s1 + $0x680] sm:$0xf]
  %v463 = vld [vmem:[%s1 + $0x684] sm:$0xf]
  %v464 = vld [vmem:[%s1 + $0x688] sm:$0xf]
  %v465 = vld [vmem:[%s1 + $0x68c] sm:$0xf]
  %v466 = vld [vmem:[%s1 + $0x690] sm:$0xf]
  %v467 = vld [vmem:[%s1 + $0x694] sm:$0xf]
  %v468 = vld [vmem:[%s1 + $0x698] sm:$0xf]
  %v469 = vld [vmem:[%s1 + $0x69c] sm:$0xf]
  %v470 = vld [vmem:[%s1 + $0x6a0] sm:$0xf]
  %v471 = vld [vmem:[%s1 + $0x6a4] sm:$0xf]
  %v472 = vld [vmem:[%s1 + $0x6a8] sm:$0xf]
  %v473 = vld [vmem:[%s1 + $0x6ac] sm:$0xf]
  %v474 = vld [vmem:[%s1 + $0x6b0] sm:$0xf]
  %v475 = vld [vmem:[%s1 + $0x6b4] sm:$0xf]
  %v476 = vld [vmem:[%s1 + $0x6b8] sm:$0xf]
  %v477 = vld [vmem:[%s1 + $0x6bc] sm:$0xf]
  %v478 = vld [vmem:[%s1 + $0x6c0] sm:$0xf]
  %v479 = vld [vmem:[%s1 + $0x6c4] sm:$0xf]
  %v480 = vld [vmem:[%s1 + $0x6c8] sm:$0xf]
  %v481 = vld [vmem:[%s1 + $0x6cc] sm:$0xf]
  %v482 = vld [vmem:[%s1 + $0x6d0] sm:$0xf]
  %v483 = vld [vmem:[%s1 + $0x6d4] sm:$0xf]
  %v484 = vld [vmem:[%s1 + $0x6d8] sm:$0xf]
  %v485 = vld [vmem:[%s1 + $0x6dc] sm:$0xf]
  %v486 = vld [vmem:[%s1 + $0x6e0] sm:$0xf]
  %v487 = vld [vmem:[%s1 + $0x6e4] sm:$0xf]
  %v488 = vld [vmem:[%s1 + $0x6e8] sm:$0xf]
  %v489 = vld [vmem:[%s1 + $0x6ec] sm:$0xf]
  %v490 = vld [vmem:[%s1 + $0x6f0] sm:$0xf]
  %v491 = vld [vmem:[%s1 + $0x6f4] sm:$0xf]
  %v492 = vld [vmem:[%s1 + $0x6f8] sm:$0xf]
  %v493 = vld [vmem:[%s1 + $0x6fc] sm:$0xf]
  %v494 = vld [vmem:[%s1 + $0x700] sm:$0xf]
  %v495 = vld [vmem:[%s1 + $0x704] sm:$0xf]
  %v496 = vld [vmem:[%s1 + $0x708] sm:$0xf]
  %v497 = vld [vmem:[%s1 + $0x70c] sm:$0xf]
  %v498 = vld [vmem:[%s1 + $0x710] sm:$0xf]
  %v499 = vld [vmem:[%s1 + $0x714] sm:$0xf]
  %v500 = vld [vmem:[%s1 + $0x718] sm:$0xf]
  %v501 = vld [vmem:[%s1 + $0x71c] sm:$0xf]
  %v502 = vld [vmem:[%s1 + $0x720] sm:$0xf]
  %v503 = vld [vmem:[%s1 + $0x724] sm:$0xf]
  %v504 = vld [vmem:[%s1 + $0x728] sm:$0xf]
  %v505 = vld [vmem:[%s1 + $0x72c] sm:$0xf]
  %v506 = vld [vmem:[%s1 + $0x730] sm:$0xf]
  %v507 = vld [vmem:[%s1 + $0x734] sm:$0xf]
  %v508 = vld [vmem:[%s1 + $0x738] sm:$0xf]
  %v509 = vld [vmem:[%s1 + $0x73c] sm:$0xf]
  %v510 = vld [vmem:[%s1 + $0x740] sm:$0xf]
  %v511 = vld [vmem:[%s1 + $0x744] sm:$0xf]
  %v512 = vld [vmem:[%s1 + $0x748] sm:$0xf]
  %v513 = vld [vmem:[%s1 + $0x74c] sm:$0xf]
  %v514 = vld [vmem:[%s1 + $0x750] sm:$0xf]
  %v515 = vld [vmem:[%s1 + $0x754] sm:$0xf]
  %v516 = vld [vmem:[%s1 + $0x758] sm:$0xf]
  %v517 = vld [vmem:[%s1 + $0x75c] sm:$0xf]
  %v518 = vld [vmem:[%s1 + $0x760] sm:$0xf]
  %v519 = vld [vmem:[%s1 + $0x764] sm:$0xf]
  %v520 = vld [vmem:[%s1 + $0x768] sm:$0xf]
  %v521 = vld [vmem:[%s1 + $0x76c] sm:$0xf]
  %v522 = vld [vmem:[%s1 + $0x770] sm:$0xf]
  %v523 = vld [vmem:[%s1 + $0x774] sm:$0xf]
  %v524 = vld [vmem:[%s1 + $0x778] sm:$0xf]
  %v525 = vld [vmem:[%s1 + $0x77c] sm:$0xf]
  %v526 = vld [vmem:[%s1 + $0x780] sm:$0xf]
  %v527 = vld [vmem:[%s1 + $0x784] sm:$0xf]
  %v528 = vld [vmem:[%s1 + $0x788] sm:$0xf]
  %v529 = vld [vmem:[%s1 + $0x78c] sm:$0xf]
  %v530 = vld [vmem:[%s1 + $0x790] sm:$0xf]
  %v531 = vld [vmem:[%s1 + $0x794] sm:$0xf]
  %v532 = vld [vmem:[%s1 + $0x798] sm:$0xf]
  %v533 = vld [vmem:[%s1 + $0x79c] sm:$0xf]
  %v534 = vld [vmem:[%s1 + $0x7a0] sm:$0xf]
  %v535 = vld [vmem:[%s1 + $0x7a4] sm:$0xf]
  %v536 = vld [vmem:[%s1 + $0x7a8] sm:$0xf]
  %v537 = vld [vmem:[%s1 + $0x7ac] sm:$0xf]
  %v538 = vld [vmem:[%s1 + $0x7b0] sm:$0xf]
  %v539 = vld [vmem:[%s1 + $0x7b4] sm:$0xf]
  %v540 = vld [vmem:[%s1 + $0x7b8] sm:$0xf]
  %v541 = vld [vmem:[%s1 + $0x7bc] sm:$0xf]
  %v542 = vld [vmem:[%s1 + $0x7c0] sm:$0xf]
  %v543 = vld [vmem:[%s1 + $0x7c4] sm:$0xf]
  %v544 = vld [vmem:[%s1 + $0x7c8] sm:$0xf]
  %v545 = vld [vmem:[%s1 + $0x7cc] sm:$0xf]
  %v546 = vld [vmem:[%s1 + $0x7d0] sm:$0xf]
  %v547 = vld [vmem:[%s1 + $0x7d4] sm:$0xf]
  %v548 = vld [vmem:[%s1 + $0x7d8] sm:$0xf]
  %v549 = vld [vmem:[%s1 + $0x7dc] sm:$0xf]
  %v550 = vld [vmem:[%s1 + $0x7e0] sm:$0xf]
  %v551 = vld [vmem:[%s1 + $0x7e4] sm:$0xf]
  %v552 = vld [vmem:[%s1 + $0x7e8] sm:$0xf]
  %v553 = vld [vmem:[%s1 + $0x7ec] sm:$0xf]
  %v554 = vld [vmem:[%s1 + $0x7f0] sm:$0xf]
  %v555 = vld [vmem:[%s1 + $0x7f4] sm:$0xf]
  %v556 = vld [vmem:[%s1 + $0x7f8] sm:$0xf]
  %v557 = vld [vmem:[%s1 + $0x7fc] sm:$0xf]
  %v558 = vld [vmem:[%s2] sm:$0x1]
  %v560 = vperm.slane %v558, 0
  %v594 = vunpack.c.l.b16 %v14
  %v595 = vunpack.c.h.b16 %v14
  %v596 = vunpack.c.l.b16 %v15
  %v597 = vunpack.c.h.b16 %v15
  %v598 = vunpack.c.l.b16 %v16
  %v599 = vunpack.c.h.b16 %v16
  %v600 = vunpack.c.l.b16 %v17
  %v601 = vunpack.c.h.b16 %v17
  %v602 = vunpack.c.l.b16 %v18
  %v603 = vunpack.c.h.b16 %v18
  %v604 = vunpack.c.l.b16 %v19
  %v605 = vunpack.c.h.b16 %v19
  %v606 = vunpack.c.l.b16 %v20
  %v607 = vunpack.c.h.b16 %v20
  %v608 = vunpack.c.l.b16 %v21
  %v609 = vunpack.c.h.b16 %v21
  %v610 = vunpack.c.l.b16 %v22
  %v611 = vunpack.c.h.b16 %v22
  %v612 = vunpack.c.l.b16 %v23
  %v613 = vunpack.c.h.b16 %v23
  %v614 = vunpack.c.l.b16 %v24
  %v615 = vunpack.c.h.b16 %v24
  %v616 = vunpack.c.l.b16 %v25
  %v617 = vunpack.c.h.b16 %v25
  %v618 = vunpack.c.l.b16 %v26
  %v619 = vunpack.c.h.b16 %v26
  %v620 = vunpack.c.l.b16 %v27
  %v621 = vunpack.c.h.b16 %v27
  %v622 = vunpack.c.l.b16 %v28
  %v623 = vunpack.c.h.b16 %v28
  %v624 = vunpack.c.l.b16 %v29
  %v625 = vunpack.c.h.b16 %v29
  %v626 = vunpack.c.l.b16 %v30
  %v627 = vunpack.c.h.b16 %v30
  %v628 = vunpack.c.l.b16 %v31
  %v629 = vunpack.c.h.b16 %v31
  %v630 = vunpack.c.l.b16 %v32
  %v631 = vunpack.c.h.b16 %v32
  %v632 = vunpack.c.l.b16 %v33
  %v633 = vunpack.c.h.b16 %v33
  %v634 = vunpack.c.l.b16 %v34
  %v635 = vunpack.c.h.b16 %v34
  %v636 = vunpack.c.l.b16 %v35
  %v637 = vunpack.c.h.b16 %v35
  %v638 = vunpack.c.l.b16 %v36
  %v639 = vunpack.c.h.b16 %v36
  %v640 = vunpack.c.l.b16 %v37
  %v641 = vunpack.c.h.b16 %v37
  %v642 = vunpack.c.l.b16 %v38
  %v643 = vunpack.c.h.b16 %v38
  %v644 = vunpack.c.l.b16 %v39
  %v645 = vunpack.c.h.b16 %v39
  %v646 = vunpack.c.l.b16 %v40
  %v647 = vunpack.c.h.b16 %v40
  %v648 = vunpack.c.l.b16 %v41
  %v649 = vunpack.c.h.b16 %v41
  %v650 = vunpack.c.l.b16 %v42
  %v651 = vunpack.c.h.b16 %v42
  %v652 = vunpack.c.l.b16 %v43
  %v653 = vunpack.c.h.b16 %v43
  %v654 = vunpack.c.l.b16 %v44
  %v655 = vunpack.c.h.b16 %v44
  %v656 = vunpack.c.l.b16 %v45
  %v657 = vunpack.c.h.b16 %v45
  %v658 = vpack.c.b16 %v626, %v594
  %v659 = vpack.c.b16 %v627, %v595
  %v660 = vpack.c.b16 %v628, %v596
  %v661 = vpack.c.b16 %v629, %v597
  %v662 = vpack.c.b16 %v630, %v598
  %v663 = vpack.c.b16 %v631, %v599
  %v664 = vpack.c.b16 %v632, %v600
  %v665 = vpack.c.b16 %v633, %v601
  %v666 = vpack.c.b16 %v634, %v602
  %v667 = vpack.c.b16 %v635, %v603
  %v668 = vpack.c.b16 %v636, %v604
  %v669 = vpack.c.b16 %v637, %v605
  %v670 = vpack.c.b16 %v638, %v606
  %v671 = vpack.c.b16 %v639, %v607
  %v672 = vpack.c.b16 %v640, %v608
  %v673 = vpack.c.b16 %v641, %v609
  %v674 = vpack.c.b16 %v642, %v610
  %v675 = vpack.c.b16 %v643, %v611
  %v676 = vpack.c.b16 %v644, %v612
  %v677 = vpack.c.b16 %v645, %v613
  %v678 = vpack.c.b16 %v646, %v614
  %v679 = vpack.c.b16 %v647, %v615
  %v680 = vpack.c.b16 %v648, %v616
  %v681 = vpack.c.b16 %v649, %v617
  %v682 = vpack.c.b16 %v650, %v618
  %v683 = vpack.c.b16 %v651, %v619
  %v684 = vpack.c.b16 %v652, %v620
  %v685 = vpack.c.b16 %v653, %v621
  %v686 = vpack.c.b16 %v654, %v622
  %v687 = vpack.c.b16 %v655, %v623
  %v688 = vpack.c.b16 %v656, %v624
  %v689 = vpack.c.b16 %v657, %v625
  %v1234 = vunpack.c.l.b16 %v46
  %v1235 = vunpack.c.l.b16 %v47
  %v1236 = vunpack.c.l.b16 %v48
  %v1237 = vunpack.c.l.b16 %v49
  %v1238 = vunpack.c.l.b16 %v50
  %v1239 = vunpack.c.l.b16 %v51
  %v1240 = vunpack.c.l.b16 %v52
  %v1241 = vunpack.c.l.b16 %v53
  %v1242 = vunpack.c.l.b16 %v54
  %v1243 = vunpack.c.l.b16 %v55
  %v1244 = vunpack.c.l.b16 %v56
  %v1245 = vunpack.c.l.b16 %v57
  %v1246 = vunpack.c.l.b16 %v58
  %v1247 = vunpack.c.l.b16 %v59
  %v1248 = vunpack.c.l.b16 %v60
  %v1249 = vunpack.c.l.b16 %v61
  %v1250 = vunpack.c.l.b16 %v62
  %v1251 = vunpack.c.l.b16 %v63
  %v1252 = vunpack.c.l.b16 %v64
  %v1253 = vunpack.c.l.b16 %v65
  %v1254 = vunpack.c.l.b16 %v66
  %v1255 = vunpack.c.l.b16 %v67
  %v1256 = vunpack.c.l.b16 %v68
  %v1257 = vunpack.c.l.b16 %v69
  %v1258 = vunpack.c.l.b16 %v70
  %v1259 = vunpack.c.l.b16 %v71
  %v1260 = vunpack.c.l.b16 %v72
  %v1261 = vunpack.c.l.b16 %v73
  %v1262 = vunpack.c.l.b16 %v74
  %v1263 = vunpack.c.l.b16 %v75
  %v1264 = vunpack.c.l.b16 %v76
  %v1265 = vunpack.c.l.b16 %v77
  %v1266 = vunpack.c.l.b16 %v78
  %v1267 = vunpack.c.l.b16 %v79
  %v1268 = vunpack.c.l.b16 %v80
  %v1269 = vunpack.c.l.b16 %v81
  %v1270 = vunpack.c.l.b16 %v82
  %v1271 = vunpack.c.l.b16 %v83
  %v1272 = vunpack.c.l.b16 %v84
  %v1273 = vunpack.c.l.b16 %v85
  %v1274 = vunpack.c.l.b16 %v86
  %v1275 = vunpack.c.l.b16 %v87
  %v1276 = vunpack.c.l.b16 %v88
  %v1277 = vunpack.c.l.b16 %v89
  %v1278 = vunpack.c.l.b16 %v90
  %v1279 = vunpack.c.l.b16 %v91
  %v1280 = vunpack.c.l.b16 %v92
  %v1281 = vunpack.c.l.b16 %v93
  %v1282 = vunpack.c.l.b16 %v94
  %v1283 = vunpack.c.l.b16 %v95
  %v1284 = vunpack.c.l.b16 %v96
  %v1285 = vunpack.c.l.b16 %v97
  %v1286 = vunpack.c.l.b16 %v98
  %v1287 = vunpack.c.l.b16 %v99
  %v1288 = vunpack.c.l.b16 %v100
  %v1289 = vunpack.c.l.b16 %v101
  %v1290 = vunpack.c.l.b16 %v102
  %v1291 = vunpack.c.l.b16 %v103
  %v1292 = vunpack.c.l.b16 %v104
  %v1293 = vunpack.c.l.b16 %v105
  %v1294 = vunpack.c.l.b16 %v106
  %v1295 = vunpack.c.l.b16 %v107
  %v1296 = vunpack.c.l.b16 %v108
  %v1297 = vunpack.c.l.b16 %v109
  %v1298 = vunpack.c.l.b16 %v110
  %v1299 = vunpack.c.l.b16 %v111
  %v1300 = vunpack.c.l.b16 %v112
  %v1301 = vunpack.c.l.b16 %v113
  %v1302 = vunpack.c.l.b16 %v114
  %v1303 = vunpack.c.l.b16 %v115
  %v1304 = vunpack.c.l.b16 %v116
  %v1305 = vunpack.c.l.b16 %v117
  %v1306 = vunpack.c.l.b16 %v118
  %v1307 = vunpack.c.l.b16 %v119
  %v1308 = vunpack.c.l.b16 %v120
  %v1309 = vunpack.c.l.b16 %v121
  %v1310 = vunpack.c.l.b16 %v122
  %v1311 = vunpack.c.l.b16 %v123
  %v1312 = vunpack.c.l.b16 %v124
  %v1313 = vunpack.c.l.b16 %v125
  %v1314 = vunpack.c.l.b16 %v126
  %v1315 = vunpack.c.l.b16 %v127
  %v1316 = vunpack.c.l.b16 %v128
  %v1317 = vunpack.c.l.b16 %v129
  %v1318 = vunpack.c.l.b16 %v130
  %v1319 = vunpack.c.l.b16 %v131
  %v1320 = vunpack.c.l.b16 %v132
  %v1321 = vunpack.c.l.b16 %v133
  %v1322 = vunpack.c.l.b16 %v134
  %v1323 = vunpack.c.l.b16 %v135
  %v1324 = vunpack.c.l.b16 %v136
  %v1325 = vunpack.c.l.b16 %v137
  %v1326 = vunpack.c.l.b16 %v138
  %v1327 = vunpack.c.l.b16 %v139
  %v1328 = vunpack.c.l.b16 %v140
  %v1329 = vunpack.c.l.b16 %v141
  %v1330 = vunpack.c.l.b16 %v142
  %v1331 = vunpack.c.l.b16 %v143
  %v1332 = vunpack.c.l.b16 %v144
  %v1333 = vunpack.c.l.b16 %v145
  %v1334 = vunpack.c.l.b16 %v146
  %v1335 = vunpack.c.l.b16 %v147
  %v1336 = vunpack.c.l.b16 %v148
  %v1337 = vunpack.c.l.b16 %v149
  %v1338 = vunpack.c.l.b16 %v150
  %v1339 = vunpack.c.l.b16 %v151
  %v1340 = vunpack.c.l.b16 %v152
  %v1341 = vunpack.c.l.b16 %v153
  %v1342 = vunpack.c.l.b16 %v154
  %v1343 = vunpack.c.l.b16 %v155
  %v1344 = vunpack.c.l.b16 %v156
  %v1345 = vunpack.c.l.b16 %v157
  %v1346 = vunpack.c.l.b16 %v158
  %v1347 = vunpack.c.l.b16 %v159
  %v1348 = vunpack.c.l.b16 %v160
  %v1349 = vunpack.c.l.b16 %v161
  %v1350 = vunpack.c.l.b16 %v162
  %v1351 = vunpack.c.l.b16 %v163
  %v1352 = vunpack.c.l.b16 %v164
  %v1353 = vunpack.c.l.b16 %v165
  %v1354 = vunpack.c.l.b16 %v166
  %v1355 = vunpack.c.l.b16 %v167
  %v1356 = vunpack.c.l.b16 %v168
  %v1357 = vunpack.c.l.b16 %v169
  %v1358 = vunpack.c.l.b16 %v170
  %v1359 = vunpack.c.l.b16 %v171
  %v1360 = vunpack.c.l.b16 %v172
  %v1361 = vunpack.c.l.b16 %v173
  %v1362 = vunpack.c.l.b16 %v174
  %v1363 = vunpack.c.l.b16 %v175
  %v1364 = vunpack.c.l.b16 %v176
  %v1365 = vunpack.c.l.b16 %v177
  %v1366 = vunpack.c.l.b16 %v178
  %v1367 = vunpack.c.l.b16 %v179
  %v1368 = vunpack.c.l.b16 %v180
  %v1369 = vunpack.c.l.b16 %v181
  %v1370 = vunpack.c.l.b16 %v182
  %v1371 = vunpack.c.l.b16 %v183
  %v1372 = vunpack.c.l.b16 %v184
  %v1373 = vunpack.c.l.b16 %v185
  %v1374 = vunpack.c.l.b16 %v186
  %v1375 = vunpack.c.l.b16 %v187
  %v1376 = vunpack.c.l.b16 %v188
  %v1377 = vunpack.c.l.b16 %v189
  %v1378 = vunpack.c.l.b16 %v190
  %v1379 = vunpack.c.l.b16 %v191
  %v1380 = vunpack.c.l.b16 %v192
  %v1381 = vunpack.c.l.b16 %v193
  %v1382 = vunpack.c.l.b16 %v194
  %v1383 = vunpack.c.l.b16 %v195
  %v1384 = vunpack.c.l.b16 %v196
  %v1385 = vunpack.c.l.b16 %v197
  %v1386 = vunpack.c.l.b16 %v198
  %v1387 = vunpack.c.l.b16 %v199
  %v1388 = vunpack.c.l.b16 %v200
  %v1389 = vunpack.c.l.b16 %v201
  %v1390 = vunpack.c.l.b16 %v202
  %v1391 = vunpack.c.l.b16 %v203
  %v1392 = vunpack.c.l.b16 %v204
  %v1393 = vunpack.c.l.b16 %v205
  %v1394 = vunpack.c.l.b16 %v206
  %v1395 = vunpack.c.l.b16 %v207
  %v1396 = vunpack.c.l.b16 %v208
  %v1397 = vunpack.c.l.b16 %v209
  %v1398 = vunpack.c.l.b16 %v210
  %v1399 = vunpack.c.l.b16 %v211
  %v1400 = vunpack.c.l.b16 %v212
  %v1401 = vunpack.c.l.b16 %v213
  %v1402 = vunpack.c.l.b16 %v214
  %v1403 = vunpack.c.l.b16 %v215
  %v1404 = vunpack.c.l.b16 %v216
  %v1405 = vunpack.c.l.b16 %v217
  %v1406 = vunpack.c.l.b16 %v218
  %v1407 = vunpack.c.l.b16 %v219
  %v1408 = vunpack.c.l.b16 %v220
  %v1409 = vunpack.c.l.b16 %v221
  %v1410 = vunpack.c.l.b16 %v222
  %v1411 = vunpack.c.l.b16 %v223
  %v1412 = vunpack.c.l.b16 %v224
  %v1413 = vunpack.c.l.b16 %v225
  %v1414 = vunpack.c.l.b16 %v226
  %v1415 = vunpack.c.l.b16 %v227
  %v1416 = vunpack.c.l.b16 %v228
  %v1417 = vunpack.c.l.b16 %v229
  %v1418 = vunpack.c.l.b16 %v230
  %v1419 = vunpack.c.l.b16 %v231
  %v1420 = vunpack.c.l.b16 %v232
  %v1421 = vunpack.c.l.b16 %v233
  %v1422 = vunpack.c.l.b16 %v234
  %v1423 = vunpack.c.l.b16 %v235
  %v1424 = vunpack.c.l.b16 %v236
  %v1425 = vunpack.c.l.b16 %v237
  %v1426 = vunpack.c.l.b16 %v238
  %v1427 = vunpack.c.l.b16 %v239
  %v1428 = vunpack.c.l.b16 %v240
  %v1429 = vunpack.c.l.b16 %v241
  %v1430 = vunpack.c.l.b16 %v242
  %v1431 = vunpack.c.l.b16 %v243
  %v1432 = vunpack.c.l.b16 %v244
  %v1433 = vunpack.c.l.b16 %v245
  %v1434 = vunpack.c.l.b16 %v246
  %v1435 = vunpack.c.l.b16 %v247
  %v1436 = vunpack.c.l.b16 %v248
  %v1437 = vunpack.c.l.b16 %v249
  %v1438 = vunpack.c.l.b16 %v250
  %v1439 = vunpack.c.l.b16 %v251
  %v1440 = vunpack.c.l.b16 %v252
  %v1441 = vunpack.c.l.b16 %v253
  %v1442 = vunpack.c.l.b16 %v254
  %v1443 = vunpack.c.l.b16 %v255
  %v1444 = vunpack.c.l.b16 %v256
  %v1445 = vunpack.c.l.b16 %v257
  %v1446 = vunpack.c.l.b16 %v258
  %v1447 = vunpack.c.l.b16 %v259
  %v1448 = vunpack.c.l.b16 %v260
  %v1449 = vunpack.c.l.b16 %v261
  %v1450 = vunpack.c.l.b16 %v262
  %v1451 = vunpack.c.l.b16 %v263
  %v1452 = vunpack.c.l.b16 %v264
  %v1453 = vunpack.c.l.b16 %v265
  %v1454 = vunpack.c.l.b16 %v266
  %v1455 = vunpack.c.l.b16 %v267
  %v1456 = vunpack.c.l.b16 %v268
  %v1457 = vunpack.c.l.b16 %v269
  %v1458 = vunpack.c.l.b16 %v270
  %v1459 = vunpack.c.l.b16 %v271
  %v1460 = vunpack.c.l.b16 %v272
  %v1461 = vunpack.c.l.b16 %v273
  %v1462 = vunpack.c.l.b16 %v274
  %v1463 = vunpack.c.l.b16 %v275
  %v1464 = vunpack.c.l.b16 %v276
  %v1465 = vunpack.c.l.b16 %v277
  %v1466 = vunpack.c.l.b16 %v278
  %v1467 = vunpack.c.l.b16 %v279
  %v1468 = vunpack.c.l.b16 %v280
  %v1469 = vunpack.c.l.b16 %v281
  %v1470 = vunpack.c.l.b16 %v282
  %v1471 = vunpack.c.l.b16 %v283
  %v1472 = vunpack.c.l.b16 %v284
  %v1473 = vunpack.c.l.b16 %v285
  %v1474 = vunpack.c.l.b16 %v286
  %v1475 = vunpack.c.l.b16 %v287
  %v1476 = vunpack.c.l.b16 %v288
  %v1477 = vunpack.c.l.b16 %v289
  %v1478 = vunpack.c.l.b16 %v290
  %v1479 = vunpack.c.l.b16 %v291
  %v1480 = vunpack.c.l.b16 %v292
  %v1481 = vunpack.c.l.b16 %v293
  %v1482 = vunpack.c.l.b16 %v294
  %v1483 = vunpack.c.l.b16 %v295
  %v1484 = vunpack.c.l.b16 %v296
  %v1485 = vunpack.c.l.b16 %v297
  %v1486 = vunpack.c.l.b16 %v298
  %v1487 = vunpack.c.l.b16 %v299
  %v1488 = vunpack.c.l.b16 %v300
  %v1489 = vunpack.c.l.b16 %v301
  %v1490 = vunpack.c.l.b16 %v302
  %v1491 = vunpack.c.l.b16 %v303
  %v1492 = vunpack.c.l.b16 %v304
  %v1493 = vunpack.c.l.b16 %v305
  %v1494 = vunpack.c.l.b16 %v306
  %v1495 = vunpack.c.l.b16 %v307
  %v1496 = vunpack.c.l.b16 %v308
  %v1497 = vunpack.c.l.b16 %v309
  %v1498 = vunpack.c.l.b16 %v310
  %v1499 = vunpack.c.l.b16 %v311
  %v1500 = vunpack.c.l.b16 %v312
  %v1501 = vunpack.c.l.b16 %v313
  %v1502 = vunpack.c.l.b16 %v314
  %v1503 = vunpack.c.l.b16 %v315
  %v1504 = vunpack.c.l.b16 %v316
  %v1505 = vunpack.c.l.b16 %v317
  %v1506 = vunpack.c.l.b16 %v318
  %v1507 = vunpack.c.l.b16 %v319
  %v1508 = vunpack.c.l.b16 %v320
  %v1509 = vunpack.c.l.b16 %v321
  %v1510 = vunpack.c.l.b16 %v322
  %v1511 = vunpack.c.l.b16 %v323
  %v1512 = vunpack.c.l.b16 %v324
  %v1513 = vunpack.c.l.b16 %v325
  %v1514 = vunpack.c.l.b16 %v326
  %v1515 = vunpack.c.l.b16 %v327
  %v1516 = vunpack.c.l.b16 %v328
  %v1517 = vunpack.c.l.b16 %v329
  %v1518 = vunpack.c.l.b16 %v330
  %v1519 = vunpack.c.l.b16 %v331
  %v1520 = vunpack.c.l.b16 %v332
  %v1521 = vunpack.c.l.b16 %v333
  %v1522 = vunpack.c.l.b16 %v334
  %v1523 = vunpack.c.l.b16 %v335
  %v1524 = vunpack.c.l.b16 %v336
  %v1525 = vunpack.c.l.b16 %v337
  %v1526 = vunpack.c.l.b16 %v338
  %v1527 = vunpack.c.l.b16 %v339
  %v1528 = vunpack.c.l.b16 %v340
  %v1529 = vunpack.c.l.b16 %v341
  %v1530 = vunpack.c.l.b16 %v342
  %v1531 = vunpack.c.l.b16 %v343
  %v1532 = vunpack.c.l.b16 %v344
  %v1533 = vunpack.c.l.b16 %v345
  %v1534 = vunpack.c.l.b16 %v346
  %v1535 = vunpack.c.l.b16 %v347
  %v1536 = vunpack.c.l.b16 %v348
  %v1537 = vunpack.c.l.b16 %v349
  %v1538 = vunpack.c.l.b16 %v350
  %v1539 = vunpack.c.l.b16 %v351
  %v1540 = vunpack.c.l.b16 %v352
  %v1541 = vunpack.c.l.b16 %v353
  %v1542 = vunpack.c.l.b16 %v354
  %v1543 = vunpack.c.l.b16 %v355
  %v1544 = vunpack.c.l.b16 %v356
  %v1545 = vunpack.c.l.b16 %v357
  %v1546 = vunpack.c.l.b16 %v358
  %v1547 = vunpack.c.l.b16 %v359
  %v1548 = vunpack.c.l.b16 %v360
  %v1549 = vunpack.c.l.b16 %v361
  %v1550 = vunpack.c.l.b16 %v362
  %v1551 = vunpack.c.l.b16 %v363
  %v1552 = vunpack.c.l.b16 %v364
  %v1553 = vunpack.c.l.b16 %v365
  %v1554 = vunpack.c.l.b16 %v366
  %v1555 = vunpack.c.l.b16 %v367
  %v1556 = vunpack.c.l.b16 %v368
  %v1557 = vunpack.c.l.b16 %v369
  %v1558 = vunpack.c.l.b16 %v370
  %v1559 = vunpack.c.l.b16 %v371
  %v1560 = vunpack.c.l.b16 %v372
  %v1561 = vunpack.c.l.b16 %v373
  %v1562 = vunpack.c.l.b16 %v374
  %v1563 = vunpack.c.l.b16 %v375
  %v1564 = vunpack.c.l.b16 %v376
  %v1565 = vunpack.c.l.b16 %v377
  %v1566 = vunpack.c.l.b16 %v378
  %v1567 = vunpack.c.l.b16 %v379
  %v1568 = vunpack.c.l.b16 %v380
  %v1569 = vunpack.c.l.b16 %v381
  %v1570 = vunpack.c.l.b16 %v382
  %v1571 = vunpack.c.l.b16 %v383
  %v1572 = vunpack.c.l.b16 %v384
  %v1573 = vunpack.c.l.b16 %v385
  %v1574 = vunpack.c.l.b16 %v386
  %v1575 = vunpack.c.l.b16 %v387
  %v1576 = vunpack.c.l.b16 %v388
  %v1577 = vunpack.c.l.b16 %v389
  %v1578 = vunpack.c.l.b16 %v390
  %v1579 = vunpack.c.l.b16 %v391
  %v1580 = vunpack.c.l.b16 %v392
  %v1581 = vunpack.c.l.b16 %v393
  %v1582 = vunpack.c.l.b16 %v394
  %v1583 = vunpack.c.l.b16 %v395
  %v1584 = vunpack.c.l.b16 %v396
  %v1585 = vunpack.c.l.b16 %v397
  %v1586 = vunpack.c.l.b16 %v398
  %v1587 = vunpack.c.l.b16 %v399
  %v1588 = vunpack.c.l.b16 %v400
  %v1589 = vunpack.c.l.b16 %v401
  %v1590 = vunpack.c.l.b16 %v402
  %v1591 = vunpack.c.l.b16 %v403
  %v1592 = vunpack.c.l.b16 %v404
  %v1593 = vunpack.c.l.b16 %v405
  %v1594 = vunpack.c.l.b16 %v406
  %v1595 = vunpack.c.l.b16 %v407
  %v1596 = vunpack.c.l.b16 %v408
  %v1597 = vunpack.c.l.b16 %v409
  %v1598 = vunpack.c.l.b16 %v410
  %v1599 = vunpack.c.l.b16 %v411
  %v1600 = vunpack.c.l.b16 %v412
  %v1601 = vunpack.c.l.b16 %v413
  %v1602 = vunpack.c.l.b16 %v414
  %v1603 = vunpack.c.l.b16 %v415
  %v1604 = vunpack.c.l.b16 %v416
  %v1605 = vunpack.c.l.b16 %v417
  %v1606 = vunpack.c.l.b16 %v418
  %v1607 = vunpack.c.l.b16 %v419
  %v1608 = vunpack.c.l.b16 %v420
  %v1609 = vunpack.c.l.b16 %v421
  %v1610 = vunpack.c.l.b16 %v422
  %v1611 = vunpack.c.l.b16 %v423
  %v1612 = vunpack.c.l.b16 %v424
  %v1613 = vunpack.c.l.b16 %v425
  %v1614 = vunpack.c.l.b16 %v426
  %v1615 = vunpack.c.l.b16 %v427
  %v1616 = vunpack.c.l.b16 %v428
  %v1617 = vunpack.c.l.b16 %v429
  %v1618 = vunpack.c.l.b16 %v430
  %v1619 = vunpack.c.l.b16 %v431
  %v1620 = vunpack.c.l.b16 %v432
  %v1621 = vunpack.c.l.b16 %v433
  %v1622 = vunpack.c.l.b16 %v434
  %v1623 = vunpack.c.l.b16 %v435
  %v1624 = vunpack.c.l.b16 %v436
  %v1625 = vunpack.c.l.b16 %v437
  %v1626 = vunpack.c.l.b16 %v438
  %v1627 = vunpack.c.l.b16 %v439
  %v1628 = vunpack.c.l.b16 %v440
  %v1629 = vunpack.c.l.b16 %v441
  %v1630 = vunpack.c.l.b16 %v442
  %v1631 = vunpack.c.l.b16 %v443
  %v1632 = vunpack.c.l.b16 %v444
  %v1633 = vunpack.c.l.b16 %v445
  %v1634 = vunpack.c.l.b16 %v446
  %v1635 = vunpack.c.l.b16 %v447
  %v1636 = vunpack.c.l.b16 %v448
  %v1637 = vunpack.c.l.b16 %v449
  %v1638 = vunpack.c.l.b16 %v450
  %v1639 = vunpack.c.l.b16 %v451
  %v1640 = vunpack.c.l.b16 %v452
  %v1641 = vunpack.c.l.b16 %v453
  %v1642 = vunpack.c.l.b16 %v454
  %v1643 = vunpack.c.l.b16 %v455
  %v1644 = vunpack.c.l.b16 %v456
  %v1645 = vunpack.c.l.b16 %v457
  %v1646 = vunpack.c.l.b16 %v458
  %v1647 = vunpack.c.l.b16 %v459
  %v1648 = vunpack.c.l.b16 %v460
  %v1649 = vunpack.c.l.b16 %v461
  %v1650 = vunpack.c.l.b16 %v462
  %v1651 = vunpack.c.l.b16 %v463
  %v1652 = vunpack.c.l.b16 %v464
  %v1653 = vunpack.c.l.b16 %v465
  %v1654 = vunpack.c.l.b16 %v466
  %v1655 = vunpack.c.l.b16 %v467
  %v1656 = vunpack.c.l.b16 %v468
  %v1657 = vunpack.c.l.b16 %v469
  %v1658 = vunpack.c.l.b16 %v470
  %v1659 = vunpack.c.l.b16 %v471
  %v1660 = vunpack.c.l.b16 %v472
  %v1661 = vunpack.c.l.b16 %v473
  %v1662 = vunpack.c.l.b16 %v474
  %v1663 = vunpack.c.l.b16 %v475
  %v1664 = vunpack.c.l.b16 %v476
  %v1665 = vunpack.c.l.b16 %v477
  %v1666 = vunpack.c.l.b16 %v478
  %v1667 = vunpack.c.l.b16 %v479
  %v1668 = vunpack.c.l.b16 %v480
  %v1669 = vunpack.c.l.b16 %v481
  %v1670 = vunpack.c.l.b16 %v482
  %v1671 = vunpack.c.l.b16 %v483
  %v1672 = vunpack.c.l.b16 %v484
  %v1673 = vunpack.c.l.b16 %v485
  %v1674 = vunpack.c.l.b16 %v486
  %v1675 = vunpack.c.l.b16 %v487
  %v1676 = vunpack.c.l.b16 %v488
  %v1677 = vunpack.c.l.b16 %v489
  %v1678 = vunpack.c.l.b16 %v490
  %v1679 = vunpack.c.l.b16 %v491
  %v1680 = vunpack.c.l.b16 %v492
  %v1681 = vunpack.c.l.b16 %v493
  %v1682 = vunpack.c.l.b16 %v494
  %v1683 = vunpack.c.l.b16 %v495
  %v1684 = vunpack.c.l.b16 %v496
  %v1685 = vunpack.c.l.b16 %v497
  %v1686 = vunpack.c.l.b16 %v498
  %v1687 = vunpack.c.l.b16 %v499
  %v1688 = vunpack.c.l.b16 %v500
  %v1689 = vunpack.c.l.b16 %v501
  %v1690 = vunpack.c.l.b16 %v502
  %v1691 = vunpack.c.l.b16 %v503
  %v1692 = vunpack.c.l.b16 %v504
  %v1693 = vunpack.c.l.b16 %v505
  %v1694 = vunpack.c.l.b16 %v506
  %v1695 = vunpack.c.l.b16 %v507
  %v1696 = vunpack.c.l.b16 %v508
  %v1697 = vunpack.c.l.b16 %v509
  %v1698 = vunpack.c.l.b16 %v510
  %v1699 = vunpack.c.l.b16 %v511
  %v1700 = vunpack.c.l.b16 %v512
  %v1701 = vunpack.c.l.b16 %v513
  %v1702 = vunpack.c.l.b16 %v514
  %v1703 = vunpack.c.l.b16 %v515
  %v1704 = vunpack.c.l.b16 %v516
  %v1705 = vunpack.c.l.b16 %v517
  %v1706 = vunpack.c.l.b16 %v518
  %v1707 = vunpack.c.l.b16 %v519
  %v1708 = vunpack.c.l.b16 %v520
  %v1709 = vunpack.c.l.b16 %v521
  %v1710 = vunpack.c.l.b16 %v522
  %v1711 = vunpack.c.l.b16 %v523
  %v1712 = vunpack.c.l.b16 %v524
  %v1713 = vunpack.c.l.b16 %v525
  %v1714 = vunpack.c.l.b16 %v526
  %v1715 = vunpack.c.l.b16 %v527
  %v1716 = vunpack.c.l.b16 %v528
  %v1717 = vunpack.c.l.b16 %v529
  %v1718 = vunpack.c.l.b16 %v530
  %v1719 = vunpack.c.l.b16 %v531
  %v1720 = vunpack.c.l.b16 %v532
  %v1721 = vunpack.c.l.b16 %v533
  %v1722 = vunpack.c.l.b16 %v534
  %v1723 = vunpack.c.l.b16 %v535
  %v1724 = vunpack.c.l.b16 %v536
  %v1725 = vunpack.c.l.b16 %v537
  %v1726 = vunpack.c.l.b16 %v538
  %v1727 = vunpack.c.l.b16 %v539
  %v1728 = vunpack.c.l.b16 %v540
  %v1729 = vunpack.c.l.b16 %v541
  %v1730 = vunpack.c.l.b16 %v542
  %v1731 = vunpack.c.l.b16 %v543
  %v1732 = vunpack.c.l.b16 %v544
  %v1733 = vunpack.c.l.b16 %v545
  %v1734 = vunpack.c.l.b16 %v546
  %v1735 = vunpack.c.l.b16 %v547
  %v1736 = vunpack.c.l.b16 %v548
  %v1737 = vunpack.c.l.b16 %v549
  %v1738 = vunpack.c.l.b16 %v550
  %v1739 = vunpack.c.l.b16 %v551
  %v1740 = vunpack.c.l.b16 %v552
  %v1741 = vunpack.c.l.b16 %v553
  %v1742 = vunpack.c.l.b16 %v554
  %v1743 = vunpack.c.l.b16 %v555
  %v1744 = vunpack.c.l.b16 %v556
  %v1745 = vunpack.c.l.b16 %v557
  %v1746 = vpack.c.b16 %v1235, %v1234
  %v1747 = vpack.c.b16 %v1237, %v1236
  %v1748 = vpack.c.b16 %v1239, %v1238
  %v1749 = vpack.c.b16 %v1241, %v1240
  %v1750 = vpack.c.b16 %v1243, %v1242
  %v1751 = vpack.c.b16 %v1245, %v1244
  %v1752 = vpack.c.b16 %v1247, %v1246
  %v1753 = vpack.c.b16 %v1249, %v1248
  %v1754 = vpack.c.b16 %v1251, %v1250
  %v1755 = vpack.c.b16 %v1253, %v1252
  %v1756 = vpack.c.b16 %v1255, %v1254
  %v1757 = vpack.c.b16 %v1257, %v1256
  %v1758 = vpack.c.b16 %v1259, %v1258
  %v1759 = vpack.c.b16 %v1261, %v1260
  %v1760 = vpack.c.b16 %v1263, %v1262
  %v1761 = vpack.c.b16 %v1265, %v1264
  %v1762 = vpack.c.b16 %v1267, %v1266
  %v1763 = vpack.c.b16 %v1269, %v1268
  %v1764 = vpack.c.b16 %v1271, %v1270
  %v1765 = vpack.c.b16 %v1273, %v1272
  %v1766 = vpack.c.b16 %v1275, %v1274
  %v1767 = vpack.c.b16 %v1277, %v1276
  %v1768 = vpack.c.b16 %v1279, %v1278
  %v1769 = vpack.c.b16 %v1281, %v1280
  %v1770 = vpack.c.b16 %v1283, %v1282
  %v1771 = vpack.c.b16 %v1285, %v1284
  %v1772 = vpack.c.b16 %v1287, %v1286
  %v1773 = vpack.c.b16 %v1289, %v1288
  %v1774 = vpack.c.b16 %v1291, %v1290
  %v1775 = vpack.c.b16 %v1293, %v1292
  %v1776 = vpack.c.b16 %v1295, %v1294
  %v1777 = vpack.c.b16 %v1297, %v1296
  %v1778 = vpack.c.b16 %v1299, %v1298
  %v1779 = vpack.c.b16 %v1301, %v1300
  %v1780 = vpack.c.b16 %v1303, %v1302
  %v1781 = vpack.c.b16 %v1305, %v1304
  %v1782 = vpack.c.b16 %v1307, %v1306
  %v1783 = vpack.c.b16 %v1309, %v1308
  %v1784 = vpack.c.b16 %v1311, %v1310
  %v1785 = vpack.c.b16 %v1313, %v1312
  %v1786 = vpack.c.b16 %v1315, %v1314
  %v1787 = vpack.c.b16 %v1317, %v1316
  %v1788 = vpack.c.b16 %v1319, %v1318
  %v1789 = vpack.c.b16 %v1321, %v1320
  %v1790 = vpack.c.b16 %v1323, %v1322
  %v1791 = vpack.c.b16 %v1325, %v1324
  %v1792 = vpack.c.b16 %v1327, %v1326
  %v1793 = vpack.c.b16 %v1329, %v1328
  %v1794 = vpack.c.b16 %v1331, %v1330
  %v1795 = vpack.c.b16 %v1333, %v1332
  %v1796 = vpack.c.b16 %v1335, %v1334
  %v1797 = vpack.c.b16 %v1337, %v1336
  %v1798 = vpack.c.b16 %v1339, %v1338
  %v1799 = vpack.c.b16 %v1341, %v1340
  %v1800 = vpack.c.b16 %v1343, %v1342
  %v1801 = vpack.c.b16 %v1345, %v1344
  %v1802 = vpack.c.b16 %v1347, %v1346
  %v1803 = vpack.c.b16 %v1349, %v1348
  %v1804 = vpack.c.b16 %v1351, %v1350
  %v1805 = vpack.c.b16 %v1353, %v1352
  %v1806 = vpack.c.b16 %v1355, %v1354
  %v1807 = vpack.c.b16 %v1357, %v1356
  %v1808 = vpack.c.b16 %v1359, %v1358
  %v1809 = vpack.c.b16 %v1361, %v1360
  %v1810 = vpack.c.b16 %v1363, %v1362
  %v1811 = vpack.c.b16 %v1365, %v1364
  %v1812 = vpack.c.b16 %v1367, %v1366
  %v1813 = vpack.c.b16 %v1369, %v1368
  %v1814 = vpack.c.b16 %v1371, %v1370
  %v1815 = vpack.c.b16 %v1373, %v1372
  %v1816 = vpack.c.b16 %v1375, %v1374
  %v1817 = vpack.c.b16 %v1377, %v1376
  %v1818 = vpack.c.b16 %v1379, %v1378
  %v1819 = vpack.c.b16 %v1381, %v1380
  %v1820 = vpack.c.b16 %v1383, %v1382
  %v1821 = vpack.c.b16 %v1385, %v1384
  %v1822 = vpack.c.b16 %v1387, %v1386
  %v1823 = vpack.c.b16 %v1389, %v1388
  %v1824 = vpack.c.b16 %v1391, %v1390
  %v1825 = vpack.c.b16 %v1393, %v1392
  %v1826 = vpack.c.b16 %v1395, %v1394
  %v1827 = vpack.c.b16 %v1397, %v1396
  %v1828 = vpack.c.b16 %v1399, %v1398
  %v1829 = vpack.c.b16 %v1401, %v1400
  %v1830 = vpack.c.b16 %v1403, %v1402
  %v1831 = vpack.c.b16 %v1405, %v1404
  %v1832 = vpack.c.b16 %v1407, %v1406
  %v1833 = vpack.c.b16 %v1409, %v1408
  %v1834 = vpack.c.b16 %v1411, %v1410
  %v1835 = vpack.c.b16 %v1413, %v1412
  %v1836 = vpack.c.b16 %v1415, %v1414
  %v1837 = vpack.c.b16 %v1417, %v1416
  %v1838 = vpack.c.b16 %v1419, %v1418
  %v1839 = vpack.c.b16 %v1421, %v1420
  %v1840 = vpack.c.b16 %v1423, %v1422
  %v1841 = vpack.c.b16 %v1425, %v1424
  %v1842 = vpack.c.b16 %v1427, %v1426
  %v1843 = vpack.c.b16 %v1429, %v1428
  %v1844 = vpack.c.b16 %v1431, %v1430
  %v1845 = vpack.c.b16 %v1433, %v1432
  %v1846 = vpack.c.b16 %v1435, %v1434
  %v1847 = vpack.c.b16 %v1437, %v1436
  %v1848 = vpack.c.b16 %v1439, %v1438
  %v1849 = vpack.c.b16 %v1441, %v1440
  %v1850 = vpack.c.b16 %v1443, %v1442
  %v1851 = vpack.c.b16 %v1445, %v1444
  %v1852 = vpack.c.b16 %v1447, %v1446
  %v1853 = vpack.c.b16 %v1449, %v1448
  %v1854 = vpack.c.b16 %v1451, %v1450
  %v1855 = vpack.c.b16 %v1453, %v1452
  %v1856 = vpack.c.b16 %v1455, %v1454
  %v1857 = vpack.c.b16 %v1457, %v1456
  %v1858 = vpack.c.b16 %v1459, %v1458
  %v1859 = vpack.c.b16 %v1461, %v1460
  %v1860 = vpack.c.b16 %v1463, %v1462
  %v1861 = vpack.c.b16 %v1465, %v1464
  %v1862 = vpack.c.b16 %v1467, %v1466
  %v1863 = vpack.c.b16 %v1469, %v1468
  %v1864 = vpack.c.b16 %v1471, %v1470
  %v1865 = vpack.c.b16 %v1473, %v1472
  %v1866 = vpack.c.b16 %v1475, %v1474
  %v1867 = vpack.c.b16 %v1477, %v1476
  %v1868 = vpack.c.b16 %v1479, %v1478
  %v1869 = vpack.c.b16 %v1481, %v1480
  %v1870 = vpack.c.b16 %v1483, %v1482
  %v1871 = vpack.c.b16 %v1485, %v1484
  %v1872 = vpack.c.b16 %v1487, %v1486
  %v1873 = vpack.c.b16 %v1489, %v1488
  %v1874 = vpack.c.b16 %v1491, %v1490
  %v1875 = vpack.c.b16 %v1493, %v1492
  %v1876 = vpack.c.b16 %v1495, %v1494
  %v1877 = vpack.c.b16 %v1497, %v1496
  %v1878 = vpack.c.b16 %v1499, %v1498
  %v1879 = vpack.c.b16 %v1501, %v1500
  %v1880 = vpack.c.b16 %v1503, %v1502
  %v1881 = vpack.c.b16 %v1505, %v1504
  %v1882 = vpack.c.b16 %v1507, %v1506
  %v1883 = vpack.c.b16 %v1509, %v1508
  %v1884 = vpack.c.b16 %v1511, %v1510
  %v1885 = vpack.c.b16 %v1513, %v1512
  %v1886 = vpack.c.b16 %v1515, %v1514
  %v1887 = vpack.c.b16 %v1517, %v1516
  %v1888 = vpack.c.b16 %v1519, %v1518
  %v1889 = vpack.c.b16 %v1521, %v1520
  %v1890 = vpack.c.b16 %v1523, %v1522
  %v1891 = vpack.c.b16 %v1525, %v1524
  %v1892 = vpack.c.b16 %v1527, %v1526
  %v1893 = vpack.c.b16 %v1529, %v1528
  %v1894 = vpack.c.b16 %v1531, %v1530
  %v1895 = vpack.c.b16 %v1533, %v1532
  %v1896 = vpack.c.b16 %v1535, %v1534
  %v1897 = vpack.c.b16 %v1537, %v1536
  %v1898 = vpack.c.b16 %v1539, %v1538
  %v1899 = vpack.c.b16 %v1541, %v1540
  %v1900 = vpack.c.b16 %v1543, %v1542
  %v1901 = vpack.c.b16 %v1545, %v1544
  %v1902 = vpack.c.b16 %v1547, %v1546
  %v1903 = vpack.c.b16 %v1549, %v1548
  %v1904 = vpack.c.b16 %v1551, %v1550
  %v1905 = vpack.c.b16 %v1553, %v1552
  %v1906 = vpack.c.b16 %v1555, %v1554
  %v1907 = vpack.c.b16 %v1557, %v1556
  %v1908 = vpack.c.b16 %v1559, %v1558
  %v1909 = vpack.c.b16 %v1561, %v1560
  %v1910 = vpack.c.b16 %v1563, %v1562
  %v1911 = vpack.c.b16 %v1565, %v1564
  %v1912 = vpack.c.b16 %v1567, %v1566
  %v1913 = vpack.c.b16 %v1569, %v1568
  %v1914 = vpack.c.b16 %v1571, %v1570
  %v1915 = vpack.c.b16 %v1573, %v1572
  %v1916 = vpack.c.b16 %v1575, %v1574
  %v1917 = vpack.c.b16 %v1577, %v1576
  %v1918 = vpack.c.b16 %v1579, %v1578
  %v1919 = vpack.c.b16 %v1581, %v1580
  %v1920 = vpack.c.b16 %v1583, %v1582
  %v1921 = vpack.c.b16 %v1585, %v1584
  %v1922 = vpack.c.b16 %v1587, %v1586
  %v1923 = vpack.c.b16 %v1589, %v1588
  %v1924 = vpack.c.b16 %v1591, %v1590
  %v1925 = vpack.c.b16 %v1593, %v1592
  %v1926 = vpack.c.b16 %v1595, %v1594
  %v1927 = vpack.c.b16 %v1597, %v1596
  %v1928 = vpack.c.b16 %v1599, %v1598
  %v1929 = vpack.c.b16 %v1601, %v1600
  %v1930 = vpack.c.b16 %v1603, %v1602
  %v1931 = vpack.c.b16 %v1605, %v1604
  %v1932 = vpack.c.b16 %v1607, %v1606
  %v1933 = vpack.c.b16 %v1609, %v1608
  %v1934 = vpack.c.b16 %v1611, %v1610
  %v1935 = vpack.c.b16 %v1613, %v1612
  %v1936 = vpack.c.b16 %v1615, %v1614
  %v1937 = vpack.c.b16 %v1617, %v1616
  %v1938 = vpack.c.b16 %v1619, %v1618
  %v1939 = vpack.c.b16 %v1621, %v1620
  %v1940 = vpack.c.b16 %v1623, %v1622
  %v1941 = vpack.c.b16 %v1625, %v1624
  %v1942 = vpack.c.b16 %v1627, %v1626
  %v1943 = vpack.c.b16 %v1629, %v1628
  %v1944 = vpack.c.b16 %v1631, %v1630
  %v1945 = vpack.c.b16 %v1633, %v1632
  %v1946 = vpack.c.b16 %v1635, %v1634
  %v1947 = vpack.c.b16 %v1637, %v1636
  %v1948 = vpack.c.b16 %v1639, %v1638
  %v1949 = vpack.c.b16 %v1641, %v1640
  %v1950 = vpack.c.b16 %v1643, %v1642
  %v1951 = vpack.c.b16 %v1645, %v1644
  %v1952 = vpack.c.b16 %v1647, %v1646
  %v1953 = vpack.c.b16 %v1649, %v1648
  %v1954 = vpack.c.b16 %v1651, %v1650
  %v1955 = vpack.c.b16 %v1653, %v1652
  %v1956 = vpack.c.b16 %v1655, %v1654
  %v1957 = vpack.c.b16 %v1657, %v1656
  %v1958 = vpack.c.b16 %v1659, %v1658
  %v1959 = vpack.c.b16 %v1661, %v1660
  %v1960 = vpack.c.b16 %v1663, %v1662
  %v1961 = vpack.c.b16 %v1665, %v1664
  %v1962 = vpack.c.b16 %v1667, %v1666
  %v1963 = vpack.c.b16 %v1669, %v1668
  %v1964 = vpack.c.b16 %v1671, %v1670
  %v1965 = vpack.c.b16 %v1673, %v1672
  %v1966 = vpack.c.b16 %v1675, %v1674
  %v1967 = vpack.c.b16 %v1677, %v1676
  %v1968 = vpack.c.b16 %v1679, %v1678
  %v1969 = vpack.c.b16 %v1681, %v1680
  %v1970 = vpack.c.b16 %v1683, %v1682
  %v1971 = vpack.c.b16 %v1685, %v1684
  %v1972 = vpack.c.b16 %v1687, %v1686
  %v1973 = vpack.c.b16 %v1689, %v1688
  %v1974 = vpack.c.b16 %v1691, %v1690
  %v1975 = vpack.c.b16 %v1693, %v1692
  %v1976 = vpack.c.b16 %v1695, %v1694
  %v1977 = vpack.c.b16 %v1697, %v1696
  %v1978 = vpack.c.b16 %v1699, %v1698
  %v1979 = vpack.c.b16 %v1701, %v1700
  %v1980 = vpack.c.b16 %v1703, %v1702
  %v1981 = vpack.c.b16 %v1705, %v1704
  %v1982 = vpack.c.b16 %v1707, %v1706
  %v1983 = vpack.c.b16 %v1709, %v1708
  %v1984 = vpack.c.b16 %v1711, %v1710
  %v1985 = vpack.c.b16 %v1713, %v1712
  %v1986 = vpack.c.b16 %v1715, %v1714
  %v1987 = vpack.c.b16 %v1717, %v1716
  %v1988 = vpack.c.b16 %v1719, %v1718
  %v1989 = vpack.c.b16 %v1721, %v1720
  %v1990 = vpack.c.b16 %v1723, %v1722
  %v1991 = vpack.c.b16 %v1725, %v1724
  %v1992 = vpack.c.b16 %v1727, %v1726
  %v1993 = vpack.c.b16 %v1729, %v1728
  %v1994 = vpack.c.b16 %v1731, %v1730
  %v1995 = vpack.c.b16 %v1733, %v1732
  %v1996 = vpack.c.b16 %v1735, %v1734
  %v1997 = vpack.c.b16 %v1737, %v1736
  %v1998 = vpack.c.b16 %v1739, %v1738
  %v1999 = vpack.c.b16 %v1741, %v1740
  %v2000 = vpack.c.b16 %v1743, %v1742
  %v2001 = vpack.c.b16 %v1745, %v1744
  %2258 = vmatpush.bf16.msra.mxu0 %v1753
  %2259 = vmatpush.bf16.msra.mxu0 %v1752
  %2260 = vmatpush.bf16.msra.mxu0 %v1751
  %2261 = vmatpush.bf16.msra.mxu0 %v1750
  %2262 = vmatpush.bf16.msra.mxu0 %v1749
  %2263 = vmatpush.bf16.msra.mxu0 %v1748
  %2264 = vmatpush.bf16.msra.mxu0 %v1747
  %2265 = vmatpush.bf16.msra.mxu0 %v1746
  %2266 = vmatmul.bf16.gmra.mxu0 %v658
  %v2267 = vpop.f32.mrf.mxu0
  %v2268 = vadd.f32 %v560, %v2267
  %v2269 = vpop.f32.mrf.mxu0
  %v2270 = vadd.f32 %v560, %v2269
  %2271 = vdwg.mxu0
  %2272 = vmatpush.bf16.msra.mxu0 %v1761
  %2273 = vmatpush.bf16.msra.mxu0 %v1760
  %2274 = vmatpush.bf16.msra.mxu0 %v1759
  %2275 = vmatpush.bf16.msra.mxu0 %v1758
  %2276 = vmatpush.bf16.msra.mxu0 %v1757
  %2277 = vmatpush.bf16.msra.mxu0 %v1756
  %2278 = vmatpush.bf16.msra.mxu0 %v1755
  %2279 = vmatpush.bf16.msra.mxu0 %v1754
  %2280 = vmatmul.bf16.gmra.mxu0 %v659
  %v2281 = vpop.f32.mrf.mxu0
  %v2282 = vadd.f32 %v2268, %v2281
  %v2283 = vpop.f32.mrf.mxu0
  %v2284 = vadd.f32 %v2270, %v2283
  %2285 = vdwg.mxu0
  %2286 = vmatpush.bf16.msra.mxu0 %v1769
  %2287 = vmatpush.bf16.msra.mxu0 %v1768
  %2288 = vmatpush.bf16.msra.mxu0 %v1767
  %2289 = vmatpush.bf16.msra.mxu0 %v1766
  %2290 = vmatpush.bf16.msra.mxu0 %v1765
  %2291 = vmatpush.bf16.msra.mxu0 %v1764
  %2292 = vmatpush.bf16.msra.mxu0 %v1763
  %2293 = vmatpush.bf16.msra.mxu0 %v1762
  %2294 = vmatmul.bf16.gmra.mxu0 %v660
  %v2295 = vpop.f32.mrf.mxu0
  %v2296 = vadd.f32 %v2282, %v2295
  %v2297 = vpop.f32.mrf.mxu0
  %v2298 = vadd.f32 %v2284, %v2297
  %2299 = vdwg.mxu0
  %2300 = vmatpush.bf16.msra.mxu0 %v1777
  %2301 = vmatpush.bf16.msra.mxu0 %v1776
  %2302 = vmatpush.bf16.msra.mxu0 %v1775
  %2303 = vmatpush.bf16.msra.mxu0 %v1774
  %2304 = vmatpush.bf16.msra.mxu0 %v1773
  %2305 = vmatpush.bf16.msra.mxu0 %v1772
  %2306 = vmatpush.bf16.msra.mxu0 %v1771
  %2307 = vmatpush.bf16.msra.mxu0 %v1770
  %2308 = vmatmul.bf16.gmra.mxu0 %v661
  %v2309 = vpop.f32.mrf.mxu0
  %v2310 = vadd.f32 %v2296, %v2309
  %v2311 = vpop.f32.mrf.mxu0
  %v2312 = vadd.f32 %v2298, %v2311
  %2313 = vdwg.mxu0
  %2314 = vmatpush.bf16.msra.mxu0 %v1785
  %2315 = vmatpush.bf16.msra.mxu0 %v1784
  %2316 = vmatpush.bf16.msra.mxu0 %v1783
  %2317 = vmatpush.bf16.msra.mxu0 %v1782
  %2318 = vmatpush.bf16.msra.mxu0 %v1781
  %2319 = vmatpush.bf16.msra.mxu0 %v1780
  %2320 = vmatpush.bf16.msra.mxu0 %v1779
  %2321 = vmatpush.bf16.msra.mxu0 %v1778
  %2322 = vmatmul.bf16.gmra.mxu0 %v662
  %v2323 = vpop.f32.mrf.mxu0
  %v2324 = vadd.f32 %v2310, %v2323
  %v2325 = vpop.f32.mrf.mxu0
  %v2326 = vadd.f32 %v2312, %v2325
  %2327 = vdwg.mxu0
  %2328 = vmatpush.bf16.msra.mxu0 %v1793
  %2329 = vmatpush.bf16.msra.mxu0 %v1792
  %2330 = vmatpush.bf16.msra.mxu0 %v1791
  %2331 = vmatpush.bf16.msra.mxu0 %v1790
  %2332 = vmatpush.bf16.msra.mxu0 %v1789
  %2333 = vmatpush.bf16.msra.mxu0 %v1788
  %2334 = vmatpush.bf16.msra.mxu0 %v1787
  %2335 = vmatpush.bf16.msra.mxu0 %v1786
  %2336 = vmatmul.bf16.gmra.mxu0 %v663
  %v2337 = vpop.f32.mrf.mxu0
  %v2338 = vadd.f32 %v2324, %v2337
  %v2339 = vpop.f32.mrf.mxu0
  %v2340 = vadd.f32 %v2326, %v2339
  %2341 = vdwg.mxu0
  %2342 = vmatpush.bf16.msra.mxu0 %v1801
  %2343 = vmatpush.bf16.msra.mxu0 %v1800
  %2344 = vmatpush.bf16.msra.mxu0 %v1799
  %2345 = vmatpush.bf16.msra.mxu0 %v1798
  %2346 = vmatpush.bf16.msra.mxu0 %v1797
  %2347 = vmatpush.bf16.msra.mxu0 %v1796
  %2348 = vmatpush.bf16.msra.mxu0 %v1795
  %2349 = vmatpush.bf16.msra.mxu0 %v1794
  %2350 = vmatmul.bf16.gmra.mxu0 %v664
  %v2351 = vpop.f32.mrf.mxu0
  %v2352 = vadd.f32 %v2338, %v2351
  %v2353 = vpop.f32.mrf.mxu0
  %v2354 = vadd.f32 %v2340, %v2353
  %2355 = vdwg.mxu0
  %2356 = vmatpush.bf16.msra.mxu0 %v1809
  %2357 = vmatpush.bf16.msra.mxu0 %v1808
  %2358 = vmatpush.bf16.msra.mxu0 %v1807
  %2359 = vmatpush.bf16.msra.mxu0 %v1806
  %2360 = vmatpush.bf16.msra.mxu0 %v1805
  %2361 = vmatpush.bf16.msra.mxu0 %v1804
  %2362 = vmatpush.bf16.msra.mxu0 %v1803
  %2363 = vmatpush.bf16.msra.mxu0 %v1802
  %2364 = vmatmul.bf16.gmra.mxu0 %v665
  %v2365 = vpop.f32.mrf.mxu0
  %v2366 = vadd.f32 %v2352, %v2365
  %v2367 = vpop.f32.mrf.mxu0
  %v2368 = vadd.f32 %v2354, %v2367
  %2369 = vdwg.mxu0
  %2370 = vmatpush.bf16.msra.mxu0 %v1817
  %2371 = vmatpush.bf16.msra.mxu0 %v1816
  %2372 = vmatpush.bf16.msra.mxu0 %v1815
  %2373 = vmatpush.bf16.msra.mxu0 %v1814
  %2374 = vmatpush.bf16.msra.mxu0 %v1813
  %2375 = vmatpush.bf16.msra.mxu0 %v1812
  %2376 = vmatpush.bf16.msra.mxu0 %v1811
  %2377 = vmatpush.bf16.msra.mxu0 %v1810
  %2378 = vmatmul.bf16.gmra.mxu0 %v666
  %v2379 = vpop.f32.mrf.mxu0
  %v2380 = vadd.f32 %v2366, %v2379
  %v2381 = vpop.f32.mrf.mxu0
  %v2382 = vadd.f32 %v2368, %v2381
  %2383 = vdwg.mxu0
  %2384 = vmatpush.bf16.msra.mxu0 %v1825
  %2385 = vmatpush.bf16.msra.mxu0 %v1824
  %2386 = vmatpush.bf16.msra.mxu0 %v1823
  %2387 = vmatpush.bf16.msra.mxu0 %v1822
  %2388 = vmatpush.bf16.msra.mxu0 %v1821
  %2389 = vmatpush.bf16.msra.mxu0 %v1820
  %2390 = vmatpush.bf16.msra.mxu0 %v1819
  %2391 = vmatpush.bf16.msra.mxu0 %v1818
  %2392 = vmatmul.bf16.gmra.mxu0 %v667
  %v2393 = vpop.f32.mrf.mxu0
  %v2394 = vadd.f32 %v2380, %v2393
  %v2395 = vpop.f32.mrf.mxu0
  %v2396 = vadd.f32 %v2382, %v2395
  %2397 = vdwg.mxu0
  %2398 = vmatpush.bf16.msra.mxu0 %v1833
  %2399 = vmatpush.bf16.msra.mxu0 %v1832
  %2400 = vmatpush.bf16.msra.mxu0 %v1831
  %2401 = vmatpush.bf16.msra.mxu0 %v1830
  %2402 = vmatpush.bf16.msra.mxu0 %v1829
  %2403 = vmatpush.bf16.msra.mxu0 %v1828
  %2404 = vmatpush.bf16.msra.mxu0 %v1827
  %2405 = vmatpush.bf16.msra.mxu0 %v1826
  %2406 = vmatmul.bf16.gmra.mxu0 %v668
  %v2407 = vpop.f32.mrf.mxu0
  %v2408 = vadd.f32 %v2394, %v2407
  %v2409 = vpop.f32.mrf.mxu0
  %v2410 = vadd.f32 %v2396, %v2409
  %2411 = vdwg.mxu0
  %2412 = vmatpush.bf16.msra.mxu0 %v1841
  %2413 = vmatpush.bf16.msra.mxu0 %v1840
  %2414 = vmatpush.bf16.msra.mxu0 %v1839
  %2415 = vmatpush.bf16.msra.mxu0 %v1838
  %2416 = vmatpush.bf16.msra.mxu0 %v1837
  %2417 = vmatpush.bf16.msra.mxu0 %v1836
  %2418 = vmatpush.bf16.msra.mxu0 %v1835
  %2419 = vmatpush.bf16.msra.mxu0 %v1834
  %2420 = vmatmul.bf16.gmra.mxu0 %v669
  %v2421 = vpop.f32.mrf.mxu0
  %v2422 = vadd.f32 %v2408, %v2421
  %v2423 = vpop.f32.mrf.mxu0
  %v2424 = vadd.f32 %v2410, %v2423
  %2425 = vdwg.mxu0
  %2426 = vmatpush.bf16.msra.mxu0 %v1849
  %2427 = vmatpush.bf16.msra.mxu0 %v1848
  %2428 = vmatpush.bf16.msra.mxu0 %v1847
  %2429 = vmatpush.bf16.msra.mxu0 %v1846
  %2430 = vmatpush.bf16.msra.mxu0 %v1845
  %2431 = vmatpush.bf16.msra.mxu0 %v1844
  %2432 = vmatpush.bf16.msra.mxu0 %v1843
  %2433 = vmatpush.bf16.msra.mxu0 %v1842
  %2434 = vmatmul.bf16.gmra.mxu0 %v670
  %v2435 = vpop.f32.mrf.mxu0
  %v2436 = vadd.f32 %v2422, %v2435
  %v2437 = vpop.f32.mrf.mxu0
  %v2438 = vadd.f32 %v2424, %v2437
  %2439 = vdwg.mxu0
  %2440 = vmatpush.bf16.msra.mxu0 %v1857
  %2441 = vmatpush.bf16.msra.mxu0 %v1856
  %2442 = vmatpush.bf16.msra.mxu0 %v1855
  %2443 = vmatpush.bf16.msra.mxu0 %v1854
  %2444 = vmatpush.bf16.msra.mxu0 %v1853
  %2445 = vmatpush.bf16.msra.mxu0 %v1852
  %2446 = vmatpush.bf16.msra.mxu0 %v1851
  %2447 = vmatpush.bf16.msra.mxu0 %v1850
  %2448 = vmatmul.bf16.gmra.mxu0 %v671
  %v2449 = vpop.f32.mrf.mxu0
  %v2450 = vadd.f32 %v2436, %v2449
  %v2451 = vpop.f32.mrf.mxu0
  %v2452 = vadd.f32 %v2438, %v2451
  %2453 = vdwg.mxu0
  %2454 = vmatpush.bf16.msra.mxu0 %v1865
  %2455 = vmatpush.bf16.msra.mxu0 %v1864
  %2456 = vmatpush.bf16.msra.mxu0 %v1863
  %2457 = vmatpush.bf16.msra.mxu0 %v1862
  %2458 = vmatpush.bf16.msra.mxu0 %v1861
  %2459 = vmatpush.bf16.msra.mxu0 %v1860
  %2460 = vmatpush.bf16.msra.mxu0 %v1859
  %2461 = vmatpush.bf16.msra.mxu0 %v1858
  %2462 = vmatmul.bf16.gmra.mxu0 %v672
  %v2463 = vpop.f32.mrf.mxu0
  %v2464 = vadd.f32 %v2450, %v2463
  %v2465 = vpop.f32.mrf.mxu0
  %v2466 = vadd.f32 %v2452, %v2465
  %2467 = vdwg.mxu0
  %2468 = vmatpush.bf16.msra.mxu0 %v1873
  %2469 = vmatpush.bf16.msra.mxu0 %v1872
  %2470 = vmatpush.bf16.msra.mxu0 %v1871
  %2471 = vmatpush.bf16.msra.mxu0 %v1870
  %2472 = vmatpush.bf16.msra.mxu0 %v1869
  %2473 = vmatpush.bf16.msra.mxu0 %v1868
  %2474 = vmatpush.bf16.msra.mxu0 %v1867
  %2475 = vmatpush.bf16.msra.mxu0 %v1866
  %2476 = vmatmul.bf16.gmra.mxu0 %v673
  %v2477 = vpop.f32.mrf.mxu0
  %v2478 = vadd.f32 %v2464, %v2477
  %v2479 = vpop.f32.mrf.mxu0
  %v2480 = vadd.f32 %v2466, %v2479
  %2481 = vdwg.mxu0
  %2482 = vmatpush.bf16.msra.mxu0 %v1881
  %2483 = vmatpush.bf16.msra.mxu0 %v1880
  %2484 = vmatpush.bf16.msra.mxu0 %v1879
  %2485 = vmatpush.bf16.msra.mxu0 %v1878
  %2486 = vmatpush.bf16.msra.mxu0 %v1877
  %2487 = vmatpush.bf16.msra.mxu0 %v1876
  %2488 = vmatpush.bf16.msra.mxu0 %v1875
  %2489 = vmatpush.bf16.msra.mxu0 %v1874
  %2490 = vmatmul.bf16.gmra.mxu0 %v674
  %v2491 = vpop.f32.mrf.mxu0
  %v2492 = vadd.f32 %v2478, %v2491
  %v2493 = vpop.f32.mrf.mxu0
  %v2494 = vadd.f32 %v2480, %v2493
  %2495 = vdwg.mxu0
  %2496 = vmatpush.bf16.msra.mxu0 %v1889
  %2497 = vmatpush.bf16.msra.mxu0 %v1888
  %2498 = vmatpush.bf16.msra.mxu0 %v1887
  %2499 = vmatpush.bf16.msra.mxu0 %v1886
  %2500 = vmatpush.bf16.msra.mxu0 %v1885
  %2501 = vmatpush.bf16.msra.mxu0 %v1884
  %2502 = vmatpush.bf16.msra.mxu0 %v1883
  %2503 = vmatpush.bf16.msra.mxu0 %v1882
  %2504 = vmatmul.bf16.gmra.mxu0 %v675
  %v2505 = vpop.f32.mrf.mxu0
  %v2506 = vadd.f32 %v2492, %v2505
  %v2507 = vpop.f32.mrf.mxu0
  %v2508 = vadd.f32 %v2494, %v2507
  %2509 = vdwg.mxu0
  %2510 = vmatpush.bf16.msra.mxu0 %v1897
  %2511 = vmatpush.bf16.msra.mxu0 %v1896
  %2512 = vmatpush.bf16.msra.mxu0 %v1895
  %2513 = vmatpush.bf16.msra.mxu0 %v1894
  %2514 = vmatpush.bf16.msra.mxu0 %v1893
  %2515 = vmatpush.bf16.msra.mxu0 %v1892
  %2516 = vmatpush.bf16.msra.mxu0 %v1891
  %2517 = vmatpush.bf16.msra.mxu0 %v1890
  %2518 = vmatmul.bf16.gmra.mxu0 %v676
  %v2519 = vpop.f32.mrf.mxu0
  %v2520 = vadd.f32 %v2506, %v2519
  %v2521 = vpop.f32.mrf.mxu0
  %v2522 = vadd.f32 %v2508, %v2521
  %2523 = vdwg.mxu0
  %2524 = vmatpush.bf16.msra.mxu0 %v1905
  %2525 = vmatpush.bf16.msra.mxu0 %v1904
  %2526 = vmatpush.bf16.msra.mxu0 %v1903
  %2527 = vmatpush.bf16.msra.mxu0 %v1902
  %2528 = vmatpush.bf16.msra.mxu0 %v1901
  %2529 = vmatpush.bf16.msra.mxu0 %v1900
  %2530 = vmatpush.bf16.msra.mxu0 %v1899
  %2531 = vmatpush.bf16.msra.mxu0 %v1898
  %2532 = vmatmul.bf16.gmra.mxu0 %v677
  %v2533 = vpop.f32.mrf.mxu0
  %v2534 = vadd.f32 %v2520, %v2533
  %v2535 = vpop.f32.mrf.mxu0
  %v2536 = vadd.f32 %v2522, %v2535
  %2537 = vdwg.mxu0
  %2538 = vmatpush.bf16.msra.mxu0 %v1913
  %2539 = vmatpush.bf16.msra.mxu0 %v1912
  %2540 = vmatpush.bf16.msra.mxu0 %v1911
  %2541 = vmatpush.bf16.msra.mxu0 %v1910
  %2542 = vmatpush.bf16.msra.mxu0 %v1909
  %2543 = vmatpush.bf16.msra.mxu0 %v1908
  %2544 = vmatpush.bf16.msra.mxu0 %v1907
  %2545 = vmatpush.bf16.msra.mxu0 %v1906
  %2546 = vmatmul.bf16.gmra.mxu0 %v678
  %v2547 = vpop.f32.mrf.mxu0
  %v2548 = vadd.f32 %v2534, %v2547
  %v2549 = vpop.f32.mrf.mxu0
  %v2550 = vadd.f32 %v2536, %v2549
  %2551 = vdwg.mxu0
  %2552 = vmatpush.bf16.msra.mxu0 %v1921
  %2553 = vmatpush.bf16.msra.mxu0 %v1920
  %2554 = vmatpush.bf16.msra.mxu0 %v1919
  %2555 = vmatpush.bf16.msra.mxu0 %v1918
  %2556 = vmatpush.bf16.msra.mxu0 %v1917
  %2557 = vmatpush.bf16.msra.mxu0 %v1916
  %2558 = vmatpush.bf16.msra.mxu0 %v1915
  %2559 = vmatpush.bf16.msra.mxu0 %v1914
  %2560 = vmatmul.bf16.gmra.mxu0 %v679
  %v2561 = vpop.f32.mrf.mxu0
  %v2562 = vadd.f32 %v2548, %v2561
  %v2563 = vpop.f32.mrf.mxu0
  %v2564 = vadd.f32 %v2550, %v2563
  %2565 = vdwg.mxu0
  %2566 = vmatpush.bf16.msra.mxu0 %v1929
  %2567 = vmatpush.bf16.msra.mxu0 %v1928
  %2568 = vmatpush.bf16.msra.mxu0 %v1927
  %2569 = vmatpush.bf16.msra.mxu0 %v1926
  %2570 = vmatpush.bf16.msra.mxu0 %v1925
  %2571 = vmatpush.bf16.msra.mxu0 %v1924
  %2572 = vmatpush.bf16.msra.mxu0 %v1923
  %2573 = vmatpush.bf16.msra.mxu0 %v1922
  %2574 = vmatmul.bf16.gmra.mxu0 %v680
  %v2575 = vpop.f32.mrf.mxu0
  %v2576 = vadd.f32 %v2562, %v2575
  %v2577 = vpop.f32.mrf.mxu0
  %v2578 = vadd.f32 %v2564, %v2577
  %2579 = vdwg.mxu0
  %2580 = vmatpush.bf16.msra.mxu0 %v1937
  %2581 = vmatpush.bf16.msra.mxu0 %v1936
  %2582 = vmatpush.bf16.msra.mxu0 %v1935
  %2583 = vmatpush.bf16.msra.mxu0 %v1934
  %2584 = vmatpush.bf16.msra.mxu0 %v1933
  %2585 = vmatpush.bf16.msra.mxu0 %v1932
  %2586 = vmatpush.bf16.msra.mxu0 %v1931
  %2587 = vmatpush.bf16.msra.mxu0 %v1930
  %2588 = vmatmul.bf16.gmra.mxu0 %v681
  %v2589 = vpop.f32.mrf.mxu0
  %v2590 = vadd.f32 %v2576, %v2589
  %v2591 = vpop.f32.mrf.mxu0
  %v2592 = vadd.f32 %v2578, %v2591
  %2593 = vdwg.mxu0
  %2594 = vmatpush.bf16.msra.mxu0 %v1945
  %2595 = vmatpush.bf16.msra.mxu0 %v1944
  %2596 = vmatpush.bf16.msra.mxu0 %v1943
  %2597 = vmatpush.bf16.msra.mxu0 %v1942
  %2598 = vmatpush.bf16.msra.mxu0 %v1941
  %2599 = vmatpush.bf16.msra.mxu0 %v1940
  %2600 = vmatpush.bf16.msra.mxu0 %v1939
  %2601 = vmatpush.bf16.msra.mxu0 %v1938
  %2602 = vmatmul.bf16.gmra.mxu0 %v682
  %v2603 = vpop.f32.mrf.mxu0
  %v2604 = vadd.f32 %v2590, %v2603
  %v2605 = vpop.f32.mrf.mxu0
  %v2606 = vadd.f32 %v2592, %v2605
  %2607 = vdwg.mxu0
  %2608 = vmatpush.bf16.msra.mxu0 %v1953
  %2609 = vmatpush.bf16.msra.mxu0 %v1952
  %2610 = vmatpush.bf16.msra.mxu0 %v1951
  %2611 = vmatpush.bf16.msra.mxu0 %v1950
  %2612 = vmatpush.bf16.msra.mxu0 %v1949
  %2613 = vmatpush.bf16.msra.mxu0 %v1948
  %2614 = vmatpush.bf16.msra.mxu0 %v1947
  %2615 = vmatpush.bf16.msra.mxu0 %v1946
  %2616 = vmatmul.bf16.gmra.mxu0 %v683
  %v2617 = vpop.f32.mrf.mxu0
  %v2618 = vadd.f32 %v2604, %v2617
  %v2619 = vpop.f32.mrf.mxu0
  %v2620 = vadd.f32 %v2606, %v2619
  %2621 = vdwg.mxu0
  %2622 = vmatpush.bf16.msra.mxu0 %v1961
  %2623 = vmatpush.bf16.msra.mxu0 %v1960
  %2624 = vmatpush.bf16.msra.mxu0 %v1959
  %2625 = vmatpush.bf16.msra.mxu0 %v1958
  %2626 = vmatpush.bf16.msra.mxu0 %v1957
  %2627 = vmatpush.bf16.msra.mxu0 %v1956
  %2628 = vmatpush.bf16.msra.mxu0 %v1955
  %2629 = vmatpush.bf16.msra.mxu0 %v1954
  %2630 = vmatmul.bf16.gmra.mxu0 %v684
  %v2631 = vpop.f32.mrf.mxu0
  %v2632 = vadd.f32 %v2618, %v2631
  %v2633 = vpop.f32.mrf.mxu0
  %v2634 = vadd.f32 %v2620, %v2633
  %2635 = vdwg.mxu0
  %2636 = vmatpush.bf16.msra.mxu0 %v1969
  %2637 = vmatpush.bf16.msra.mxu0 %v1968
  %2638 = vmatpush.bf16.msra.mxu0 %v1967
  %2639 = vmatpush.bf16.msra.mxu0 %v1966
  %2640 = vmatpush.bf16.msra.mxu0 %v1965
  %2641 = vmatpush.bf16.msra.mxu0 %v1964
  %2642 = vmatpush.bf16.msra.mxu0 %v1963
  %2643 = vmatpush.bf16.msra.mxu0 %v1962
  %2644 = vmatmul.bf16.gmra.mxu0 %v685
  %v2645 = vpop.f32.mrf.mxu0
  %v2646 = vadd.f32 %v2632, %v2645
  %v2647 = vpop.f32.mrf.mxu0
  %v2648 = vadd.f32 %v2634, %v2647
  %2649 = vdwg.mxu0
  %2650 = vmatpush.bf16.msra.mxu0 %v1977
  %2651 = vmatpush.bf16.msra.mxu0 %v1976
  %2652 = vmatpush.bf16.msra.mxu0 %v1975
  %2653 = vmatpush.bf16.msra.mxu0 %v1974
  %2654 = vmatpush.bf16.msra.mxu0 %v1973
  %2655 = vmatpush.bf16.msra.mxu0 %v1972
  %2656 = vmatpush.bf16.msra.mxu0 %v1971
  %2657 = vmatpush.bf16.msra.mxu0 %v1970
  %2658 = vmatmul.bf16.gmra.mxu0 %v686
  %v2659 = vpop.f32.mrf.mxu0
  %v2660 = vadd.f32 %v2646, %v2659
  %v2661 = vpop.f32.mrf.mxu0
  %v2662 = vadd.f32 %v2648, %v2661
  %2663 = vdwg.mxu0
  %2664 = vmatpush.bf16.msra.mxu0 %v1985
  %2665 = vmatpush.bf16.msra.mxu0 %v1984
  %2666 = vmatpush.bf16.msra.mxu0 %v1983
  %2667 = vmatpush.bf16.msra.mxu0 %v1982
  %2668 = vmatpush.bf16.msra.mxu0 %v1981
  %2669 = vmatpush.bf16.msra.mxu0 %v1980
  %2670 = vmatpush.bf16.msra.mxu0 %v1979
  %2671 = vmatpush.bf16.msra.mxu0 %v1978
  %2672 = vmatmul.bf16.gmra.mxu0 %v687
  %v2673 = vpop.f32.mrf.mxu0
  %v2674 = vadd.f32 %v2660, %v2673
  %v2675 = vpop.f32.mrf.mxu0
  %v2676 = vadd.f32 %v2662, %v2675
  %2677 = vdwg.mxu0
  %2678 = vmatpush.bf16.msra.mxu0 %v1993
  %2679 = vmatpush.bf16.msra.mxu0 %v1992
  %2680 = vmatpush.bf16.msra.mxu0 %v1991
  %2681 = vmatpush.bf16.msra.mxu0 %v1990
  %2682 = vmatpush.bf16.msra.mxu0 %v1989
  %2683 = vmatpush.bf16.msra.mxu0 %v1988
  %2684 = vmatpush.bf16.msra.mxu0 %v1987
  %2685 = vmatpush.bf16.msra.mxu0 %v1986
  %2686 = vmatmul.bf16.gmra.mxu0 %v688
  %v2687 = vpop.f32.mrf.mxu0
  %v2688 = vadd.f32 %v2674, %v2687
  %v2689 = vpop.f32.mrf.mxu0
  %v2690 = vadd.f32 %v2676, %v2689
  %2691 = vdwg.mxu0
  %2692 = vmatpush.bf16.msra.mxu0 %v2001
  %2693 = vmatpush.bf16.msra.mxu0 %v2000
  %2694 = vmatpush.bf16.msra.mxu0 %v1999
  %2695 = vmatpush.bf16.msra.mxu0 %v1998
  %2696 = vmatpush.bf16.msra.mxu0 %v1997
  %2697 = vmatpush.bf16.msra.mxu0 %v1996
  %2698 = vmatpush.bf16.msra.mxu0 %v1995
  %2699 = vmatpush.bf16.msra.mxu0 %v1994
  %2700 = vmatmul.bf16.gmra.mxu0 %v689
  %v2701 = vpop.f32.mrf.mxu0
  %v2702 = vadd.f32 %v2688, %v2701
  %v2703 = vpop.f32.mrf.mxu0
  %v2704 = vadd.f32 %v2690, %v2703
  %2705 = vdwg.mxu0
  %2706 = vst [vmem:[%s3] sm:$0xff] %v2702
  %2707 = vst [vmem:[%s3 + $0x8] sm:$0xff] %v2704
  // Predicated region
  $region14: #{shallow_1dcnn_forward.9} parent=0 // pred_check
    _
  $region15: #{shallow_1dcnn_forward.9} parent=0 // pred_check_branch
    %2709 = sbr.rel (0) target = $region17
  $region16: #{shallow_1dcnn_forward.9} parent=0 // pred_region
    _
  $region17: #{shallow_1dcnn_forward.9} parent=0 // pred_fallthru
    _
  // Predicated region
  $region18: #{shallow_1dcnn_forward.9} parent=0 // pred_check
    _
  $region19: #{shallow_1dcnn_forward.9} parent=0 // pred_check_branch
    %2711 = sbr.rel (0) target = $region21
  $region20: #{shallow_1dcnn_forward.9} parent=0 // pred_region
    _
  $region21: #{shallow_1dcnn_forward.9} parent=0 // pred_fallthru
    _

</llo_original>
